<compile_context>
chip_gen: v6e
topology: v6e:2x2x1
jax: 0.10.0
libtpu: 0.0.40
codegen_flags: <defaults>
</compile_context>

<pallas_src>
import numpy as np

import jax
import jax.numpy as jnp
from jax import lax
from jax.experimental import pallas as pl
from jax.experimental.pallas import tpu as pltpu

# ----------------------------------------------------------------------------
# Model configuration (matches the PyTorch module instantiation):
# encoder:  Conv2d(4, 8, 3, 2, 1) -> ReLU -> Conv2d(8, 16, 3, 2, 1) -> ReLU
#           -> Conv2d(16, 8, 3, 1, 1)
# decoder:  ConvT(8, 16, 3, 1, 1) -> ReLU -> ConvT(16, 8, 3, 2, 1, out_pad=1)
#           -> ReLU -> ConvT(8, 4, 4, 2, 1) -> Sigmoid
# ----------------------------------------------------------------------------
LATENT_DIM = 16
IMG_C, IMG_H, IMG_W = 4, 16, 16
Z_SPACE = (8, 4, 4)                                   # (C, H, W) of the code
Z_FLAT = Z_SPACE[0] * Z_SPACE[1] * Z_SPACE[2]         # 128


# ----------------------------------------------------------------------------
# Fused Pallas kernel: whole VAE forward in one kernel body
# ----------------------------------------------------------------------------
def _vae_fused_kernel(x_ref, eps_ref,
                      e1w, e1b, e2w, e2b, e3w, e3b,        # encoder operators
                      hw, hb, uw, ub,                      # heads / upsample
                      d1w, d1b, d2w, d2b, d3w, d3b,        # decoder operators
                      recon_ref, heads_ref):
    def dense(a, w_ref, b_ref, act):
        # bf16 x bf16 on the MXU, f32 accumulation / epilogue.
        y = jnp.dot(a.astype(jnp.bfloat16), w_ref[...],
                    preferred_element_type=jnp.float32)
        y = y + b_ref[...].astype(jnp.float32)
        if act == "relu":
            y = jnp.maximum(y, 0.0)
        elif act == "sigmoid":
            y = jax.nn.sigmoid(y)
        return y

    # ---- encoder (each conv is one matmul against its pre-built operator) ----
    x = x_ref[...]                                    # (B, 4*16*16) = (B, 1024)
    h = dense(x, e1w, e1b, "relu")                    # (B, 8*8*8)   = (B, 512)
    h = dense(h, e2w, e2b, "relu")                    # (B, 16*4*4)  = (B, 256)
    flat = dense(h, e3w, e3b, "none")                 # (B, 8*4*4)   = (B, 128)

    # ---- latent heads: mu and logvar fused into one matmul, stored merged ----
    heads = dense(flat, hw, hb, "none")               # (B, 2*LATENT_DIM)
    mu = heads[:, :LATENT_DIM]
    logvar = heads[:, LATENT_DIM:]

    # ---- reparametrize: eps ~ N(0,1) supplied by the host RNG (exact normal,
    #      same contract as torch.randn_like) ----
    z = mu + eps_ref[...] * jnp.exp(0.5 * logvar)     # (B, LATENT_DIM)

    # ---- z_sample: upsample linear (the .view is a no-op in this layout) ----
    up = dense(z, uw, ub, "none")                     # (B, 128)

    # ---- decoder (transposed convs pre-folded into dense operators) ----
    d = dense(up, d1w, d1b, "relu")                   # (B, 16*4*4) = (B, 256)
    d = dense(d, d2w, d2b, "relu")                    # (B, 8*8*8)  = (B, 512)
    recon = dense(d, d3w, d3b, "sigmoid")             # (B, 4*16*16)= (B, 1024)

    recon_ref[...] = recon
    heads_ref[...] = heads


def vae_forward(prep, x, eps):
    """Mirrors M1_VAE.forward.  x: (B, 4, 16, 16) NCHW f32, eps: (B, 16) f32."""
    B = x.shape[0]
    out_feat = IMG_C * IMG_H * IMG_W
    # NCHW row-major flatten == torch .view contiguity; this reshape is free.
    x_flat = x.reshape(B, out_feat).astype(jnp.float32)

    vmem = pl.BlockSpec(memory_space=pltpu.MemorySpace.VMEM)

    recon_flat, heads = pl.pallas_call(
        _vae_fused_kernel,
        out_shape=(
            jax.ShapeDtypeStruct((B, out_feat), jnp.float32),
            jax.ShapeDtypeStruct((B, 2 * LATENT_DIM), jnp.float32),
        ),
        in_specs=[vmem, vmem] + [vmem] * len(prep),
        out_specs=(vmem, vmem),
        compiler_params=pltpu.CompilerParams(
            vmem_limit_bytes=12 * 1024 * 1024),
    )(x_flat, eps.astype(jnp.float32), *prep)

    recon = recon_flat.reshape(B, IMG_C, IMG_H, IMG_W)   # back to NCHW (free)
    mu = heads[:, :LATENT_DIM]
    logvar = heads[:, LATENT_DIM:]
    return recon, mu, logvar


# ----------------------------------------------------------------------------
# One-time (host-side) lowering of conv / conv-transpose layers into dense
# matmul operators acting on NCHW-flattened (c, h, w) row vectors.
# TODO(synk): these kron-folded operators are >95% structural zeros; for large
# batches, fold only the channel dim and keep a 9-tap spatial loop in-kernel to
# cut streamed weight bytes ~10x further.
# ----------------------------------------------------------------------------
def _conv2d_operator(w, b, H, W, stride, pad):
    """PyTorch Conv2d(w:(Cout,Cin,kh,kw)) -> (Cin*H*W, Cout*Ho*Wo) matmul op."""
    w = np.asarray(w, dtype=np.float32)
    b = np.asarray(b, dtype=np.float32)
    Cout, Cin, kh, kw = w.shape
    Ho = (H + 2 * pad - kh) // stride + 1
    Wo = (W + 2 * pad - kw) // stride + 1
    T = np.zeros((Cout * Ho * Wo, Cin * H * W), np.float32)
    for ki in range(kh):
        for kj in range(kw):
            S = np.zeros((Ho * Wo, H * W), np.float32)
            for ho in range(Ho):
                hi = ho * stride - pad + ki
                if hi < 0 or hi >= H:
                    continue
                for wo in range(Wo):
                    wi = wo * stride - pad + kj
                    if 0 <= wi < W:
                        S[ho * Wo + wo, hi * W + wi] = 1.0
            T += np.kron(w[:, :, ki, kj], S)
    bias = np.repeat(b, Ho * Wo)[None, :].astype(np.float32)
    return np.ascontiguousarray(T.T), bias, Ho, Wo


def _conv_transpose2d_operator(w, b, H, W, stride, pad, out_pad):
    """PyTorch ConvTranspose2d(w:(Cin,Cout,kh,kw)) -> dense matmul operator."""
    w = np.asarray(w, dtype=np.float32)
    b = np.asarray(b, dtype=np.float32)
    Cin, Cout, kh, kw = w.shape
    Ho = (H - 1) * stride - 2 * pad + kh + out_pad
    Wo = (W - 1) * stride - 2 * pad + kw + out_pad
    T = np.zeros((Cout * Ho * Wo, Cin * H * W), np.float32)
    for ki in range(kh):
        for kj in range(kw):
            S = np.zeros((Ho * Wo, H * W), np.float32)
            for ho in range(Ho):
                nh = ho + pad - ki
                if nh % stride != 0:
                    continue
                hi = nh // stride
                if hi < 0 or hi >= H:
                    continue
                for wo in range(Wo):
                    nw = wo + pad - kj
                    if nw % stride != 0:
                        continue
                    wi = nw // stride
                    if 0 <= wi < W:
                        S[ho * Wo + wo, hi * W + wi] = 1.0
            T += np.kron(w[:, :, ki, kj].T, S)       # (Cout, Cin) block
    bias = np.repeat(b, Ho * Wo)[None, :].astype(np.float32)
    return np.ascontiguousarray(T.T), bias, Ho, Wo


def prepare_params(params):
    """Pre-layout all weights ONCE into their matmul-ready (bf16) kernel form."""
    e1w, e1b, H1, W1 = _conv2d_operator(params["enc1_w"], params["enc1_b"],
                                        IMG_H, IMG_W, 2, 1)
    e2w, e2b, H2, W2 = _conv2d_operator(params["enc2_w"], params["enc2_b"],
                                        H1, W1, 2, 1)
    e3w, e3b, H3, W3 = _conv2d_operator(params["enc3_w"], params["enc3_b"],
                                        H2, W2, 1, 1)
    assert (int(params["enc3_w"].shape[0]), H3, W3) == Z_SPACE

    mu_w = np.asarray(params["mu_w"], np.float32)
    lv_w = np.asarray(params["logvar_w"], np.float32)
    hw = np.ascontiguousarray(np.concatenate([mu_w, lv_w], axis=0).T)   # (128, 32)
    hb = np.concatenate([np.asarray(params["mu_b"], np.float32),
                         np.asarray(params["logvar_b"], np.float32)])[None, :]
    uw = np.ascontiguousarray(np.asarray(params["up_w"], np.float32).T)  # (16, 128)
    ub = np.asarray(params["up_b"], np.float32)[None, :]

    d1w, d1b, Hd1, Wd1 = _conv_transpose2d_operator(
        params["dec1_w"], params["dec1_b"], H3, W3, 1, 1, 0)
    d2w, d2b, Hd2, Wd2 = _conv_transpose2d_operator(
        params["dec2_w"], params["dec2_b"], Hd1, Wd1, 2, 1, 1)
    d3w, d3b, Hd3, Wd3 = _conv_transpose2d_operator(
        params["dec3_w"], params["dec3_b"], Hd2, Wd2, 2, 1, 0)
    assert (int(params["dec3_w"].shape[1]), Hd3, Wd3) == (IMG_C, IMG_H, IMG_W)

    arrays = (e1w, e1b, e2w, e2b, e3w, e3b, hw, hb, uw, ub,
              d1w, d1b, d2w, d2b, d3w, d3b)
    # bf16 storage halves the HBM weight stream; matmuls still accumulate in f32.
    return tuple(jnp.asarray(a, dtype=jnp.bfloat16) for a in arrays)


# ----------------------------------------------------------------------------
# Parameter init (deterministic, synthetic) in PyTorch layouts
# ----------------------------------------------------------------------------
def init_params(key):
    ks = jax.random.split(key, 18)
    s = 0.05

    def w(k, shape):
        return s * jax.random.normal(k, shape, jnp.float32)

    return {
        # encoder Conv2d weights: (Cout, Cin, kh, kw)
        "enc1_w": w(ks[0], (8, 4, 3, 3)),   "enc1_b": w(ks[1], (8,)),
        "enc2_w": w(ks[2], (16, 8, 3, 3)),  "enc2_b": w(ks[3], (16,)),
        "enc3_w": w(ks[4], (8, 16, 3, 3)),  "enc3_b": w(ks[5], (8,)),
        # linears: PyTorch Linear weight is (out, in)
        "mu_w": w(ks[6], (LATENT_DIM, Z_FLAT)),      "mu_b": w(ks[7], (LATENT_DIM,)),
        "logvar_w": w(ks[8], (LATENT_DIM, Z_FLAT)),  "logvar_b": w(ks[9], (LATENT_DIM,)),
        "up_w": w(ks[10], (Z_FLAT, LATENT_DIM)),     "up_b": w(ks[11], (Z_FLAT,)),
        # decoder ConvTranspose2d weights: (Cin, Cout, kh, kw)
        "dec1_w": w(ks[12], (8, 16, 3, 3)),  "dec1_b": w(ks[13], (16,)),
        "dec2_w": w(ks[14], (16, 8, 3, 3)),  "dec2_b": w(ks[15], (8,)),
        "dec3_w": w(ks[16], (8, 4, 4, 4)),   "dec3_b": w(ks[17], (4,)),
    }


# ----------------------------------------------------------------------------
# Pure-JAX reference for the deterministic part (encoder + heads), f32
# ----------------------------------------------------------------------------
def reference_mu_logvar(params, x):
    dn = ("NCHW", "OIHW", "NCHW")
    hp = lax.Precision.HIGHEST
    h = lax.conv_general_dilated(x, params["enc1_w"], (2, 2), ((1, 1), (1, 1)),
                                 dimension_numbers=dn, precision=hp)
    h = jnp.maximum(h + params["enc1_b"][None, :, None, None], 0.0)
    h = lax.conv_general_dilated(h, params["enc2_w"], (2, 2), ((1, 1), (1, 1)),
                                 dimension_numbers=dn, precision=hp)
    h = jnp.maximum(h + params["enc2_b"][None, :, None, None], 0.0)
    h = lax.conv_general_dilated(h, params["enc3_w"], (1, 1), ((1, 1), (1, 1)),
                                 dimension_numbers=dn, precision=hp)
    h = h + params["enc3_b"][None, :, None, None]
    flat = h.reshape(x.shape[0], -1)
    mu = flat @ params["mu_w"].T + params["mu_b"]
    logvar = flat @ params["logvar_w"].T + params["logvar_b"]
    return mu, logvar


# ----------------------------------------------------------------------------
if __name__ == "__main__":
    key = jax.random.PRNGKey(0)
    k_param, k_x, k_eps = jax.random.split(key, 3)

    params = init_params(k_param)
    prep = prepare_params(params)             # one-time weight re-layout (bf16)

    B = 2
    x = jax.random.normal(k_x, (B, IMG_C, IMG_H, IMG_W), jnp.float32)   # NCHW
    eps = jax.random.normal(k_eps, (B, LATENT_DIM), jnp.float32)        # ~ randn_like

    fwd = jax.jit(vae_forward)
    recon, mu, logvar = fwd(prep, x, eps)
    jax.block_until_ready((recon, mu, logvar))

    # shape / range checks (module semantics)
    assert recon.shape == (B, IMG_C, IMG_H, IMG_W)
    assert mu.shape == (B, LATENT_DIM) and logvar.shape == (B, LATENT_DIM)
    assert bool(jnp.all(jnp.isfinite(recon)))
    assert bool(jnp.all((recon >= 0.0) & (recon <= 1.0)))    # sigmoid output

    # deterministic part (encoder + mu/logvar heads) vs. pure-JAX f32 reference.
    # Tolerances loosened relative to the f32 version because the kernel stores
    # weights in bf16 and issues bf16 MXU matmuls (f32 accumulation).
    mu_ref, logvar_ref = jax.jit(reference_mu_logvar)(params, x)
    assert bool(jnp.allclose(mu, mu_ref, atol=1e-2, rtol=5e-2))
    assert bool(jnp.allclose(logvar, logvar_ref, atol=1e-2, rtol=5e-2))

    print("KERNEL_OK")
</pallas_src>

<mosaic_0001>
module attributes {stable_mosaic.version = 11 : i64} {
  func.func @_vae_fused_kernel(%arg0: memref<2x1024xf32, #tpu.memory_space<vmem>>, %arg1: memref<2x16xf32, #tpu.memory_space<vmem>>, %arg2: memref<1024x512xbf16, #tpu.memory_space<vmem>>, %arg3: memref<1x512xbf16, #tpu.memory_space<vmem>>, %arg4: memref<512x256xbf16, #tpu.memory_space<vmem>>, %arg5: memref<1x256xbf16, #tpu.memory_space<vmem>>, %arg6: memref<256x128xbf16, #tpu.memory_space<vmem>>, %arg7: memref<1x128xbf16, #tpu.memory_space<vmem>>, %arg8: memref<128x32xbf16, #tpu.memory_space<vmem>>, %arg9: memref<1x32xbf16, #tpu.memory_space<vmem>>, %arg10: memref<16x128xbf16, #tpu.memory_space<vmem>>, %arg11: memref<1x128xbf16, #tpu.memory_space<vmem>>, %arg12: memref<128x256xbf16, #tpu.memory_space<vmem>>, %arg13: memref<1x256xbf16, #tpu.memory_space<vmem>>, %arg14: memref<256x512xbf16, #tpu.memory_space<vmem>>, %arg15: memref<1x512xbf16, #tpu.memory_space<vmem>>, %arg16: memref<512x1024xbf16, #tpu.memory_space<vmem>>, %arg17: memref<1x1024xbf16, #tpu.memory_space<vmem>>, %arg18: memref<2x1024xf32, #tpu.memory_space<vmem>>, %arg19: memref<2x32xf32, #tpu.memory_space<vmem>>) attributes {dimension_semantics = [], scalar_prefetch = 0 : i64, scratch_operands = 0 : i64, tpu.core_type = #tpu.core_type<tc>} {
    %c0 = arith.constant 0 : index
    %c0_0 = arith.constant 0 : index
    %0 = vector.load %arg0[%c0, %c0_0] : memref<2x1024xf32, #tpu.memory_space<vmem>>, vector<2x1024xf32>
    %1 = arith.truncf %0 : vector<2x1024xf32> to vector<2x1024xbf16>
    %c0_1 = arith.constant 0 : index
    %c0_2 = arith.constant 0 : index
    %2 = vector.load %arg2[%c0_1, %c0_2] : memref<1024x512xbf16, #tpu.memory_space<vmem>>, vector<1024x512xbf16>
    %cst = arith.constant dense<0.000000e+00> : vector<2x512xf32>
    %3 = tpu.matmul %1, %2, %cst {dimension_numbers = #tpu.dot_dimension_numbers<[1], [0], [0], [1], [0, 0, 1, 1], [], []>} : vector<2x1024xbf16>, vector<1024x512xbf16>, vector<2x512xf32> -> vector<2x512xf32>
    %c0_3 = arith.constant 0 : index
    %c0_4 = arith.constant 0 : index
    %4 = vector.load %arg3[%c0_3, %c0_4] : memref<1x512xbf16, #tpu.memory_space<vmem>>, vector<1x512xbf16>
    %5 = arith.extf %4 : vector<1x512xbf16> to vector<1x512xf32>
    %6 = vector.broadcast %5 : vector<1x512xf32> to vector<2x512xf32>
    %7 = arith.addf %3, %6 : vector<2x512xf32>
    %cst_5 = arith.constant 0.000000e+00 : f32
    %8 = vector.broadcast %cst_5 : f32 to vector<2x512xf32>
    %9 = arith.maximumf %7, %8 : vector<2x512xf32>
    %10 = arith.truncf %9 : vector<2x512xf32> to vector<2x512xbf16>
    %c0_6 = arith.constant 0 : index
    %c0_7 = arith.constant 0 : index
    %11 = vector.load %arg4[%c0_6, %c0_7] : memref<512x256xbf16, #tpu.memory_space<vmem>>, vector<512x256xbf16>
    %cst_8 = arith.constant dense<0.000000e+00> : vector<2x256xf32>
    %12 = tpu.matmul %10, %11, %cst_8 {dimension_numbers = #tpu.dot_dimension_numbers<[1], [0], [0], [1], [0, 0, 1, 1], [], []>} : vector<2x512xbf16>, vector<512x256xbf16>, vector<2x256xf32> -> vector<2x256xf32>
    %c0_9 = arith.constant 0 : index
    %c0_10 = arith.constant 0 : index
    %13 = vector.load %arg5[%c0_9, %c0_10] : memref<1x256xbf16, #tpu.memory_space<vmem>>, vector<1x256xbf16>
    %14 = arith.extf %13 : vector<1x256xbf16> to vector<1x256xf32>
    %15 = vector.broadcast %14 : vector<1x256xf32> to vector<2x256xf32>
    %16 = arith.addf %12, %15 : vector<2x256xf32>
    %cst_11 = arith.constant 0.000000e+00 : f32
    %17 = vector.broadcast %cst_11 : f32 to vector<2x256xf32>
    %18 = arith.maximumf %16, %17 : vector<2x256xf32>
    %19 = arith.truncf %18 : vector<2x256xf32> to vector<2x256xbf16>
    %c0_12 = arith.constant 0 : index
    %c0_13 = arith.constant 0 : index
    %20 = vector.load %arg6[%c0_12, %c0_13] : memref<256x128xbf16, #tpu.memory_space<vmem>>, vector<256x128xbf16>
    %cst_14 = arith.constant dense<0.000000e+00> : vector<2x128xf32>
    %21 = tpu.matmul %19, %20, %cst_14 {dimension_numbers = #tpu.dot_dimension_numbers<[1], [0], [0], [1], [0, 0, 1, 1], [], []>} : vector<2x256xbf16>, vector<256x128xbf16>, vector<2x128xf32> -> vector<2x128xf32>
    %c0_15 = arith.constant 0 : index
    %c0_16 = arith.constant 0 : index
    %22 = vector.load %arg7[%c0_15, %c0_16] : memref<1x128xbf16, #tpu.memory_space<vmem>>, vector<1x128xbf16>
    %23 = arith.extf %22 : vector<1x128xbf16> to vector<1x128xf32>
    %24 = vector.broadcast %23 : vector<1x128xf32> to vector<2x128xf32>
    %25 = arith.addf %21, %24 : vector<2x128xf32>
    %26 = arith.truncf %25 : vector<2x128xf32> to vector<2x128xbf16>
    %c0_17 = arith.constant 0 : index
    %c0_18 = arith.constant 0 : index
    %27 = vector.load %arg8[%c0_17, %c0_18] : memref<128x32xbf16, #tpu.memory_space<vmem>>, vector<128x32xbf16>
    %cst_19 = arith.constant dense<0.000000e+00> : vector<2x32xf32>
    %28 = tpu.matmul %26, %27, %cst_19 {dimension_numbers = #tpu.dot_dimension_numbers<[1], [0], [0], [1], [0, 0, 1, 1], [], []>} : vector<2x128xbf16>, vector<128x32xbf16>, vector<2x32xf32> -> vector<2x32xf32>
    %c0_20 = arith.constant 0 : index
    %c0_21 = arith.constant 0 : index
    %29 = vector.load %arg9[%c0_20, %c0_21] : memref<1x32xbf16, #tpu.memory_space<vmem>>, vector<1x32xbf16>
    %30 = arith.extf %29 : vector<1x32xbf16> to vector<1x32xf32>
    %31 = vector.broadcast %30 : vector<1x32xf32> to vector<2x32xf32>
    %32 = arith.addf %28, %31 : vector<2x32xf32>
    %33 = vector.extract_strided_slice %32 {offsets = [0, 0], sizes = [2, 16], strides = [1, 1]} : vector<2x32xf32> to vector<2x16xf32>
    %34 = vector.extract_strided_slice %32 {offsets = [0, 16], sizes = [2, 16], strides = [1, 1]} : vector<2x32xf32> to vector<2x16xf32>
    %c0_22 = arith.constant 0 : index
    %c0_23 = arith.constant 0 : index
    %35 = vector.load %arg1[%c0_22, %c0_23] : memref<2x16xf32, #tpu.memory_space<vmem>>, vector<2x16xf32>
    %cst_24 = arith.constant 5.000000e-01 : f32
    %36 = vector.broadcast %cst_24 : f32 to vector<2x16xf32>
    %37 = arith.mulf %36, %34 : vector<2x16xf32>
    %38 = math.exp %37 : vector<2x16xf32>
    %39 = arith.mulf %35, %38 : vector<2x16xf32>
    %40 = arith.addf %33, %39 : vector<2x16xf32>
    %41 = arith.truncf %40 : vector<2x16xf32> to vector<2x16xbf16>
    %c0_25 = arith.constant 0 : index
    %c0_26 = arith.constant 0 : index
    %42 = vector.load %arg10[%c0_25, %c0_26] : memref<16x128xbf16, #tpu.memory_space<vmem>>, vector<16x128xbf16>
    %cst_27 = arith.constant dense<0.000000e+00> : vector<2x128xf32>
    %43 = tpu.matmul %41, %42, %cst_27 {dimension_numbers = #tpu.dot_dimension_numbers<[1], [0], [0], [1], [0, 0, 1, 1], [], []>} : vector<2x16xbf16>, vector<16x128xbf16>, vector<2x128xf32> -> vector<2x128xf32>
    %c0_28 = arith.constant 0 : index
    %c0_29 = arith.constant 0 : index
    %44 = vector.load %arg11[%c0_28, %c0_29] : memref<1x128xbf16, #tpu.memory_space<vmem>>, vector<1x128xbf16>
    %45 = arith.extf %44 : vector<1x128xbf16> to vector<1x128xf32>
    %46 = vector.broadcast %45 : vector<1x128xf32> to vector<2x128xf32>
    %47 = arith.addf %43, %46 : vector<2x128xf32>
    %48 = arith.truncf %47 : vector<2x128xf32> to vector<2x128xbf16>
    %c0_30 = arith.constant 0 : index
    %c0_31 = arith.constant 0 : index
    %49 = vector.load %arg12[%c0_30, %c0_31] : memref<128x256xbf16, #tpu.memory_space<vmem>>, vector<128x256xbf16>
    %cst_32 = arith.constant dense<0.000000e+00> : vector<2x256xf32>
    %50 = tpu.matmul %48, %49, %cst_32 {dimension_numbers = #tpu.dot_dimension_numbers<[1], [0], [0], [1], [0, 0, 1, 1], [], []>} : vector<2x128xbf16>, vector<128x256xbf16>, vector<2x256xf32> -> vector<2x256xf32>
    %c0_33 = arith.constant 0 : index
    %c0_34 = arith.constant 0 : index
    %51 = vector.load %arg13[%c0_33, %c0_34] : memref<1x256xbf16, #tpu.memory_space<vmem>>, vector<1x256xbf16>
    %52 = arith.extf %51 : vector<1x256xbf16> to vector<1x256xf32>
    %53 = vector.broadcast %52 : vector<1x256xf32> to vector<2x256xf32>
    %54 = arith.addf %50, %53 : vector<2x256xf32>
    %cst_35 = arith.constant 0.000000e+00 : f32
    %55 = vector.broadcast %cst_35 : f32 to vector<2x256xf32>
    %56 = arith.maximumf %54, %55 : vector<2x256xf32>
    %57 = arith.truncf %56 : vector<2x256xf32> to vector<2x256xbf16>
    %c0_36 = arith.constant 0 : index
    %c0_37 = arith.constant 0 : index
    %58 = vector.load %arg14[%c0_36, %c0_37] : memref<256x512xbf16, #tpu.memory_space<vmem>>, vector<256x512xbf16>
    %cst_38 = arith.constant dense<0.000000e+00> : vector<2x512xf32>
    %59 = tpu.matmul %57, %58, %cst_38 {dimension_numbers = #tpu.dot_dimension_numbers<[1], [0], [0], [1], [0, 0, 1, 1], [], []>} : vector<2x256xbf16>, vector<256x512xbf16>, vector<2x512xf32> -> vector<2x512xf32>
    %c0_39 = arith.constant 0 : index
    %c0_40 = arith.constant 0 : index
    %60 = vector.load %arg15[%c0_39, %c0_40] : memref<1x512xbf16, #tpu.memory_space<vmem>>, vector<1x512xbf16>
    %61 = arith.extf %60 : vector<1x512xbf16> to vector<1x512xf32>
    %62 = vector.broadcast %61 : vector<1x512xf32> to vector<2x512xf32>
    %63 = arith.addf %59, %62 : vector<2x512xf32>
    %cst_41 = arith.constant 0.000000e+00 : f32
    %64 = vector.broadcast %cst_41 : f32 to vector<2x512xf32>
    %65 = arith.maximumf %63, %64 : vector<2x512xf32>
    %66 = arith.truncf %65 : vector<2x512xf32> to vector<2x512xbf16>
    %c0_42 = arith.constant 0 : index
    %c0_43 = arith.constant 0 : index
    %67 = vector.load %arg16[%c0_42, %c0_43] : memref<512x1024xbf16, #tpu.memory_space<vmem>>, vector<512x1024xbf16>
    %cst_44 = arith.constant dense<0.000000e+00> : vector<2x1024xf32>
    %68 = tpu.matmul %66, %67, %cst_44 {dimension_numbers = #tpu.dot_dimension_numbers<[1], [0], [0], [1], [0, 0, 1, 1], [], []>} : vector<2x512xbf16>, vector<512x1024xbf16>, vector<2x1024xf32> -> vector<2x1024xf32>
    %c0_45 = arith.constant 0 : index
    %c0_46 = arith.constant 0 : index
    %69 = vector.load %arg17[%c0_45, %c0_46] : memref<1x1024xbf16, #tpu.memory_space<vmem>>, vector<1x1024xbf16>
    %70 = arith.extf %69 : vector<1x1024xbf16> to vector<1x1024xf32>
    %71 = vector.broadcast %70 : vector<1x1024xf32> to vector<2x1024xf32>
    %72 = arith.addf %68, %71 : vector<2x1024xf32>
    %73 = arith.negf %72 : vector<2x1024xf32>
    %74 = math.exp %73 : vector<2x1024xf32>
    %cst_47 = arith.constant 1.000000e+00 : f32
    %75 = vector.broadcast %cst_47 : f32 to vector<2x1024xf32>
    %76 = arith.addf %75, %74 : vector<2x1024xf32>
    %77 = arith.divf %75, %76 : vector<2x1024xf32>
    %c0_48 = arith.constant 0 : index
    %c0_49 = arith.constant 0 : index
    %78 = vector.load %arg18[%c0_48, %c0_49] : memref<2x1024xf32, #tpu.memory_space<vmem>>, vector<2x1024xf32>
    tpu.vector_store %arg18[%c0_48, %c0_49], %77 {strides = array<i32>} : memref<2x1024xf32, #tpu.memory_space<vmem>>, vector<2x1024xf32>,
    %c0_50 = arith.constant 0 : index
    %c0_51 = arith.constant 0 : index
    %79 = vector.load %arg19[%c0_50, %c0_51] : memref<2x32xf32, #tpu.memory_space<vmem>>, vector<2x32xf32>
    tpu.vector_store %arg19[%c0_50, %c0_51], %32 {strides = array<i32>} : memref<2x32xf32, #tpu.memory_space<vmem>>, vector<2x32xf32>,
    return
  }
}

</mosaic_0001>

<llo_original>
// kernel: vae_forward.1
$region0: #{vae_forward.1}
  #allocation0 [shape = 'u32[]', space=smem, size = 0x4, offset = 0x4, fixed_abs, tag = 'smem constant byte address 0x4 - core index']
  #allocation1 [shape = 'u32[144,128]{1,0:T(1,128)}', space=vmem, size = 0x12000, scoped, tag = 'internal scratch']
  %s0 = inlined_call_operand.vmem [shape: f32[2,1024], index: 0, kind: input, shape index: {}]
  %s1 = inlined_call_operand.vmem [shape: f32[2,16], index: 1, kind: input, shape index: {}]
  %s2 = inlined_call_operand.hbm [shape: bf16[1024,512], index: 2, kind: input, shape index: {}]
  %s3 = inlined_call_operand.vmem [shape: bf16[1,512], index: 3, kind: input, shape index: {}]
  %s4 = inlined_call_operand.hbm [shape: bf16[512,256], index: 4, kind: input, shape index: {}]
  %s5 = inlined_call_operand.vmem [shape: bf16[1,256], index: 5, kind: input, shape index: {}]
  %s6 = inlined_call_operand.vmem [shape: bf16[256,128], index: 6, kind: input, shape index: {}]
  %s7 = inlined_call_operand.vmem [shape: bf16[1,128], index: 7, kind: input, shape index: {}]
  %s8 = inlined_call_operand.vmem [shape: bf16[128,32], index: 8, kind: input, shape index: {}]
  %s9 = inlined_call_operand.vmem [shape: bf16[1,32], index: 9, kind: input, shape index: {}]
  %s10 = inlined_call_operand.vmem [shape: bf16[16,128], index: 10, kind: input, shape index: {}]
  %s11 = inlined_call_operand.vmem [shape: bf16[1,128], index: 11, kind: input, shape index: {}]
  %s12 = inlined_call_operand.hbm [shape: bf16[128,256], index: 12, kind: input, shape index: {}]
  %s13 = inlined_call_operand.vmem [shape: bf16[1,256], index: 13, kind: input, shape index: {}]
  %s14 = inlined_call_operand.hbm [shape: bf16[256,512], index: 14, kind: input, shape index: {}]
  %s15 = inlined_call_operand.vmem [shape: bf16[1,512], index: 15, kind: input, shape index: {}]
  %s16 = inlined_call_operand.hbm [shape: bf16[512,1024], index: 16, kind: input, shape index: {}]
  %s17 = inlined_call_operand.vmem [shape: bf16[1,1024], index: 17, kind: input, shape index: {}]
  %s18 = inlined_call_operand.vmem [shape: f32[2,1024], index: 18, kind: output, shape index: {0}]
  %s19 = inlined_call_operand.vmem [shape: f32[2,32], index: 19, kind: output, shape index: {1}]
  %20 = xla_tuple %s18, %s19
  %s21 = sld [smem:[#allocation0]]
  $region110: #{vae_forward.1} parent=0
    _
  %s23 = ssub.s32 1, %s21
  %s24 = scalar_select 0, %s23, %s21
  $region1: #{vae_forward.1} parent=0
    #allocation2 [shape = 'u8[1048576]{0}', space=vmem, size = 0x100000, scoped, tag = 'input window, operand 2, single buffered']
    #allocation3 [shape = 's32[1]{0}', space=sflag, size = 0x4, scoped, tag = 'scoped memory for vae_forward.1']
    #allocation4 [shape = 'u8[262144]{0}', space=vmem, size = 0x40000, scoped, tag = 'input window, operand 4, single buffered']
    #allocation5 [shape = 's32[1]{0}', space=sflag, size = 0x4, scoped, tag = 'scoped memory for vae_forward.1']
    #allocation6 [shape = 'u8[65536]{0}', space=vmem, size = 0x10000, scoped, tag = 'input window, operand 12, single buffered']
    #allocation7 [shape = 'u8[262144]{0}', space=vmem, size = 0x40000, scoped, tag = 'input window, operand 14, single buffered']
    #allocation8 [shape = 's32[1]{0}', space=sflag, size = 0x4, scoped, tag = 'scoped memory for vae_forward.1']
    #allocation9 [shape = 'u8[1048576]{0}', space=vmem, size = 0x100000, scoped, tag = 'input window, operand 16, single buffered']
    %25 = vsyncpa [#allocation3], 0
    %26 = vsyncpa [#allocation5], 0
    %27 = vsyncpa [#allocation8], 0
    // Predicated region
    $region2: #{vae_forward.1} parent=1 // pred_check
      _
    $region3: #{vae_forward.1} parent=1 // pred_check_branch
      %29 = sbr.rel (0) target = $region5
    $region4: #{vae_forward.1} parent=1 // pred_region
      _
    $region5: #{vae_forward.1} parent=1 // pred_fallthru
      _
    // Predicated region
    $region6: #{vae_forward.1} parent=1 // pred_check
      _
    $region7: #{vae_forward.1} parent=1 // pred_check_branch
      %31 = sbr.rel (0) target = $region9
    $region8: #{vae_forward.1} parent=1 // pred_region
      _
    $region9: #{vae_forward.1} parent=1 // pred_fallthru
      _
    // Predicated region
    $region10: #{vae_forward.1} parent=1 // pred_check
      _
    $region11: #{vae_forward.1} parent=1 // pred_check_branch
      %33 = sbr.rel (0) target = $region13
    $region12: #{vae_forward.1} parent=1 // pred_region
      %s35 = ssub.s32 32768, 32768
      %36 = vsyncadd [#allocation3], %s35
      %s37 = sshll.u32 [#allocation2], 4
      %s38 = int_to_ptr.vmem [resolvable:$true] %s37
      %43 = dma.hbm_to_vmem [thread:$0]  %s2, 32768, %s38, [#allocation3], 256, 256, 16
    $region13: #{vae_forward.1} parent=1 // pred_fallthru
      _
    // Predicated region
    $region14: #{vae_forward.1} parent=1 // pred_check
      _
    $region15: #{vae_forward.1} parent=1 // pred_check_branch
      %45 = sbr.rel (0) target = $region17
    $region16: #{vae_forward.1} parent=1 // pred_region
      _
    $region17: #{vae_forward.1} parent=1 // pred_fallthru
      _
    // Predicated region
    $region18: #{vae_forward.1} parent=1 // pred_check
      _
    $region19: #{vae_forward.1} parent=1 // pred_check_branch
      %47 = sbr.rel (0) target = $region21
    $region20: #{vae_forward.1} parent=1 // pred_region
      %s49 = ssub.s32 8192, 8192
      %50 = vsyncadd [#allocation5], %s49
      %s51 = sshll.u32 [#allocation4], 4
      %s52 = int_to_ptr.vmem [resolvable:$true] %s51
      %57 = dma.hbm_to_vmem [thread:$0]  %s4, 8192, %s52, [#allocation5], 128, 128, 8
    $region21: #{vae_forward.1} parent=1 // pred_fallthru
      _
    // Predicated region
    $region22: #{vae_forward.1} parent=1 // pred_check
      _
    $region23: #{vae_forward.1} parent=1 // pred_check_branch
      %59 = sbr.rel (0) target = $region25
    $region24: #{vae_forward.1} parent=1 // pred_region
      _
    $region25: #{vae_forward.1} parent=1 // pred_fallthru
      _
    // Predicated region
    $region26: #{vae_forward.1} parent=1 // pred_check
      _
    $region27: #{vae_forward.1} parent=1 // pred_check_branch
      %61 = sbr.rel (0) target = $region29
    $region28: #{vae_forward.1} parent=1 // pred_region
      _
    $region29: #{vae_forward.1} parent=1 // pred_fallthru
      _
    // Predicated region
    $region30: #{vae_forward.1} parent=1 // pred_check
      _
    $region31: #{vae_forward.1} parent=1 // pred_check_branch
      %63 = sbr.rel (0) target = $region33
    $region32: #{vae_forward.1} parent=1 // pred_region
      _
    $region33: #{vae_forward.1} parent=1 // pred_fallthru
      _
    // Predicated region
    $region34: #{vae_forward.1} parent=1 // pred_check
      _
    $region35: #{vae_forward.1} parent=1 // pred_check_branch
      %65 = sbr.rel (0) target = $region37
    $region36: #{vae_forward.1} parent=1 // pred_region
      _
    $region37: #{vae_forward.1} parent=1 // pred_fallthru
      _
    // Predicated region
    $region38: #{vae_forward.1} parent=1 // pred_check
      _
    $region39: #{vae_forward.1} parent=1 // pred_check_branch
      %67 = sbr.rel (0) target = $region41
    $region40: #{vae_forward.1} parent=1 // pred_region
      _
    $region41: #{vae_forward.1} parent=1 // pred_fallthru
      _
    // Predicated region
    $region42: #{vae_forward.1} parent=1 // pred_check
      _
    $region43: #{vae_forward.1} parent=1 // pred_check_branch
      %69 = sbr.rel (0) target = $region45
    $region44: #{vae_forward.1} parent=1 // pred_region
      _
    $region45: #{vae_forward.1} parent=1 // pred_fallthru
      _
    // Predicated region
    $region46: #{vae_forward.1} parent=1 // pred_check
      _
    $region47: #{vae_forward.1} parent=1 // pred_check_branch
      %71 = sbr.rel (0) target = $region49
    $region48: #{vae_forward.1} parent=1 // pred_region
      _
    $region49: #{vae_forward.1} parent=1 // pred_fallthru
      _
    // Predicated region
    $region50: #{vae_forward.1} parent=1 // pred_check
      _
    $region51: #{vae_forward.1} parent=1 // pred_check_branch
      %73 = sbr.rel (0) target = $region53
    $region52: #{vae_forward.1} parent=1 // pred_region
      %s75 = ssub.s32 2048, 2048
      %76 = vsyncadd [#allocation5], %s75
      %s77 = sshll.u32 [#allocation6], 4
      %s78 = int_to_ptr.vmem [resolvable:$true] %s77
      %83 = dma.hbm_to_vmem [thread:$0]  %s12, 2048, %s78, [#allocation5], 128, 128, 8
    $region53: #{vae_forward.1} parent=1 // pred_fallthru
      _
    // Predicated region
    $region54: #{vae_forward.1} parent=1 // pred_check
      _
    $region55: #{vae_forward.1} parent=1 // pred_check_branch
      %85 = sbr.rel (0) target = $region57
    $region56: #{vae_forward.1} parent=1 // pred_region
      _
    $region57: #{vae_forward.1} parent=1 // pred_fallthru
      _
    // Predicated region
    $region58: #{vae_forward.1} parent=1 // pred_check
      _
    $region59: #{vae_forward.1} parent=1 // pred_check_branch
      %87 = sbr.rel (0) target = $region61
    $region60: #{vae_forward.1} parent=1 // pred_region
      %s89 = ssub.s32 8192, 8192
      %90 = vsyncadd [#allocation8], %s89
      %s91 = sshll.u32 [#allocation7], 4
      %s92 = int_to_ptr.vmem [resolvable:$true] %s91
      %97 = dma.hbm_to_vmem [thread:$0]  %s14, 8192, %s92, [#allocation8], 256, 256, 16
    $region61: #{vae_forward.1} parent=1 // pred_fallthru
      _
    // Predicated region
    $region62: #{vae_forward.1} parent=1 // pred_check
      _
    $region63: #{vae_forward.1} parent=1 // pred_check_branch
      %99 = sbr.rel (0) target = $region65
    $region64: #{vae_forward.1} parent=1 // pred_region
      _
    $region65: #{vae_forward.1} parent=1 // pred_fallthru
      _
    // Predicated region
    $region66: #{vae_forward.1} parent=1 // pred_check
      _
    $region67: #{vae_forward.1} parent=1 // pred_check_branch
      %101 = sbr.rel (0) target = $region69
    $region68: #{vae_forward.1} parent=1 // pred_region
      %s103 = ssub.s32 32768, 32768
      %104 = vsyncadd [#allocation8], %s103
      %s105 = sshll.u32 [#allocation9], 4
      %s106 = int_to_ptr.vmem [resolvable:$true] %s105
      %111 = dma.hbm_to_vmem [thread:$0]  %s16, 32768, %s106, [#allocation8], 512, 512, 32
    $region69: #{vae_forward.1} parent=1 // pred_fallthru
      _
    // Predicated region
    $region70: #{vae_forward.1} parent=1 // pred_check
      _
    $region71: #{vae_forward.1} parent=1 // pred_check_branch
      %113 = sbr.rel (0) target = $region73
    $region72: #{vae_forward.1} parent=1 // pred_region
      _
    $region73: #{vae_forward.1} parent=1 // pred_fallthru
      _
    // Predicated region
    $region74: #{vae_forward.1} parent=1 // pred_check
      _
    $region75: #{vae_forward.1} parent=1 // pred_check_branch
      %115 = sbr.rel (0) target = $region77
    $region76: #{vae_forward.1} parent=1 // pred_region
      %116 = dma.done [#allocation3], 32768
    $region77: #{vae_forward.1} parent=1 // pred_fallthru
      _
    // Predicated region
    $region78: #{vae_forward.1} parent=1 // pred_check
      _
    $region79: #{vae_forward.1} parent=1 // pred_check_branch
      %118 = sbr.rel (0) target = $region81
    $region80: #{vae_forward.1} parent=1 // pred_region
      %119 = dma.done [#allocation5], 8192
    $region81: #{vae_forward.1} parent=1 // pred_fallthru
      _
    // Predicated region
    $region82: #{vae_forward.1} parent=1 // pred_check
      _
    $region83: #{vae_forward.1} parent=1 // pred_check_branch
      %121 = sbr.rel (0) target = $region85
    $region84: #{vae_forward.1} parent=1 // pred_region
      %122 = dma.done [#allocation5], 2048
    $region85: #{vae_forward.1} parent=1 // pred_fallthru
      _
    // Predicated region
    $region86: #{vae_forward.1} parent=1 // pred_check
      _
    $region87: #{vae_forward.1} parent=1 // pred_check_branch
      %124 = sbr.rel (0) target = $region89
    $region88: #{vae_forward.1} parent=1 // pred_region
      %125 = dma.done [#allocation8], 8192
    $region89: #{vae_forward.1} parent=1 // pred_fallthru
      _
    // Predicated region
    $region90: #{vae_forward.1} parent=1 // pred_check
      _
    $region91: #{vae_forward.1} parent=1 // pred_check_branch
      %127 = sbr.rel (0) target = $region93
    $region92: #{vae_forward.1} parent=1 // pred_region
      %128 = dma.done [#allocation8], 32768
    $region93: #{vae_forward.1} parent=1 // pred_fallthru
      _
    %v130 = vld [vmem:[%s0] sm:$0xff]
    %v131 = vld [vmem:[%s0 + $0x8] sm:$0xff]
    %v134 = vcombine.high %v130, %v130
    %v136 = vunpack.c.l.s4 1983009808
    %v137 = vunpack.c.0.s8 %v136
    %v138 = vlaneseq
    %v139 = vshrl.u32 %v138, 7
    %v140 = vsub.s32 %v137, %v139
    %v141 = vrot.slane %v130, %v140
    %v143 = vunpack.c.l.s4 1983009808
    %v144 = vunpack.c.0.s8 %v143
    %v145 = vlaneseq
    %v146 = vshrl.u32 %v145, 7
    %v147 = vsub.s32 %v144, %v146
    %v148 = vrot.slane %v134, %v147
    %v149 = vcombine.high %v141, %v141
    %v150 = vcombine.high %v148, %v148
    %v151 = vcombine.high %v131, %v131
    %v153 = vunpack.c.l.s4 1983009808
    %v154 = vunpack.c.0.s8 %v153
    %v155 = vlaneseq
    %v156 = vshrl.u32 %v155, 7
    %v157 = vsub.s32 %v154, %v156
    %v158 = vrot.slane %v131, %v157
    %v160 = vunpack.c.l.s4 1983009808
    %v161 = vunpack.c.0.s8 %v160
    %v162 = vlaneseq
    %v163 = vshrl.u32 %v162, 7
    %v164 = vsub.s32 %v161, %v163
    %v165 = vrot.slane %v151, %v164
    %v166 = vcombine.high %v158, %v158
    %v167 = vcombine.high %v165, %v165
    %v176 = vpack.c.bf16 %v141, %v141
    %v177 = vpack.c.bf16 %v149, %v149
    %v178 = vpack.c.bf16 %v148, %v148
    %v179 = vpack.c.bf16 %v150, %v150
    %v180 = vpack.c.bf16 %v158, %v158
    %v181 = vpack.c.bf16 %v166, %v166
    %v182 = vpack.c.bf16 %v165, %v165
    %v183 = vpack.c.bf16 %v167, %v167
    %v184 = vld [vmem:[#allocation2] sm:$0xff]
    %v185 = vld [vmem:[#allocation2 + $0x8] sm:$0xff]
    %v186 = vld [vmem:[#allocation2 + $0x10] sm:$0xff]
    %v187 = vld [vmem:[#allocation2 + $0x18] sm:$0xff]
    %v188 = vld [vmem:[#allocation2 + $0x20] sm:$0xff]
    %v189 = vld [vmem:[#allocation2 + $0x28] sm:$0xff]
    %v190 = vld [vmem:[#allocation2 + $0x30] sm:$0xff]
    %v191 = vld [vmem:[#allocation2 + $0x38] sm:$0xff]
    %v192 = vld [vmem:[#allocation2 + $0x40] sm:$0xff]
    %v193 = vld [vmem:[#allocation2 + $0x48] sm:$0xff]
    %v194 = vld [vmem:[#allocation2 + $0x50] sm:$0xff]
    %v195 = vld [vmem:[#allocation2 + $0x58] sm:$0xff]
    %v196 = vld [vmem:[#allocation2 + $0x60] sm:$0xff]
    %v197 = vld [vmem:[#allocation2 + $0x68] sm:$0xff]
    %v198 = vld [vmem:[#allocation2 + $0x70] sm:$0xff]
    %v199 = vld [vmem:[#allocation2 + $0x78] sm:$0xff]
    %v200 = vld [vmem:[#allocation2 + $0x80] sm:$0xff]
    %v201 = vld [vmem:[#allocation2 + $0x88] sm:$0xff]
    %v202 = vld [vmem:[#allocation2 + $0x90] sm:$0xff]
    %v203 = vld [vmem:[#allocation2 + $0x98] sm:$0xff]
    %v204 = vld [vmem:[#allocation2 + $0xa0] sm:$0xff]
    %v205 = vld [vmem:[#allocation2 + $0xa8] sm:$0xff]
    %v206 = vld [vmem:[#allocation2 + $0xb0] sm:$0xff]
    %v207 = vld [vmem:[#allocation2 + $0xb8] sm:$0xff]
    %v208 = vld [vmem:[#allocation2 + $0xc0] sm:$0xff]
    %v209 = vld [vmem:[#allocation2 + $0xc8] sm:$0xff]
    %v210 = vld [vmem:[#allocation2 + $0xd0] sm:$0xff]
    %v211 = vld [vmem:[#allocation2 + $0xd8] sm:$0xff]
    %v212 = vld [vmem:[#allocation2 + $0xe0] sm:$0xff]
    %v213 = vld [vmem:[#allocation2 + $0xe8] sm:$0xff]
    %v214 = vld [vmem:[#allocation2 + $0xf0] sm:$0xff]
    %v215 = vld [vmem:[#allocation2 + $0xf8] sm:$0xff]
    %v216 = vld [vmem:[#allocation2 + $0x100] sm:$0xff]
    %v217 = vld [vmem:[#allocation2 + $0x108] sm:$0xff]
    %v218 = vld [vmem:[#allocation2 + $0x110] sm:$0xff]
    %v219 = vld [vmem:[#allocation2 + $0x118] sm:$0xff]
    %v220 = vld [vmem:[#allocation2 + $0x120] sm:$0xff]
    %v221 = vld [vmem:[#allocation2 + $0x128] sm:$0xff]
    %v222 = vld [vmem:[#allocation2 + $0x130] sm:$0xff]
    %v223 = vld [vmem:[#allocation2 + $0x138] sm:$0xff]
    %v224 = vld [vmem:[#allocation2 + $0x140] sm:$0xff]
    %v225 = vld [vmem:[#allocation2 + $0x148] sm:$0xff]
    %v226 = vld [vmem:[#allocation2 + $0x150] sm:$0xff]
    %v227 = vld [vmem:[#allocation2 + $0x158] sm:$0xff]
    %v228 = vld [vmem:[#allocation2 + $0x160] sm:$0xff]
    %v229 = vld [vmem:[#allocation2 + $0x168] sm:$0xff]
    %v230 = vld [vmem:[#allocation2 + $0x170] sm:$0xff]
    %v231 = vld [vmem:[#allocation2 + $0x178] sm:$0xff]
    %v232 = vld [vmem:[#allocation2 + $0x180] sm:$0xff]
    %v233 = vld [vmem:[#allocation2 + $0x188] sm:$0xff]
    %v234 = vld [vmem:[#allocation2 + $0x190] sm:$0xff]
    %v235 = vld [vmem:[#allocation2 + $0x198] sm:$0xff]
    %v236 = vld [vmem:[#allocation2 + $0x1a0] sm:$0xff]
    %v237 = vld [vmem:[#allocation2 + $0x1a8] sm:$0xff]
    %v238 = vld [vmem:[#allocation2 + $0x1b0] sm:$0xff]
    %v239 = vld [vmem:[#allocation2 + $0x1b8] sm:$0xff]
    %v240 = vld [vmem:[#allocation2 + $0x1c0] sm:$0xff]
    %v241 = vld [vmem:[#allocation2 + $0x1c8] sm:$0xff]
    %v242 = vld [vmem:[#allocation2 + $0x1d0] sm:$0xff]
    %v243 = vld [vmem:[#allocation2 + $0x1d8] sm:$0xff]
    %v244 = vld [vmem:[#allocation2 + $0x1e0] sm:$0xff]
    %v245 = vld [vmem:[#allocation2 + $0x1e8] sm:$0xff]
    %v246 = vld [vmem:[#allocation2 + $0x1f0] sm:$0xff]
    %v247 = vld [vmem:[#allocation2 + $0x1f8] sm:$0xff]
    %v248 = vld [vmem:[#allocation2 + $0x200] sm:$0xff]
    %v249 = vld [vmem:[#allocation2 + $0x208] sm:$0xff]
    %v250 = vld [vmem:[#allocation2 + $0x210] sm:$0xff]
    %v251 = vld [vmem:[#allocation2 + $0x218] sm:$0xff]
    %v252 = vld [vmem:[#allocation2 + $0x220] sm:$0xff]
    %v253 = vld [vmem:[#allocation2 + $0x228] sm:$0xff]
    %v254 = vld [vmem:[#allocation2 + $0x230] sm:$0xff]
    %v255 = vld [vmem:[#allocation2 + $0x238] sm:$0xff]
    %v256 = vld [vmem:[#allocation2 + $0x240] sm:$0xff]
    %v257 = vld [vmem:[#allocation2 + $0x248] sm:$0xff]
    %v258 = vld [vmem:[#allocation2 + $0x250] sm:$0xff]
    %v259 = vld [vmem:[#allocation2 + $0x258] sm:$0xff]
    %v260 = vld [vmem:[#allocation2 + $0x260] sm:$0xff]
    %v261 = vld [vmem:[#allocation2 + $0x268] sm:$0xff]
    %v262 = vld [vmem:[#allocation2 + $0x270] sm:$0xff]
    %v263 = vld [vmem:[#allocation2 + $0x278] sm:$0xff]
    %v264 = vld [vmem:[#allocation2 + $0x280] sm:$0xff]
    %v265 = vld [vmem:[#allocation2 + $0x288] sm:$0xff]
    %v266 = vld [vmem:[#allocation2 + $0x290] sm:$0xff]
    %v267 = vld [vmem:[#allocation2 + $0x298] sm:$0xff]
    %v268 = vld [vmem:[#allocation2 + $0x2a0] sm:$0xff]
    %v269 = vld [vmem:[#allocation2 + $0x2a8] sm:$0xff]
    %v270 = vld [vmem:[#allocation2 + $0x2b0] sm:$0xff]
    %v271 = vld [vmem:[#allocation2 + $0x2b8] sm:$0xff]
    %v272 = vld [vmem:[#allocation2 + $0x2c0] sm:$0xff]
    %v273 = vld [vmem:[#allocation2 + $0x2c8] sm:$0xff]
    %v274 = vld [vmem:[#allocation2 + $0x2d0] sm:$0xff]
    %v275 = vld [vmem:[#allocation2 + $0x2d8] sm:$0xff]
    %v276 = vld [vmem:[#allocation2 + $0x2e0] sm:$0xff]
    %v277 = vld [vmem:[#allocation2 + $0x2e8] sm:$0xff]
    %v278 = vld [vmem:[#allocation2 + $0x2f0] sm:$0xff]
    %v279 = vld [vmem:[#allocation2 + $0x2f8] sm:$0xff]
    %v280 = vld [vmem:[#allocation2 + $0x300] sm:$0xff]
    %v281 = vld [vmem:[#allocation2 + $0x308] sm:$0xff]
    %v282 = vld [vmem:[#allocation2 + $0x310] sm:$0xff]
    %v283 = vld [vmem:[#allocation2 + $0x318] sm:$0xff]
    %v284 = vld [vmem:[#allocation2 + $0x320] sm:$0xff]
    %v285 = vld [vmem:[#allocation2 + $0x328] sm:$0xff]
    %v286 = vld [vmem:[#allocation2 + $0x330] sm:$0xff]
    %v287 = vld [vmem:[#allocation2 + $0x338] sm:$0xff]
    %v288 = vld [vmem:[#allocation2 + $0x340] sm:$0xff]
    %v289 = vld [vmem:[#allocation2 + $0x348] sm:$0xff]
    %v290 = vld [vmem:[#allocation2 + $0x350] sm:$0xff]
    %v291 = vld [vmem:[#allocation2 + $0x358] sm:$0xff]
    %v292 = vld [vmem:[#allocation2 + $0x360] sm:$0xff]
    %v293 = vld [vmem:[#allocation2 + $0x368] sm:$0xff]
    %v294 = vld [vmem:[#allocation2 + $0x370] sm:$0xff]
    %v295 = vld [vmem:[#allocation2 + $0x378] sm:$0xff]
    %v296 = vld [vmem:[#allocation2 + $0x380] sm:$0xff]
    %v297 = vld [vmem:[#allocation2 + $0x388] sm:$0xff]
    %v298 = vld [vmem:[#allocation2 + $0x390] sm:$0xff]
    %v299 = vld [vmem:[#allocation2 + $0x398] sm:$0xff]
    %v300 = vld [vmem:[#allocation2 + $0x3a0] sm:$0xff]
    %v301 = vld [vmem:[#allocation2 + $0x3a8] sm:$0xff]
    %v302 = vld [vmem:[#allocation2 + $0x3b0] sm:$0xff]
    %v303 = vld [vmem:[#allocation2 + $0x3b8] sm:$0xff]
    %v304 = vld [vmem:[#allocation2 + $0x3c0] sm:$0xff]
    %v305 = vld [vmem:[#allocation2 + $0x3c8] sm:$0xff]
    %v306 = vld [vmem:[#allocation2 + $0x3d0] sm:$0xff]
    %v307 = vld [vmem:[#allocation2 + $0x3d8] sm:$0xff]
    %v308 = vld [vmem:[#allocation2 + $0x3e0] sm:$0xff]
    %v309 = vld [vmem:[#allocation2 + $0x3e8] sm:$0xff]
    %v310 = vld [vmem:[#allocation2 + $0x3f0] sm:$0xff]
    %v311 = vld [vmem:[#allocation2 + $0x3f8] sm:$0xff]
    %v312 = vld [vmem:[#allocation2 + $0x400] sm:$0xff]
    %v313 = vld [vmem:[#allocation2 + $0x408] sm:$0xff]
    %v314 = vld [vmem:[#allocation2 + $0x410] sm:$0xff]
    %v315 = vld [vmem:[#allocation2 + $0x418] sm:$0xff]
    %v316 = vld [vmem:[#allocation2 + $0x420] sm:$0xff]
    %v317 = vld [vmem:[#allocation2 + $0x428] sm:$0xff]
    %v318 = vld [vmem:[#allocation2 + $0x430] sm:$0xff]
    %v319 = vld [vmem:[#allocation2 + $0x438] sm:$0xff]
    %v320 = vld [vmem:[#allocation2 + $0x440] sm:$0xff]
    %v321 = vld [vmem:[#allocation2 + $0x448] sm:$0xff]
    %v322 = vld [vmem:[#allocation2 + $0x450] sm:$0xff]
    %v323 = vld [vmem:[#allocation2 + $0x458] sm:$0xff]
    %v324 = vld [vmem:[#allocation2 + $0x460] sm:$0xff]
    %v325 = vld [vmem:[#allocation2 + $0x468] sm:$0xff]
    %v326 = vld [vmem:[#allocation2 + $0x470] sm:$0xff]
    %v327 = vld [vmem:[#allocation2 + $0x478] sm:$0xff]
    %v328 = vld [vmem:[#allocation2 + $0x480] sm:$0xff]
    %v329 = vld [vmem:[#allocation2 + $0x488] sm:$0xff]
    %v330 = vld [vmem:[#allocation2 + $0x490] sm:$0xff]
    %v331 = vld [vmem:[#allocation2 + $0x498] sm:$0xff]
    %v332 = vld [vmem:[#allocation2 + $0x4a0] sm:$0xff]
    %v333 = vld [vmem:[#allocation2 + $0x4a8] sm:$0xff]
    %v334 = vld [vmem:[#allocation2 + $0x4b0] sm:$0xff]
    %v335 = vld [vmem:[#allocation2 + $0x4b8] sm:$0xff]
    %v336 = vld [vmem:[#allocation2 + $0x4c0] sm:$0xff]
    %v337 = vld [vmem:[#allocation2 + $0x4c8] sm:$0xff]
    %v338 = vld [vmem:[#allocation2 + $0x4d0] sm:$0xff]
    %v339 = vld [vmem:[#allocation2 + $0x4d8] sm:$0xff]
    %v340 = vld [vmem:[#allocation2 + $0x4e0] sm:$0xff]
    %v341 = vld [vmem:[#allocation2 + $0x4e8] sm:$0xff]
    %v342 = vld [vmem:[#allocation2 + $0x4f0] sm:$0xff]
    %v343 = vld [vmem:[#allocation2 + $0x4f8] sm:$0xff]
    %v344 = vld [vmem:[#allocation2 + $0x500] sm:$0xff]
    %v345 = vld [vmem:[#allocation2 + $0x508] sm:$0xff]
    %v346 = vld [vmem:[#allocation2 + $0x510] sm:$0xff]
    %v347 = vld [vmem:[#allocation2 + $0x518] sm:$0xff]
    %v348 = vld [vmem:[#allocation2 + $0x520] sm:$0xff]
    %v349 = vld [vmem:[#allocation2 + $0x528] sm:$0xff]
    %v350 = vld [vmem:[#allocation2 + $0x530] sm:$0xff]
    %v351 = vld [vmem:[#allocation2 + $0x538] sm:$0xff]
    %v352 = vld [vmem:[#allocation2 + $0x540] sm:$0xff]
    %v353 = vld [vmem:[#allocation2 + $0x548] sm:$0xff]
    %v354 = vld [vmem:[#allocation2 + $0x550] sm:$0xff]
    %v355 = vld [vmem:[#allocation2 + $0x558] sm:$0xff]
    %v356 = vld [vmem:[#allocation2 + $0x560] sm:$0xff]
    %v357 = vld [vmem:[#allocation2 + $0x568] sm:$0xff]
    %v358 = vld [vmem:[#allocation2 + $0x570] sm:$0xff]
    %v359 = vld [vmem:[#allocation2 + $0x578] sm:$0xff]
    %v360 = vld [vmem:[#allocation2 + $0x580] sm:$0xff]
    %v361 = vld [vmem:[#allocation2 + $0x588] sm:$0xff]
    %v362 = vld [vmem:[#allocation2 + $0x590] sm:$0xff]
    %v363 = vld [vmem:[#allocation2 + $0x598] sm:$0xff]
    %v364 = vld [vmem:[#allocation2 + $0x5a0] sm:$0xff]
    %v365 = vld [vmem:[#allocation2 + $0x5a8] sm:$0xff]
    %v366 = vld [vmem:[#allocation2 + $0x5b0] sm:$0xff]
    %v367 = vld [vmem:[#allocation2 + $0x5b8] sm:$0xff]
    %v368 = vld [vmem:[#allocation2 + $0x5c0] sm:$0xff]
    %v369 = vld [vmem:[#allocation2 + $0x5c8] sm:$0xff]
    %v370 = vld [vmem:[#allocation2 + $0x5d0] sm:$0xff]
    %v371 = vld [vmem:[#allocation2 + $0x5d8] sm:$0xff]
    %v372 = vld [vmem:[#allocation2 + $0x5e0] sm:$0xff]
    %v373 = vld [vmem:[#allocation2 + $0x5e8] sm:$0xff]
    %v374 = vld [vmem:[#allocation2 + $0x5f0] sm:$0xff]
    %v375 = vld [vmem:[#allocation2 + $0x5f8] sm:$0xff]
    %v376 = vld [vmem:[#allocation2 + $0x600] sm:$0xff]
    %v377 = vld [vmem:[#allocation2 + $0x608] sm:$0xff]
    %v378 = vld [vmem:[#allocation2 + $0x610] sm:$0xff]
    %v379 = vld [vmem:[#allocation2 + $0x618] sm:$0xff]
    %v380 = vld [vmem:[#allocation2 + $0x620] sm:$0xff]
    %v381 = vld [vmem:[#allocation2 + $0x628] sm:$0xff]
    %v382 = vld [vmem:[#allocation2 + $0x630] sm:$0xff]
    %v383 = vld [vmem:[#allocation2 + $0x638] sm:$0xff]
    %v384 = vld [vmem:[#allocation2 + $0x640] sm:$0xff]
    %v385 = vld [vmem:[#allocation2 + $0x648] sm:$0xff]
    %v386 = vld [vmem:[#allocation2 + $0x650] sm:$0xff]
    %v387 = vld [vmem:[#allocation2 + $0x658] sm:$0xff]
    %v388 = vld [vmem:[#allocation2 + $0x660] sm:$0xff]
    %v389 = vld [vmem:[#allocation2 + $0x668] sm:$0xff]
    %v390 = vld [vmem:[#allocation2 + $0x670] sm:$0xff]
    %v391 = vld [vmem:[#allocation2 + $0x678] sm:$0xff]
    %v392 = vld [vmem:[#allocation2 + $0x680] sm:$0xff]
    %v393 = vld [vmem:[#allocation2 + $0x688] sm:$0xff]
    %v394 = vld [vmem:[#allocation2 + $0x690] sm:$0xff]
    %v395 = vld [vmem:[#allocation2 + $0x698] sm:$0xff]
    %v396 = vld [vmem:[#allocation2 + $0x6a0] sm:$0xff]
    %v397 = vld [vmem:[#allocation2 + $0x6a8] sm:$0xff]
    %v398 = vld [vmem:[#allocation2 + $0x6b0] sm:$0xff]
    %v399 = vld [vmem:[#allocation2 + $0x6b8] sm:$0xff]
    %v400 = vld [vmem:[#allocation2 + $0x6c0] sm:$0xff]
    %v401 = vld [vmem:[#allocation2 + $0x6c8] sm:$0xff]
    %v402 = vld [vmem:[#allocation2 + $0x6d0] sm:$0xff]
    %v403 = vld [vmem:[#allocation2 + $0x6d8] sm:$0xff]
    %v404 = vld [vmem:[#allocation2 + $0x6e0] sm:$0xff]
    %v405 = vld [vmem:[#allocation2 + $0x6e8] sm:$0xff]
    %v406 = vld [vmem:[#allocation2 + $0x6f0] sm:$0xff]
    %v407 = vld [vmem:[#allocation2 + $0x6f8] sm:$0xff]
    %v408 = vld [vmem:[#allocation2 + $0x700] sm:$0xff]
    %v409 = vld [vmem:[#allocation2 + $0x708] sm:$0xff]
    %v410 = vld [vmem:[#allocation2 + $0x710] sm:$0xff]
    %v411 = vld [vmem:[#allocation2 + $0x718] sm:$0xff]
    %v412 = vld [vmem:[#allocation2 + $0x720] sm:$0xff]
    %v413 = vld [vmem:[#allocation2 + $0x728] sm:$0xff]
    %v414 = vld [vmem:[#allocation2 + $0x730] sm:$0xff]
    %v415 = vld [vmem:[#allocation2 + $0x738] sm:$0xff]
    %v416 = vld [vmem:[#allocation2 + $0x740] sm:$0xff]
    %v417 = vld [vmem:[#allocation2 + $0x748] sm:$0xff]
    %v418 = vld [vmem:[#allocation2 + $0x750] sm:$0xff]
    %v419 = vld [vmem:[#allocation2 + $0x758] sm:$0xff]
    %v420 = vld [vmem:[#allocation2 + $0x760] sm:$0xff]
    %v421 = vld [vmem:[#allocation2 + $0x768] sm:$0xff]
    %v422 = vld [vmem:[#allocation2 + $0x770] sm:$0xff]
    %v423 = vld [vmem:[#allocation2 + $0x778] sm:$0xff]
    %v424 = vld [vmem:[#allocation2 + $0x780] sm:$0xff]
    %v425 = vld [vmem:[#allocation2 + $0x788] sm:$0xff]
    %v426 = vld [vmem:[#allocation2 + $0x790] sm:$0xff]
    %v427 = vld [vmem:[#allocation2 + $0x798] sm:$0xff]
    %v428 = vld [vmem:[#allocation2 + $0x7a0] sm:$0xff]
    %v429 = vld [vmem:[#allocation2 + $0x7a8] sm:$0xff]
    %v430 = vld [vmem:[#allocation2 + $0x7b0] sm:$0xff]
    %v431 = vld [vmem:[#allocation2 + $0x7b8] sm:$0xff]
    %v432 = vld [vmem:[#allocation2 + $0x7c0] sm:$0xff]
    %v433 = vld [vmem:[#allocation2 + $0x7c8] sm:$0xff]
    %v434 = vld [vmem:[#allocation2 + $0x7d0] sm:$0xff]
    %v435 = vld [vmem:[#allocation2 + $0x7d8] sm:$0xff]
    %v436 = vld [vmem:[#allocation2 + $0x7e0] sm:$0xff]
    %v437 = vld [vmem:[#allocation2 + $0x7e8] sm:$0xff]
    %v438 = vld [vmem:[#allocation2 + $0x7f0] sm:$0xff]
    %v439 = vld [vmem:[#allocation2 + $0x7f8] sm:$0xff]
    %v440 = vld [vmem:[%s3] sm:$0xf]
    %v441 = vunpack.c.l.bf16 %v440
    %v443 = vlaneseq
    %v444 = vshrl.u32 %v443, 7
    %v445 = vsub.s32 0, %v444
    %v446 = vrot.slane %v441, %v445
    %v447 = vlaneseq
    %v448 = vshrl.u32 %v447, 7
    %v449 = vsub.s32 2, %v448
    %v450 = vrot.slane %v441, %v449
    %v451 = vlaneseq
    %v452 = vshrl.u32 %v451, 7
    %v453 = vsub.s32 4, %v452
    %v454 = vrot.slane %v441, %v453
    %v455 = vlaneseq
    %v456 = vshrl.u32 %v455, 7
    %v457 = vsub.s32 6, %v456
    %v458 = vrot.slane %v441, %v457
    %v463 = vlaneseq
    %v464 = vshrl.u32 %v463, 7
    %v465 = vsub.s32 0, %v464
    %v466 = vrot.slane %v446, %v465
    %v467 = vlaneseq
    %v468 = vshrl.u32 %v467, 7
    %v469 = vsub.s32 0, %v468
    %v470 = vrot.slane %v450, %v469
    %v471 = vlaneseq
    %v472 = vshrl.u32 %v471, 7
    %v473 = vsub.s32 0, %v472
    %v474 = vrot.slane %v454, %v473
    %v475 = vlaneseq
    %v476 = vshrl.u32 %v475, 7
    %v477 = vsub.s32 0, %v476
    %v478 = vrot.slane %v458, %v477
    %v735 = vunpack.c.l.b16 %v184
    %v736 = vunpack.c.h.b16 %v184
    %v737 = vunpack.c.l.b16 %v185
    %v738 = vunpack.c.h.b16 %v185
    %v739 = vunpack.c.l.b16 %v186
    %v740 = vunpack.c.h.b16 %v186
    %v741 = vunpack.c.l.b16 %v187
    %v742 = vunpack.c.h.b16 %v187
    %v743 = vunpack.c.l.b16 %v188
    %v744 = vunpack.c.h.b16 %v188
    %v745 = vunpack.c.l.b16 %v189
    %v746 = vunpack.c.h.b16 %v189
    %v747 = vunpack.c.l.b16 %v190
    %v748 = vunpack.c.h.b16 %v190
    %v749 = vunpack.c.l.b16 %v191
    %v750 = vunpack.c.h.b16 %v191
    %v751 = vunpack.c.l.b16 %v192
    %v752 = vunpack.c.h.b16 %v192
    %v753 = vunpack.c.l.b16 %v193
    %v754 = vunpack.c.h.b16 %v193
    %v755 = vunpack.c.l.b16 %v194
    %v756 = vunpack.c.h.b16 %v194
    %v757 = vunpack.c.l.b16 %v195
    %v758 = vunpack.c.h.b16 %v195
    %v759 = vunpack.c.l.b16 %v196
    %v760 = vunpack.c.h.b16 %v196
    %v761 = vunpack.c.l.b16 %v197
    %v762 = vunpack.c.h.b16 %v197
    %v763 = vunpack.c.l.b16 %v198
    %v764 = vunpack.c.h.b16 %v198
    %v765 = vunpack.c.l.b16 %v199
    %v766 = vunpack.c.h.b16 %v199
    %v767 = vunpack.c.l.b16 %v200
    %v768 = vunpack.c.h.b16 %v200
    %v769 = vunpack.c.l.b16 %v201
    %v770 = vunpack.c.h.b16 %v201
    %v771 = vunpack.c.l.b16 %v202
    %v772 = vunpack.c.h.b16 %v202
    %v773 = vunpack.c.l.b16 %v203
    %v774 = vunpack.c.h.b16 %v203
    %v775 = vunpack.c.l.b16 %v204
    %v776 = vunpack.c.h.b16 %v204
    %v777 = vunpack.c.l.b16 %v205
    %v778 = vunpack.c.h.b16 %v205
    %v779 = vunpack.c.l.b16 %v206
    %v780 = vunpack.c.h.b16 %v206
    %v781 = vunpack.c.l.b16 %v207
    %v782 = vunpack.c.h.b16 %v207
    %v783 = vunpack.c.l.b16 %v208
    %v784 = vunpack.c.h.b16 %v208
    %v785 = vunpack.c.l.b16 %v209
    %v786 = vunpack.c.h.b16 %v209
    %v787 = vunpack.c.l.b16 %v210
    %v788 = vunpack.c.h.b16 %v210
    %v789 = vunpack.c.l.b16 %v211
    %v790 = vunpack.c.h.b16 %v211
    %v791 = vunpack.c.l.b16 %v212
    %v792 = vunpack.c.h.b16 %v212
    %v793 = vunpack.c.l.b16 %v213
    %v794 = vunpack.c.h.b16 %v213
    %v795 = vunpack.c.l.b16 %v214
    %v796 = vunpack.c.h.b16 %v214
    %v797 = vunpack.c.l.b16 %v215
    %v798 = vunpack.c.h.b16 %v215
    %v799 = vunpack.c.l.b16 %v216
    %v800 = vunpack.c.h.b16 %v216
    %v801 = vunpack.c.l.b16 %v217
    %v802 = vunpack.c.h.b16 %v217
    %v803 = vunpack.c.l.b16 %v218
    %v804 = vunpack.c.h.b16 %v218
    %v805 = vunpack.c.l.b16 %v219
    %v806 = vunpack.c.h.b16 %v219
    %v807 = vunpack.c.l.b16 %v220
    %v808 = vunpack.c.h.b16 %v220
    %v809 = vunpack.c.l.b16 %v221
    %v810 = vunpack.c.h.b16 %v221
    %v811 = vunpack.c.l.b16 %v222
    %v812 = vunpack.c.h.b16 %v222
    %v813 = vunpack.c.l.b16 %v223
    %v814 = vunpack.c.h.b16 %v223
    %v815 = vunpack.c.l.b16 %v224
    %v816 = vunpack.c.h.b16 %v224
    %v817 = vunpack.c.l.b16 %v225
    %v818 = vunpack.c.h.b16 %v225
    %v819 = vunpack.c.l.b16 %v226
    %v820 = vunpack.c.h.b16 %v226
    %v821 = vunpack.c.l.b16 %v227
    %v822 = vunpack.c.h.b16 %v227
    %v823 = vunpack.c.l.b16 %v228
    %v824 = vunpack.c.h.b16 %v228
    %v825 = vunpack.c.l.b16 %v229
    %v826 = vunpack.c.h.b16 %v229
    %v827 = vunpack.c.l.b16 %v230
    %v828 = vunpack.c.h.b16 %v230
    %v829 = vunpack.c.l.b16 %v231
    %v830 = vunpack.c.h.b16 %v231
    %v831 = vunpack.c.l.b16 %v232
    %v832 = vunpack.c.h.b16 %v232
    %v833 = vunpack.c.l.b16 %v233
    %v834 = vunpack.c.h.b16 %v233
    %v835 = vunpack.c.l.b16 %v234
    %v836 = vunpack.c.h.b16 %v234
    %v837 = vunpack.c.l.b16 %v235
    %v838 = vunpack.c.h.b16 %v235
    %v839 = vunpack.c.l.b16 %v236
    %v840 = vunpack.c.h.b16 %v236
    %v841 = vunpack.c.l.b16 %v237
    %v842 = vunpack.c.h.b16 %v237
    %v843 = vunpack.c.l.b16 %v238
    %v844 = vunpack.c.h.b16 %v238
    %v845 = vunpack.c.l.b16 %v239
    %v846 = vunpack.c.h.b16 %v239
    %v847 = vunpack.c.l.b16 %v240
    %v848 = vunpack.c.h.b16 %v240
    %v849 = vunpack.c.l.b16 %v241
    %v850 = vunpack.c.h.b16 %v241
    %v851 = vunpack.c.l.b16 %v242
    %v852 = vunpack.c.h.b16 %v242
    %v853 = vunpack.c.l.b16 %v243
    %v854 = vunpack.c.h.b16 %v243
    %v855 = vunpack.c.l.b16 %v244
    %v856 = vunpack.c.h.b16 %v244
    %v857 = vunpack.c.l.b16 %v245
    %v858 = vunpack.c.h.b16 %v245
    %v859 = vunpack.c.l.b16 %v246
    %v860 = vunpack.c.h.b16 %v246
    %v861 = vunpack.c.l.b16 %v247
    %v862 = vunpack.c.h.b16 %v247
    %v863 = vunpack.c.l.b16 %v248
    %v864 = vunpack.c.h.b16 %v248
    %v865 = vunpack.c.l.b16 %v249
    %v866 = vunpack.c.h.b16 %v249
    %v867 = vunpack.c.l.b16 %v250
    %v868 = vunpack.c.h.b16 %v250
    %v869 = vunpack.c.l.b16 %v251
    %v870 = vunpack.c.h.b16 %v251
    %v871 = vunpack.c.l.b16 %v252
    %v872 = vunpack.c.h.b16 %v252
    %v873 = vunpack.c.l.b16 %v253
    %v874 = vunpack.c.h.b16 %v253
    %v875 = vunpack.c.l.b16 %v254
    %v876 = vunpack.c.h.b16 %v254
    %v877 = vunpack.c.l.b16 %v255
    %v878 = vunpack.c.h.b16 %v255
    %v879 = vunpack.c.l.b16 %v256
    %v880 = vunpack.c.h.b16 %v256
    %v881 = vunpack.c.l.b16 %v257
    %v882 = vunpack.c.h.b16 %v257
    %v883 = vunpack.c.l.b16 %v258
    %v884 = vunpack.c.h.b16 %v258
    %v885 = vunpack.c.l.b16 %v259
    %v886 = vunpack.c.h.b16 %v259
    %v887 = vunpack.c.l.b16 %v260
    %v888 = vunpack.c.h.b16 %v260
    %v889 = vunpack.c.l.b16 %v261
    %v890 = vunpack.c.h.b16 %v261
    %v891 = vunpack.c.l.b16 %v262
    %v892 = vunpack.c.h.b16 %v262
    %v893 = vunpack.c.l.b16 %v263
    %v894 = vunpack.c.h.b16 %v263
    %v895 = vunpack.c.l.b16 %v264
    %v896 = vunpack.c.h.b16 %v264
    %v897 = vunpack.c.l.b16 %v265
    %v898 = vunpack.c.h.b16 %v265
    %v899 = vunpack.c.l.b16 %v266
    %v900 = vunpack.c.h.b16 %v266
    %v901 = vunpack.c.l.b16 %v267
    %v902 = vunpack.c.h.b16 %v267
    %v903 = vunpack.c.l.b16 %v268
    %v904 = vunpack.c.h.b16 %v268
    %v905 = vunpack.c.l.b16 %v269
    %v906 = vunpack.c.h.b16 %v269
    %v907 = vunpack.c.l.b16 %v270
    %v908 = vunpack.c.h.b16 %v270
    %v909 = vunpack.c.l.b16 %v271
    %v910 = vunpack.c.h.b16 %v271
    %v911 = vunpack.c.l.b16 %v272
    %v912 = vunpack.c.h.b16 %v272
    %v913 = vunpack.c.l.b16 %v273
    %v914 = vunpack.c.h.b16 %v273
    %v915 = vunpack.c.l.b16 %v274
    %v916 = vunpack.c.h.b16 %v274
    %v917 = vunpack.c.l.b16 %v275
    %v918 = vunpack.c.h.b16 %v275
    %v919 = vunpack.c.l.b16 %v276
    %v920 = vunpack.c.h.b16 %v276
    %v921 = vunpack.c.l.b16 %v277
    %v922 = vunpack.c.h.b16 %v277
    %v923 = vunpack.c.l.b16 %v278
    %v924 = vunpack.c.h.b16 %v278
    %v925 = vunpack.c.l.b16 %v279
    %v926 = vunpack.c.h.b16 %v279
    %v927 = vunpack.c.l.b16 %v280
    %v928 = vunpack.c.h.b16 %v280
    %v929 = vunpack.c.l.b16 %v281
    %v930 = vunpack.c.h.b16 %v281
    %v931 = vunpack.c.l.b16 %v282
    %v932 = vunpack.c.h.b16 %v282
    %v933 = vunpack.c.l.b16 %v283
    %v934 = vunpack.c.h.b16 %v283
    %v935 = vunpack.c.l.b16 %v284
    %v936 = vunpack.c.h.b16 %v284
    %v937 = vunpack.c.l.b16 %v285
    %v938 = vunpack.c.h.b16 %v285
    %v939 = vunpack.c.l.b16 %v286
    %v940 = vunpack.c.h.b16 %v286
    %v941 = vunpack.c.l.b16 %v287
    %v942 = vunpack.c.h.b16 %v287
    %v943 = vunpack.c.l.b16 %v288
    %v944 = vunpack.c.h.b16 %v288
    %v945 = vunpack.c.l.b16 %v289
    %v946 = vunpack.c.h.b16 %v289
    %v947 = vunpack.c.l.b16 %v290
    %v948 = vunpack.c.h.b16 %v290
    %v949 = vunpack.c.l.b16 %v291
    %v950 = vunpack.c.h.b16 %v291
    %v951 = vunpack.c.l.b16 %v292
    %v952 = vunpack.c.h.b16 %v292
    %v953 = vunpack.c.l.b16 %v293
    %v954 = vunpack.c.h.b16 %v293
    %v955 = vunpack.c.l.b16 %v294
    %v956 = vunpack.c.h.b16 %v294
    %v957 = vunpack.c.l.b16 %v295
    %v958 = vunpack.c.h.b16 %v295
    %v959 = vunpack.c.l.b16 %v296
    %v960 = vunpack.c.h.b16 %v296
    %v961 = vunpack.c.l.b16 %v297
    %v962 = vunpack.c.h.b16 %v297
    %v963 = vunpack.c.l.b16 %v298
    %v964 = vunpack.c.h.b16 %v298
    %v965 = vunpack.c.l.b16 %v299
    %v966 = vunpack.c.h.b16 %v299
    %v967 = vunpack.c.l.b16 %v300
    %v968 = vunpack.c.h.b16 %v300
    %v969 = vunpack.c.l.b16 %v301
    %v970 = vunpack.c.h.b16 %v301
    %v971 = vunpack.c.l.b16 %v302
    %v972 = vunpack.c.h.b16 %v302
    %v973 = vunpack.c.l.b16 %v303
    %v974 = vunpack.c.h.b16 %v303
    %v975 = vunpack.c.l.b16 %v304
    %v976 = vunpack.c.h.b16 %v304
    %v977 = vunpack.c.l.b16 %v305
    %v978 = vunpack.c.h.b16 %v305
    %v979 = vunpack.c.l.b16 %v306
    %v980 = vunpack.c.h.b16 %v306
    %v981 = vunpack.c.l.b16 %v307
    %v982 = vunpack.c.h.b16 %v307
    %v983 = vunpack.c.l.b16 %v308
    %v984 = vunpack.c.h.b16 %v308
    %v985 = vunpack.c.l.b16 %v309
    %v986 = vunpack.c.h.b16 %v309
    %v987 = vunpack.c.l.b16 %v310
    %v988 = vunpack.c.h.b16 %v310
    %v989 = vunpack.c.l.b16 %v311
    %v990 = vunpack.c.h.b16 %v311
    %v991 = vunpack.c.l.b16 %v312
    %v992 = vunpack.c.h.b16 %v312
    %v993 = vunpack.c.l.b16 %v313
    %v994 = vunpack.c.h.b16 %v313
    %v995 = vunpack.c.l.b16 %v314
    %v996 = vunpack.c.h.b16 %v314
    %v997 = vunpack.c.l.b16 %v315
    %v998 = vunpack.c.h.b16 %v315
    %v999 = vunpack.c.l.b16 %v316
    %v1000 = vunpack.c.h.b16 %v316
    %v1001 = vunpack.c.l.b16 %v317
    %v1002 = vunpack.c.h.b16 %v317
    %v1003 = vunpack.c.l.b16 %v318
    %v1004 = vunpack.c.h.b16 %v318
    %v1005 = vunpack.c.l.b16 %v319
    %v1006 = vunpack.c.h.b16 %v319
    %v1007 = vunpack.c.l.b16 %v320
    %v1008 = vunpack.c.h.b16 %v320
    %v1009 = vunpack.c.l.b16 %v321
    %v1010 = vunpack.c.h.b16 %v321
    %v1011 = vunpack.c.l.b16 %v322
    %v1012 = vunpack.c.h.b16 %v322
    %v1013 = vunpack.c.l.b16 %v323
    %v1014 = vunpack.c.h.b16 %v323
    %v1015 = vunpack.c.l.b16 %v324
    %v1016 = vunpack.c.h.b16 %v324
    %v1017 = vunpack.c.l.b16 %v325
    %v1018 = vunpack.c.h.b16 %v325
    %v1019 = vunpack.c.l.b16 %v326
    %v1020 = vunpack.c.h.b16 %v326
    %v1021 = vunpack.c.l.b16 %v327
    %v1022 = vunpack.c.h.b16 %v327
    %v1023 = vunpack.c.l.b16 %v328
    %v1024 = vunpack.c.h.b16 %v328
    %v1025 = vunpack.c.l.b16 %v329
    %v1026 = vunpack.c.h.b16 %v329
    %v1027 = vunpack.c.l.b16 %v330
    %v1028 = vunpack.c.h.b16 %v330
    %v1029 = vunpack.c.l.b16 %v331
    %v1030 = vunpack.c.h.b16 %v331
    %v1031 = vunpack.c.l.b16 %v332
    %v1032 = vunpack.c.h.b16 %v332
    %v1033 = vunpack.c.l.b16 %v333
    %v1034 = vunpack.c.h.b16 %v333
    %v1035 = vunpack.c.l.b16 %v334
    %v1036 = vunpack.c.h.b16 %v334
    %v1037 = vunpack.c.l.b16 %v335
    %v1038 = vunpack.c.h.b16 %v335
    %v1039 = vunpack.c.l.b16 %v336
    %v1040 = vunpack.c.h.b16 %v336
    %v1041 = vunpack.c.l.b16 %v337
    %v1042 = vunpack.c.h.b16 %v337
    %v1043 = vunpack.c.l.b16 %v338
    %v1044 = vunpack.c.h.b16 %v338
    %v1045 = vunpack.c.l.b16 %v339
    %v1046 = vunpack.c.h.b16 %v339
    %v1047 = vunpack.c.l.b16 %v340
    %v1048 = vunpack.c.h.b16 %v340
    %v1049 = vunpack.c.l.b16 %v341
    %v1050 = vunpack.c.h.b16 %v341
    %v1051 = vunpack.c.l.b16 %v342
    %v1052 = vunpack.c.h.b16 %v342
    %v1053 = vunpack.c.l.b16 %v343
    %v1054 = vunpack.c.h.b16 %v343
    %v1055 = vunpack.c.l.b16 %v344
    %v1056 = vunpack.c.h.b16 %v344
    %v1057 = vunpack.c.l.b16 %v345
    %v1058 = vunpack.c.h.b16 %v345
    %v1059 = vunpack.c.l.b16 %v346
    %v1060 = vunpack.c.h.b16 %v346
    %v1061 = vunpack.c.l.b16 %v347
    %v1062 = vunpack.c.h.b16 %v347
    %v1063 = vunpack.c.l.b16 %v348
    %v1064 = vunpack.c.h.b16 %v348
    %v1065 = vunpack.c.l.b16 %v349
    %v1066 = vunpack.c.h.b16 %v349
    %v1067 = vunpack.c.l.b16 %v350
    %v1068 = vunpack.c.h.b16 %v350
    %v1069 = vunpack.c.l.b16 %v351
    %v1070 = vunpack.c.h.b16 %v351
    %v1071 = vunpack.c.l.b16 %v352
    %v1072 = vunpack.c.h.b16 %v352
    %v1073 = vunpack.c.l.b16 %v353
    %v1074 = vunpack.c.h.b16 %v353
    %v1075 = vunpack.c.l.b16 %v354
    %v1076 = vunpack.c.h.b16 %v354
    %v1077 = vunpack.c.l.b16 %v355
    %v1078 = vunpack.c.h.b16 %v355
    %v1079 = vunpack.c.l.b16 %v356
    %v1080 = vunpack.c.h.b16 %v356
    %v1081 = vunpack.c.l.b16 %v357
    %v1082 = vunpack.c.h.b16 %v357
    %v1083 = vunpack.c.l.b16 %v358
    %v1084 = vunpack.c.h.b16 %v358
    %v1085 = vunpack.c.l.b16 %v359
    %v1086 = vunpack.c.h.b16 %v359
    %v1087 = vunpack.c.l.b16 %v360
    %v1088 = vunpack.c.h.b16 %v360
    %v1089 = vunpack.c.l.b16 %v361
    %v1090 = vunpack.c.h.b16 %v361
    %v1091 = vunpack.c.l.b16 %v362
    %v1092 = vunpack.c.h.b16 %v362
    %v1093 = vunpack.c.l.b16 %v363
    %v1094 = vunpack.c.h.b16 %v363
    %v1095 = vunpack.c.l.b16 %v364
    %v1096 = vunpack.c.h.b16 %v364
    %v1097 = vunpack.c.l.b16 %v365
    %v1098 = vunpack.c.h.b16 %v365
    %v1099 = vunpack.c.l.b16 %v366
    %v1100 = vunpack.c.h.b16 %v366
    %v1101 = vunpack.c.l.b16 %v367
    %v1102 = vunpack.c.h.b16 %v367
    %v1103 = vunpack.c.l.b16 %v368
    %v1104 = vunpack.c.h.b16 %v368
    %v1105 = vunpack.c.l.b16 %v369
    %v1106 = vunpack.c.h.b16 %v369
    %v1107 = vunpack.c.l.b16 %v370
    %v1108 = vunpack.c.h.b16 %v370
    %v1109 = vunpack.c.l.b16 %v371
    %v1110 = vunpack.c.h.b16 %v371
    %v1111 = vunpack.c.l.b16 %v372
    %v1112 = vunpack.c.h.b16 %v372
    %v1113 = vunpack.c.l.b16 %v373
    %v1114 = vunpack.c.h.b16 %v373
    %v1115 = vunpack.c.l.b16 %v374
    %v1116 = vunpack.c.h.b16 %v374
    %v1117 = vunpack.c.l.b16 %v375
    %v1118 = vunpack.c.h.b16 %v375
    %v1119 = vunpack.c.l.b16 %v376
    %v1120 = vunpack.c.h.b16 %v376
    %v1121 = vunpack.c.l.b16 %v377
    %v1122 = vunpack.c.h.b16 %v377
    %v1123 = vunpack.c.l.b16 %v378
    %v1124 = vunpack.c.h.b16 %v378
    %v1125 = vunpack.c.l.b16 %v379
    %v1126 = vunpack.c.h.b16 %v379
    %v1127 = vunpack.c.l.b16 %v380
    %v1128 = vunpack.c.h.b16 %v380
    %v1129 = vunpack.c.l.b16 %v381
    %v1130 = vunpack.c.h.b16 %v381
    %v1131 = vunpack.c.l.b16 %v382
    %v1132 = vunpack.c.h.b16 %v382
    %v1133 = vunpack.c.l.b16 %v383
    %v1134 = vunpack.c.h.b16 %v383
    %v1135 = vunpack.c.l.b16 %v384
    %v1136 = vunpack.c.h.b16 %v384
    %v1137 = vunpack.c.l.b16 %v385
    %v1138 = vunpack.c.h.b16 %v385
    %v1139 = vunpack.c.l.b16 %v386
    %v1140 = vunpack.c.h.b16 %v386
    %v1141 = vunpack.c.l.b16 %v387
    %v1142 = vunpack.c.h.b16 %v387
    %v1143 = vunpack.c.l.b16 %v388
    %v1144 = vunpack.c.h.b16 %v388
    %v1145 = vunpack.c.l.b16 %v389
    %v1146 = vunpack.c.h.b16 %v389
    %v1147 = vunpack.c.l.b16 %v390
    %v1148 = vunpack.c.h.b16 %v390
    %v1149 = vunpack.c.l.b16 %v391
    %v1150 = vunpack.c.h.b16 %v391
    %v1151 = vunpack.c.l.b16 %v392
    %v1152 = vunpack.c.h.b16 %v392
    %v1153 = vunpack.c.l.b16 %v393
    %v1154 = vunpack.c.h.b16 %v393
    %v1155 = vunpack.c.l.b16 %v394
    %v1156 = vunpack.c.h.b16 %v394
    %v1157 = vunpack.c.l.b16 %v395
    %v1158 = vunpack.c.h.b16 %v395
    %v1159 = vunpack.c.l.b16 %v396
    %v1160 = vunpack.c.h.b16 %v396
    %v1161 = vunpack.c.l.b16 %v397
    %v1162 = vunpack.c.h.b16 %v397
    %v1163 = vunpack.c.l.b16 %v398
    %v1164 = vunpack.c.h.b16 %v398
    %v1165 = vunpack.c.l.b16 %v399
    %v1166 = vunpack.c.h.b16 %v399
    %v1167 = vunpack.c.l.b16 %v400
    %v1168 = vunpack.c.h.b16 %v400
    %v1169 = vunpack.c.l.b16 %v401
    %v1170 = vunpack.c.h.b16 %v401
    %v1171 = vunpack.c.l.b16 %v402
    %v1172 = vunpack.c.h.b16 %v402
    %v1173 = vunpack.c.l.b16 %v403
    %v1174 = vunpack.c.h.b16 %v403
    %v1175 = vunpack.c.l.b16 %v404
    %v1176 = vunpack.c.h.b16 %v404
    %v1177 = vunpack.c.l.b16 %v405
    %v1178 = vunpack.c.h.b16 %v405
    %v1179 = vunpack.c.l.b16 %v406
    %v1180 = vunpack.c.h.b16 %v406
    %v1181 = vunpack.c.l.b16 %v407
    %v1182 = vunpack.c.h.b16 %v407
    %v1183 = vunpack.c.l.b16 %v408
    %v1184 = vunpack.c.h.b16 %v408
    %v1185 = vunpack.c.l.b16 %v409
    %v1186 = vunpack.c.h.b16 %v409
    %v1187 = vunpack.c.l.b16 %v410
    %v1188 = vunpack.c.h.b16 %v410
    %v1189 = vunpack.c.l.b16 %v411
    %v1190 = vunpack.c.h.b16 %v411
    %v1191 = vunpack.c.l.b16 %v412
    %v1192 = vunpack.c.h.b16 %v412
    %v1193 = vunpack.c.l.b16 %v413
    %v1194 = vunpack.c.h.b16 %v413
    %v1195 = vunpack.c.l.b16 %v414
    %v1196 = vunpack.c.h.b16 %v414
    %v1197 = vunpack.c.l.b16 %v415
    %v1198 = vunpack.c.h.b16 %v415
    %v1199 = vunpack.c.l.b16 %v416
    %v1200 = vunpack.c.h.b16 %v416
    %v1201 = vunpack.c.l.b16 %v417
    %v1202 = vunpack.c.h.b16 %v417
    %v1203 = vunpack.c.l.b16 %v418
    %v1204 = vunpack.c.h.b16 %v418
    %v1205 = vunpack.c.l.b16 %v419
    %v1206 = vunpack.c.h.b16 %v419
    %v1207 = vunpack.c.l.b16 %v420
    %v1208 = vunpack.c.h.b16 %v420
    %v1209 = vunpack.c.l.b16 %v421
    %v1210 = vunpack.c.h.b16 %v421
    %v1211 = vunpack.c.l.b16 %v422
    %v1212 = vunpack.c.h.b16 %v422
    %v1213 = vunpack.c.l.b16 %v423
    %v1214 = vunpack.c.h.b16 %v423
    %v1215 = vunpack.c.l.b16 %v424
    %v1216 = vunpack.c.h.b16 %v424
    %v1217 = vunpack.c.l.b16 %v425
    %v1218 = vunpack.c.h.b16 %v425
    %v1219 = vunpack.c.l.b16 %v426
    %v1220 = vunpack.c.h.b16 %v426
    %v1221 = vunpack.c.l.b16 %v427
    %v1222 = vunpack.c.h.b16 %v427
    %v1223 = vunpack.c.l.b16 %v428
    %v1224 = vunpack.c.h.b16 %v428
    %v1225 = vunpack.c.l.b16 %v429
    %v1226 = vunpack.c.h.b16 %v429
    %v1227 = vunpack.c.l.b16 %v430
    %v1228 = vunpack.c.h.b16 %v430
    %v1229 = vunpack.c.l.b16 %v431
    %v1230 = vunpack.c.h.b16 %v431
    %v1231 = vunpack.c.l.b16 %v432
    %v1232 = vunpack.c.h.b16 %v432
    %v1233 = vunpack.c.l.b16 %v433
    %v1234 = vunpack.c.h.b16 %v433
    %v1235 = vunpack.c.l.b16 %v434
    %v1236 = vunpack.c.h.b16 %v434
    %v1237 = vunpack.c.l.b16 %v435
    %v1238 = vunpack.c.h.b16 %v435
    %v1239 = vunpack.c.l.b16 %v436
    %v1240 = vunpack.c.h.b16 %v436
    %v1241 = vunpack.c.l.b16 %v437
    %v1242 = vunpack.c.h.b16 %v437
    %v1243 = vunpack.c.l.b16 %v438
    %v1244 = vunpack.c.h.b16 %v438
    %v1245 = vunpack.c.l.b16 %v439
    %v1246 = vunpack.c.h.b16 %v439
    %v1247 = vpack.c.b16 %v739, %v735
    %v1248 = vpack.c.b16 %v740, %v736
    %v1249 = vpack.c.b16 %v741, %v737
    %v1250 = vpack.c.b16 %v742, %v738
    %v1251 = vpack.c.b16 %v747, %v743
    %v1252 = vpack.c.b16 %v748, %v744
    %v1253 = vpack.c.b16 %v749, %v745
    %v1254 = vpack.c.b16 %v750, %v746
    %v1255 = vpack.c.b16 %v755, %v751
    %v1256 = vpack.c.b16 %v756, %v752
    %v1257 = vpack.c.b16 %v757, %v753
    %v1258 = vpack.c.b16 %v758, %v754
    %v1259 = vpack.c.b16 %v763, %v759
    %v1260 = vpack.c.b16 %v764, %v760
    %v1261 = vpack.c.b16 %v765, %v761
    %v1262 = vpack.c.b16 %v766, %v762
    %v1263 = vpack.c.b16 %v771, %v767
    %v1264 = vpack.c.b16 %v772, %v768
    %v1265 = vpack.c.b16 %v773, %v769
    %v1266 = vpack.c.b16 %v774, %v770
    %v1267 = vpack.c.b16 %v779, %v775
    %v1268 = vpack.c.b16 %v780, %v776
    %v1269 = vpack.c.b16 %v781, %v777
    %v1270 = vpack.c.b16 %v782, %v778
    %v1271 = vpack.c.b16 %v787, %v783
    %v1272 = vpack.c.b16 %v788, %v784
    %v1273 = vpack.c.b16 %v789, %v785
    %v1274 = vpack.c.b16 %v790, %v786
    %v1275 = vpack.c.b16 %v795, %v791
    %v1276 = vpack.c.b16 %v796, %v792
    %v1277 = vpack.c.b16 %v797, %v793
    %v1278 = vpack.c.b16 %v798, %v794
    %v1279 = vpack.c.b16 %v803, %v799
    %v1280 = vpack.c.b16 %v804, %v800
    %v1281 = vpack.c.b16 %v805, %v801
    %v1282 = vpack.c.b16 %v806, %v802
    %v1283 = vpack.c.b16 %v811, %v807
    %v1284 = vpack.c.b16 %v812, %v808
    %v1285 = vpack.c.b16 %v813, %v809
    %v1286 = vpack.c.b16 %v814, %v810
    %v1287 = vpack.c.b16 %v819, %v815
    %v1288 = vpack.c.b16 %v820, %v816
    %v1289 = vpack.c.b16 %v821, %v817
    %v1290 = vpack.c.b16 %v822, %v818
    %v1291 = vpack.c.b16 %v827, %v823
    %v1292 = vpack.c.b16 %v828, %v824
    %v1293 = vpack.c.b16 %v829, %v825
    %v1294 = vpack.c.b16 %v830, %v826
    %v1295 = vpack.c.b16 %v835, %v831
    %v1296 = vpack.c.b16 %v836, %v832
    %v1297 = vpack.c.b16 %v837, %v833
    %v1298 = vpack.c.b16 %v838, %v834
    %v1299 = vpack.c.b16 %v843, %v839
    %v1300 = vpack.c.b16 %v844, %v840
    %v1301 = vpack.c.b16 %v845, %v841
    %v1302 = vpack.c.b16 %v846, %v842
    %v1303 = vpack.c.b16 %v851, %v847
    %v1304 = vpack.c.b16 %v852, %v848
    %v1305 = vpack.c.b16 %v853, %v849
    %v1306 = vpack.c.b16 %v854, %v850
    %v1307 = vpack.c.b16 %v859, %v855
    %v1308 = vpack.c.b16 %v860, %v856
    %v1309 = vpack.c.b16 %v861, %v857
    %v1310 = vpack.c.b16 %v862, %v858
    %v1311 = vpack.c.b16 %v867, %v863
    %v1312 = vpack.c.b16 %v868, %v864
    %v1313 = vpack.c.b16 %v869, %v865
    %v1314 = vpack.c.b16 %v870, %v866
    %v1315 = vpack.c.b16 %v875, %v871
    %v1316 = vpack.c.b16 %v876, %v872
    %v1317 = vpack.c.b16 %v877, %v873
    %v1318 = vpack.c.b16 %v878, %v874
    %v1319 = vpack.c.b16 %v883, %v879
    %v1320 = vpack.c.b16 %v884, %v880
    %v1321 = vpack.c.b16 %v885, %v881
    %v1322 = vpack.c.b16 %v886, %v882
    %v1323 = vpack.c.b16 %v891, %v887
    %v1324 = vpack.c.b16 %v892, %v888
    %v1325 = vpack.c.b16 %v893, %v889
    %v1326 = vpack.c.b16 %v894, %v890
    %v1327 = vpack.c.b16 %v899, %v895
    %v1328 = vpack.c.b16 %v900, %v896
    %v1329 = vpack.c.b16 %v901, %v897
    %v1330 = vpack.c.b16 %v902, %v898
    %v1331 = vpack.c.b16 %v907, %v903
    %v1332 = vpack.c.b16 %v908, %v904
    %v1333 = vpack.c.b16 %v909, %v905
    %v1334 = vpack.c.b16 %v910, %v906
    %v1335 = vpack.c.b16 %v915, %v911
    %v1336 = vpack.c.b16 %v916, %v912
    %v1337 = vpack.c.b16 %v917, %v913
    %v1338 = vpack.c.b16 %v918, %v914
    %v1339 = vpack.c.b16 %v923, %v919
    %v1340 = vpack.c.b16 %v924, %v920
    %v1341 = vpack.c.b16 %v925, %v921
    %v1342 = vpack.c.b16 %v926, %v922
    %v1343 = vpack.c.b16 %v931, %v927
    %v1344 = vpack.c.b16 %v932, %v928
    %v1345 = vpack.c.b16 %v933, %v929
    %v1346 = vpack.c.b16 %v934, %v930
    %v1347 = vpack.c.b16 %v939, %v935
    %v1348 = vpack.c.b16 %v940, %v936
    %v1349 = vpack.c.b16 %v941, %v937
    %v1350 = vpack.c.b16 %v942, %v938
    %v1351 = vpack.c.b16 %v947, %v943
    %v1352 = vpack.c.b16 %v948, %v944
    %v1353 = vpack.c.b16 %v949, %v945
    %v1354 = vpack.c.b16 %v950, %v946
    %v1355 = vpack.c.b16 %v955, %v951
    %v1356 = vpack.c.b16 %v956, %v952
    %v1357 = vpack.c.b16 %v957, %v953
    %v1358 = vpack.c.b16 %v958, %v954
    %v1359 = vpack.c.b16 %v963, %v959
    %v1360 = vpack.c.b16 %v964, %v960
    %v1361 = vpack.c.b16 %v965, %v961
    %v1362 = vpack.c.b16 %v966, %v962
    %v1363 = vpack.c.b16 %v971, %v967
    %v1364 = vpack.c.b16 %v972, %v968
    %v1365 = vpack.c.b16 %v973, %v969
    %v1366 = vpack.c.b16 %v974, %v970
    %v1367 = vpack.c.b16 %v979, %v975
    %v1368 = vpack.c.b16 %v980, %v976
    %v1369 = vpack.c.b16 %v981, %v977
    %v1370 = vpack.c.b16 %v982, %v978
    %v1371 = vpack.c.b16 %v987, %v983
    %v1372 = vpack.c.b16 %v988, %v984
    %v1373 = vpack.c.b16 %v989, %v985
    %v1374 = vpack.c.b16 %v990, %v986
    %v1375 = vpack.c.b16 %v995, %v991
    %v1376 = vpack.c.b16 %v996, %v992
    %v1377 = vpack.c.b16 %v997, %v993
    %v1378 = vpack.c.b16 %v998, %v994
    %v1379 = vpack.c.b16 %v1003, %v999
    %v1380 = vpack.c.b16 %v1004, %v1000
    %v1381 = vpack.c.b16 %v1005, %v1001
    %v1382 = vpack.c.b16 %v1006, %v1002
    %v1383 = vpack.c.b16 %v1011, %v1007
    %v1384 = vpack.c.b16 %v1012, %v1008
    %v1385 = vpack.c.b16 %v1013, %v1009
    %v1386 = vpack.c.b16 %v1014, %v1010
    %v1387 = vpack.c.b16 %v1019, %v1015
    %v1388 = vpack.c.b16 %v1020, %v1016
    %v1389 = vpack.c.b16 %v1021, %v1017
    %v1390 = vpack.c.b16 %v1022, %v1018
    %v1391 = vpack.c.b16 %v1027, %v1023
    %v1392 = vpack.c.b16 %v1028, %v1024
    %v1393 = vpack.c.b16 %v1029, %v1025
    %v1394 = vpack.c.b16 %v1030, %v1026
    %v1395 = vpack.c.b16 %v1035, %v1031
    %v1396 = vpack.c.b16 %v1036, %v1032
    %v1397 = vpack.c.b16 %v1037, %v1033
    %v1398 = vpack.c.b16 %v1038, %v1034
    %v1399 = vpack.c.b16 %v1043, %v1039
    %v1400 = vpack.c.b16 %v1044, %v1040
    %v1401 = vpack.c.b16 %v1045, %v1041
    %v1402 = vpack.c.b16 %v1046, %v1042
    %v1403 = vpack.c.b16 %v1051, %v1047
    %v1404 = vpack.c.b16 %v1052, %v1048
    %v1405 = vpack.c.b16 %v1053, %v1049
    %v1406 = vpack.c.b16 %v1054, %v1050
    %v1407 = vpack.c.b16 %v1059, %v1055
    %v1408 = vpack.c.b16 %v1060, %v1056
    %v1409 = vpack.c.b16 %v1061, %v1057
    %v1410 = vpack.c.b16 %v1062, %v1058
    %v1411 = vpack.c.b16 %v1067, %v1063
    %v1412 = vpack.c.b16 %v1068, %v1064
    %v1413 = vpack.c.b16 %v1069, %v1065
    %v1414 = vpack.c.b16 %v1070, %v1066
    %v1415 = vpack.c.b16 %v1075, %v1071
    %v1416 = vpack.c.b16 %v1076, %v1072
    %v1417 = vpack.c.b16 %v1077, %v1073
    %v1418 = vpack.c.b16 %v1078, %v1074
    %v1419 = vpack.c.b16 %v1083, %v1079
    %v1420 = vpack.c.b16 %v1084, %v1080
    %v1421 = vpack.c.b16 %v1085, %v1081
    %v1422 = vpack.c.b16 %v1086, %v1082
    %v1423 = vpack.c.b16 %v1091, %v1087
    %v1424 = vpack.c.b16 %v1092, %v1088
    %v1425 = vpack.c.b16 %v1093, %v1089
    %v1426 = vpack.c.b16 %v1094, %v1090
    %v1427 = vpack.c.b16 %v1099, %v1095
    %v1428 = vpack.c.b16 %v1100, %v1096
    %v1429 = vpack.c.b16 %v1101, %v1097
    %v1430 = vpack.c.b16 %v1102, %v1098
    %v1431 = vpack.c.b16 %v1107, %v1103
    %v1432 = vpack.c.b16 %v1108, %v1104
    %v1433 = vpack.c.b16 %v1109, %v1105
    %v1434 = vpack.c.b16 %v1110, %v1106
    %v1435 = vpack.c.b16 %v1115, %v1111
    %v1436 = vpack.c.b16 %v1116, %v1112
    %v1437 = vpack.c.b16 %v1117, %v1113
    %v1438 = vpack.c.b16 %v1118, %v1114
    %v1439 = vpack.c.b16 %v1123, %v1119
    %v1440 = vpack.c.b16 %v1124, %v1120
    %v1441 = vpack.c.b16 %v1125, %v1121
    %v1442 = vpack.c.b16 %v1126, %v1122
    %v1443 = vpack.c.b16 %v1131, %v1127
    %v1444 = vpack.c.b16 %v1132, %v1128
    %v1445 = vpack.c.b16 %v1133, %v1129
    %v1446 = vpack.c.b16 %v1134, %v1130
    %v1447 = vpack.c.b16 %v1139, %v1135
    %v1448 = vpack.c.b16 %v1140, %v1136
    %v1449 = vpack.c.b16 %v1141, %v1137
    %v1450 = vpack.c.b16 %v1142, %v1138
    %v1451 = vpack.c.b16 %v1147, %v1143
    %v1452 = vpack.c.b16 %v1148, %v1144
    %v1453 = vpack.c.b16 %v1149, %v1145
    %v1454 = vpack.c.b16 %v1150, %v1146
    %v1455 = vpack.c.b16 %v1155, %v1151
    %v1456 = vpack.c.b16 %v1156, %v1152
    %v1457 = vpack.c.b16 %v1157, %v1153
    %v1458 = vpack.c.b16 %v1158, %v1154
    %v1459 = vpack.c.b16 %v1163, %v1159
    %v1460 = vpack.c.b16 %v1164, %v1160
    %v1461 = vpack.c.b16 %v1165, %v1161
    %v1462 = vpack.c.b16 %v1166, %v1162
    %v1463 = vpack.c.b16 %v1171, %v1167
    %v1464 = vpack.c.b16 %v1172, %v1168
    %v1465 = vpack.c.b16 %v1173, %v1169
    %v1466 = vpack.c.b16 %v1174, %v1170
    %v1467 = vpack.c.b16 %v1179, %v1175
    %v1468 = vpack.c.b16 %v1180, %v1176
    %v1469 = vpack.c.b16 %v1181, %v1177
    %v1470 = vpack.c.b16 %v1182, %v1178
    %v1471 = vpack.c.b16 %v1187, %v1183
    %v1472 = vpack.c.b16 %v1188, %v1184
    %v1473 = vpack.c.b16 %v1189, %v1185
    %v1474 = vpack.c.b16 %v1190, %v1186
    %v1475 = vpack.c.b16 %v1195, %v1191
    %v1476 = vpack.c.b16 %v1196, %v1192
    %v1477 = vpack.c.b16 %v1197, %v1193
    %v1478 = vpack.c.b16 %v1198, %v1194
    %v1479 = vpack.c.b16 %v1203, %v1199
    %v1480 = vpack.c.b16 %v1204, %v1200
    %v1481 = vpack.c.b16 %v1205, %v1201
    %v1482 = vpack.c.b16 %v1206, %v1202
    %v1483 = vpack.c.b16 %v1211, %v1207
    %v1484 = vpack.c.b16 %v1212, %v1208
    %v1485 = vpack.c.b16 %v1213, %v1209
    %v1486 = vpack.c.b16 %v1214, %v1210
    %v1487 = vpack.c.b16 %v1219, %v1215
    %v1488 = vpack.c.b16 %v1220, %v1216
    %v1489 = vpack.c.b16 %v1221, %v1217
    %v1490 = vpack.c.b16 %v1222, %v1218
    %v1491 = vpack.c.b16 %v1227, %v1223
    %v1492 = vpack.c.b16 %v1228, %v1224
    %v1493 = vpack.c.b16 %v1229, %v1225
    %v1494 = vpack.c.b16 %v1230, %v1226
    %v1495 = vpack.c.b16 %v1235, %v1231
    %v1496 = vpack.c.b16 %v1236, %v1232
    %v1497 = vpack.c.b16 %v1237, %v1233
    %v1498 = vpack.c.b16 %v1238, %v1234
    %v1499 = vpack.c.b16 %v1243, %v1239
    %v1500 = vpack.c.b16 %v1244, %v1240
    %v1501 = vpack.c.b16 %v1245, %v1241
    %v1502 = vpack.c.b16 %v1246, %v1242
    %1759 = vmatprep.subr.bf16.mxu0 %v1276
    %1760 = vmatpush1.bf16.msra.mxu0 %v1275
    %1761 = vmatprep.subr.bf16.mxu0 %v1272
    %1762 = vmatpush1.bf16.msra.mxu0 %v1271
    %1763 = vmatprep.subr.bf16.mxu0 %v1268
    %1764 = vmatpush1.bf16.msra.mxu0 %v1267
    %1765 = vmatprep.subr.bf16.mxu0 %v1264
    %1766 = vmatpush1.bf16.msra.mxu0 %v1263
    %1767 = vmatprep.subr.bf16.mxu0 %v1260
    %1768 = vmatpush1.bf16.msra.mxu0 %v1259
    %1769 = vmatprep.subr.bf16.mxu0 %v1256
    %1770 = vmatpush1.bf16.msra.mxu0 %v1255
    %1771 = vmatprep.subr.bf16.mxu0 %v1252
    %1772 = vmatpush1.bf16.msra.mxu0 %v1251
    %1773 = vmatprep.subr.bf16.mxu0 %v1248
    %1774 = vmatpush1.bf16.msra.mxu0 %v1247
    %1775 = vmatprep.subr.bf16.mxu0 %v1308
    %1776 = vmatpush2.bf16.msra.mxu0 %v1307
    %1777 = vmatprep.subr.bf16.mxu0 %v1304
    %1778 = vmatpush2.bf16.msra.mxu0 %v1303
    %1779 = vmatprep.subr.bf16.mxu0 %v1300
    %1780 = vmatpush2.bf16.msra.mxu0 %v1299
    %1781 = vmatprep.subr.bf16.mxu0 %v1296
    %1782 = vmatpush2.bf16.msra.mxu0 %v1295
    %1783 = vmatprep.subr.bf16.mxu0 %v1292
    %1784 = vmatpush2.bf16.msra.mxu0 %v1291
    %1785 = vmatprep.subr.bf16.mxu0 %v1288
    %1786 = vmatpush2.bf16.msra.mxu0 %v1287
    %1787 = vmatprep.subr.bf16.mxu0 %v1284
    %1788 = vmatpush2.bf16.msra.mxu0 %v1283
    %1789 = vmatprep.subr.bf16.mxu0 %v1280
    %1790 = vmatpush2.bf16.msra.mxu0 %v1279
    %1791 = vmatprep.mubr.bf16.mxu0 %v177
    %1792 = vmatmul.mubr.bf16.gmra.mxu0 %v176
    %v1793 = vpop.f32.mrf.mxu0
    %v1794 = vadd.f32 %v466, %v1793
    %v1795 = vpop.f32.mrf.mxu0
    %v1796 = vadd.f32 %v470, %v1795
    %v1797 = vpop.f32.mrf.mxu0
    %v1798 = vpop.f32.mrf.mxu0
    %1799 = vdwg.mxu0
    %1800 = vmatprep.subr.bf16.mxu0 %v1340
    %1801 = vmatpush1.bf16.msra.mxu0 %v1339
    %1802 = vmatprep.subr.bf16.mxu0 %v1336
    %1803 = vmatpush1.bf16.msra.mxu0 %v1335
    %1804 = vmatprep.subr.bf16.mxu0 %v1332
    %1805 = vmatpush1.bf16.msra.mxu0 %v1331
    %1806 = vmatprep.subr.bf16.mxu0 %v1328
    %1807 = vmatpush1.bf16.msra.mxu0 %v1327
    %1808 = vmatprep.subr.bf16.mxu0 %v1324
    %1809 = vmatpush1.bf16.msra.mxu0 %v1323
    %1810 = vmatprep.subr.bf16.mxu0 %v1320
    %1811 = vmatpush1.bf16.msra.mxu0 %v1319
    %1812 = vmatprep.subr.bf16.mxu0 %v1316
    %1813 = vmatpush1.bf16.msra.mxu0 %v1315
    %1814 = vmatprep.subr.bf16.mxu0 %v1312
    %1815 = vmatpush1.bf16.msra.mxu0 %v1311
    %1816 = vmatprep.subr.bf16.mxu0 %v1372
    %1817 = vmatpush2.bf16.msra.mxu0 %v1371
    %1818 = vmatprep.subr.bf16.mxu0 %v1368
    %1819 = vmatpush2.bf16.msra.mxu0 %v1367
    %1820 = vmatprep.subr.bf16.mxu0 %v1364
    %1821 = vmatpush2.bf16.msra.mxu0 %v1363
    %1822 = vmatprep.subr.bf16.mxu0 %v1360
    %1823 = vmatpush2.bf16.msra.mxu0 %v1359
    %1824 = vmatprep.subr.bf16.mxu0 %v1356
    %1825 = vmatpush2.bf16.msra.mxu0 %v1355
    %1826 = vmatprep.subr.bf16.mxu0 %v1352
    %1827 = vmatpush2.bf16.msra.mxu0 %v1351
    %1828 = vmatprep.subr.bf16.mxu0 %v1348
    %1829 = vmatpush2.bf16.msra.mxu0 %v1347
    %1830 = vmatprep.subr.bf16.mxu0 %v1344
    %1831 = vmatpush2.bf16.msra.mxu0 %v1343
    %1832 = vmatprep.mubr.bf16.mxu0 %v179
    %1833 = vmatmul.mubr.bf16.gmra.mxu0 %v178
    %v1834 = vpop.f32.mrf.mxu0
    %v1835 = vadd.f32 %v1794, %v1834
    %v1836 = vpop.f32.mrf.mxu0
    %v1837 = vadd.f32 %v1796, %v1836
    %v1838 = vpop.f32.mrf.mxu0
    %v1839 = vpop.f32.mrf.mxu0
    %1840 = vdwg.mxu0
    %1841 = vmatprep.subr.bf16.mxu0 %v1404
    %1842 = vmatpush1.bf16.msra.mxu0 %v1403
    %1843 = vmatprep.subr.bf16.mxu0 %v1400
    %1844 = vmatpush1.bf16.msra.mxu0 %v1399
    %1845 = vmatprep.subr.bf16.mxu0 %v1396
    %1846 = vmatpush1.bf16.msra.mxu0 %v1395
    %1847 = vmatprep.subr.bf16.mxu0 %v1392
    %1848 = vmatpush1.bf16.msra.mxu0 %v1391
    %1849 = vmatprep.subr.bf16.mxu0 %v1388
    %1850 = vmatpush1.bf16.msra.mxu0 %v1387
    %1851 = vmatprep.subr.bf16.mxu0 %v1384
    %1852 = vmatpush1.bf16.msra.mxu0 %v1383
    %1853 = vmatprep.subr.bf16.mxu0 %v1380
    %1854 = vmatpush1.bf16.msra.mxu0 %v1379
    %1855 = vmatprep.subr.bf16.mxu0 %v1376
    %1856 = vmatpush1.bf16.msra.mxu0 %v1375
    %1857 = vmatprep.subr.bf16.mxu0 %v1436
    %1858 = vmatpush2.bf16.msra.mxu0 %v1435
    %1859 = vmatprep.subr.bf16.mxu0 %v1432
    %1860 = vmatpush2.bf16.msra.mxu0 %v1431
    %1861 = vmatprep.subr.bf16.mxu0 %v1428
    %1862 = vmatpush2.bf16.msra.mxu0 %v1427
    %1863 = vmatprep.subr.bf16.mxu0 %v1424
    %1864 = vmatpush2.bf16.msra.mxu0 %v1423
    %1865 = vmatprep.subr.bf16.mxu0 %v1420
    %1866 = vmatpush2.bf16.msra.mxu0 %v1419
    %1867 = vmatprep.subr.bf16.mxu0 %v1416
    %1868 = vmatpush2.bf16.msra.mxu0 %v1415
    %1869 = vmatprep.subr.bf16.mxu0 %v1412
    %1870 = vmatpush2.bf16.msra.mxu0 %v1411
    %1871 = vmatprep.subr.bf16.mxu0 %v1408
    %1872 = vmatpush2.bf16.msra.mxu0 %v1407
    %1873 = vmatprep.mubr.bf16.mxu0 %v181
    %1874 = vmatmul.mubr.bf16.gmra.mxu0 %v180
    %v1875 = vpop.f32.mrf.mxu0
    %v1876 = vadd.f32 %v1835, %v1875
    %v1877 = vpop.f32.mrf.mxu0
    %v1878 = vadd.f32 %v1837, %v1877
    %v1879 = vpop.f32.mrf.mxu0
    %v1880 = vpop.f32.mrf.mxu0
    %1881 = vdwg.mxu0
    %1882 = vmatprep.subr.bf16.mxu0 %v1468
    %1883 = vmatpush1.bf16.msra.mxu0 %v1467
    %1884 = vmatprep.subr.bf16.mxu0 %v1464
    %1885 = vmatpush1.bf16.msra.mxu0 %v1463
    %1886 = vmatprep.subr.bf16.mxu0 %v1460
    %1887 = vmatpush1.bf16.msra.mxu0 %v1459
    %1888 = vmatprep.subr.bf16.mxu0 %v1456
    %1889 = vmatpush1.bf16.msra.mxu0 %v1455
    %1890 = vmatprep.subr.bf16.mxu0 %v1452
    %1891 = vmatpush1.bf16.msra.mxu0 %v1451
    %1892 = vmatprep.subr.bf16.mxu0 %v1448
    %1893 = vmatpush1.bf16.msra.mxu0 %v1447
    %1894 = vmatprep.subr.bf16.mxu0 %v1444
    %1895 = vmatpush1.bf16.msra.mxu0 %v1443
    %1896 = vmatprep.subr.bf16.mxu0 %v1440
    %1897 = vmatpush1.bf16.msra.mxu0 %v1439
    %1898 = vmatprep.subr.bf16.mxu0 %v1500
    %1899 = vmatpush2.bf16.msra.mxu0 %v1499
    %1900 = vmatprep.subr.bf16.mxu0 %v1496
    %1901 = vmatpush2.bf16.msra.mxu0 %v1495
    %1902 = vmatprep.subr.bf16.mxu0 %v1492
    %1903 = vmatpush2.bf16.msra.mxu0 %v1491
    %1904 = vmatprep.subr.bf16.mxu0 %v1488
    %1905 = vmatpush2.bf16.msra.mxu0 %v1487
    %1906 = vmatprep.subr.bf16.mxu0 %v1484
    %1907 = vmatpush2.bf16.msra.mxu0 %v1483
    %1908 = vmatprep.subr.bf16.mxu0 %v1480
    %1909 = vmatpush2.bf16.msra.mxu0 %v1479
    %1910 = vmatprep.subr.bf16.mxu0 %v1476
    %1911 = vmatpush2.bf16.msra.mxu0 %v1475
    %1912 = vmatprep.subr.bf16.mxu0 %v1472
    %1913 = vmatpush2.bf16.msra.mxu0 %v1471
    %1914 = vmatprep.mubr.bf16.mxu0 %v183
    %1915 = vmatmul.mubr.bf16.gmra.mxu0 %v182
    %v1916 = vpop.f32.mrf.mxu0
    %v1917 = vadd.f32 %v1876, %v1916
    %v1918 = vpop.f32.mrf.mxu0
    %v1919 = vadd.f32 %v1878, %v1918
    %v1920 = vpop.f32.mrf.mxu0
    %v1921 = vpop.f32.mrf.mxu0
    %1922 = vdwg.mxu0
    %1923 = vmatprep.subr.bf16.mxu0 %v1278
    %1924 = vmatpush1.bf16.msra.mxu0 %v1277
    %1925 = vmatprep.subr.bf16.mxu0 %v1274
    %1926 = vmatpush1.bf16.msra.mxu0 %v1273
    %1927 = vmatprep.subr.bf16.mxu0 %v1270
    %1928 = vmatpush1.bf16.msra.mxu0 %v1269
    %1929 = vmatprep.subr.bf16.mxu0 %v1266
    %1930 = vmatpush1.bf16.msra.mxu0 %v1265
    %1931 = vmatprep.subr.bf16.mxu0 %v1262
    %1932 = vmatpush1.bf16.msra.mxu0 %v1261
    %1933 = vmatprep.subr.bf16.mxu0 %v1258
    %1934 = vmatpush1.bf16.msra.mxu0 %v1257
    %1935 = vmatprep.subr.bf16.mxu0 %v1254
    %1936 = vmatpush1.bf16.msra.mxu0 %v1253
    %1937 = vmatprep.subr.bf16.mxu0 %v1250
    %1938 = vmatpush1.bf16.msra.mxu0 %v1249
    %1939 = vmatprep.subr.bf16.mxu0 %v1310
    %1940 = vmatpush2.bf16.msra.mxu0 %v1309
    %1941 = vmatprep.subr.bf16.mxu0 %v1306
    %1942 = vmatpush2.bf16.msra.mxu0 %v1305
    %1943 = vmatprep.subr.bf16.mxu0 %v1302
    %1944 = vmatpush2.bf16.msra.mxu0 %v1301
    %1945 = vmatprep.subr.bf16.mxu0 %v1298
    %1946 = vmatpush2.bf16.msra.mxu0 %v1297
    %1947 = vmatprep.subr.bf16.mxu0 %v1294
    %1948 = vmatpush2.bf16.msra.mxu0 %v1293
    %1949 = vmatprep.subr.bf16.mxu0 %v1290
    %1950 = vmatpush2.bf16.msra.mxu0 %v1289
    %1951 = vmatprep.subr.bf16.mxu0 %v1286
    %1952 = vmatpush2.bf16.msra.mxu0 %v1285
    %1953 = vmatprep.subr.bf16.mxu0 %v1282
    %1954 = vmatpush2.bf16.msra.mxu0 %v1281
    %1955 = vmatprep.mubr.bf16.mxu0 %v177
    %1956 = vmatmul.mubr.bf16.gmra.mxu0 %v176
    %v1957 = vpop.f32.mrf.mxu0
    %v1958 = vadd.f32 %v474, %v1957
    %v1959 = vpop.f32.mrf.mxu0
    %v1960 = vadd.f32 %v478, %v1959
    %v1961 = vpop.f32.mrf.mxu0
    %v1962 = vpop.f32.mrf.mxu0
    %1963 = vdwg.mxu0
    %1964 = vmatprep.subr.bf16.mxu0 %v1342
    %1965 = vmatpush1.bf16.msra.mxu0 %v1341
    %1966 = vmatprep.subr.bf16.mxu0 %v1338
    %1967 = vmatpush1.bf16.msra.mxu0 %v1337
    %1968 = vmatprep.subr.bf16.mxu0 %v1334
    %1969 = vmatpush1.bf16.msra.mxu0 %v1333
    %1970 = vmatprep.subr.bf16.mxu0 %v1330
    %1971 = vmatpush1.bf16.msra.mxu0 %v1329
    %1972 = vmatprep.subr.bf16.mxu0 %v1326
    %1973 = vmatpush1.bf16.msra.mxu0 %v1325
    %1974 = vmatprep.subr.bf16.mxu0 %v1322
    %1975 = vmatpush1.bf16.msra.mxu0 %v1321
    %1976 = vmatprep.subr.bf16.mxu0 %v1318
    %1977 = vmatpush1.bf16.msra.mxu0 %v1317
    %1978 = vmatprep.subr.bf16.mxu0 %v1314
    %1979 = vmatpush1.bf16.msra.mxu0 %v1313
    %1980 = vmatprep.subr.bf16.mxu0 %v1374
    %1981 = vmatpush2.bf16.msra.mxu0 %v1373
    %1982 = vmatprep.subr.bf16.mxu0 %v1370
    %1983 = vmatpush2.bf16.msra.mxu0 %v1369
    %1984 = vmatprep.subr.bf16.mxu0 %v1366
    %1985 = vmatpush2.bf16.msra.mxu0 %v1365
    %1986 = vmatprep.subr.bf16.mxu0 %v1362
    %1987 = vmatpush2.bf16.msra.mxu0 %v1361
    %1988 = vmatprep.subr.bf16.mxu0 %v1358
    %1989 = vmatpush2.bf16.msra.mxu0 %v1357
    %1990 = vmatprep.subr.bf16.mxu0 %v1354
    %1991 = vmatpush2.bf16.msra.mxu0 %v1353
    %1992 = vmatprep.subr.bf16.mxu0 %v1350
    %1993 = vmatpush2.bf16.msra.mxu0 %v1349
    %1994 = vmatprep.subr.bf16.mxu0 %v1346
    %1995 = vmatpush2.bf16.msra.mxu0 %v1345
    %1996 = vmatprep.mubr.bf16.mxu0 %v179
    %1997 = vmatmul.mubr.bf16.gmra.mxu0 %v178
    %v1998 = vpop.f32.mrf.mxu0
    %v1999 = vadd.f32 %v1958, %v1998
    %v2000 = vpop.f32.mrf.mxu0
    %v2001 = vadd.f32 %v1960, %v2000
    %v2002 = vpop.f32.mrf.mxu0
    %v2003 = vpop.f32.mrf.mxu0
    %2004 = vdwg.mxu0
    %2005 = vmatprep.subr.bf16.mxu0 %v1406
    %2006 = vmatpush1.bf16.msra.mxu0 %v1405
    %2007 = vmatprep.subr.bf16.mxu0 %v1402
    %2008 = vmatpush1.bf16.msra.mxu0 %v1401
    %2009 = vmatprep.subr.bf16.mxu0 %v1398
    %2010 = vmatpush1.bf16.msra.mxu0 %v1397
    %2011 = vmatprep.subr.bf16.mxu0 %v1394
    %2012 = vmatpush1.bf16.msra.mxu0 %v1393
    %2013 = vmatprep.subr.bf16.mxu0 %v1390
    %2014 = vmatpush1.bf16.msra.mxu0 %v1389
    %2015 = vmatprep.subr.bf16.mxu0 %v1386
    %2016 = vmatpush1.bf16.msra.mxu0 %v1385
    %2017 = vmatprep.subr.bf16.mxu0 %v1382
    %2018 = vmatpush1.bf16.msra.mxu0 %v1381
    %2019 = vmatprep.subr.bf16.mxu0 %v1378
    %2020 = vmatpush1.bf16.msra.mxu0 %v1377
    %2021 = vmatprep.subr.bf16.mxu0 %v1438
    %2022 = vmatpush2.bf16.msra.mxu0 %v1437
    %2023 = vmatprep.subr.bf16.mxu0 %v1434
    %2024 = vmatpush2.bf16.msra.mxu0 %v1433
    %2025 = vmatprep.subr.bf16.mxu0 %v1430
    %2026 = vmatpush2.bf16.msra.mxu0 %v1429
    %2027 = vmatprep.subr.bf16.mxu0 %v1426
    %2028 = vmatpush2.bf16.msra.mxu0 %v1425
    %2029 = vmatprep.subr.bf16.mxu0 %v1422
    %2030 = vmatpush2.bf16.msra.mxu0 %v1421
    %2031 = vmatprep.subr.bf16.mxu0 %v1418
    %2032 = vmatpush2.bf16.msra.mxu0 %v1417
    %2033 = vmatprep.subr.bf16.mxu0 %v1414
    %2034 = vmatpush2.bf16.msra.mxu0 %v1413
    %2035 = vmatprep.subr.bf16.mxu0 %v1410
    %2036 = vmatpush2.bf16.msra.mxu0 %v1409
    %2037 = vmatprep.mubr.bf16.mxu0 %v181
    %2038 = vmatmul.mubr.bf16.gmra.mxu0 %v180
    %v2039 = vpop.f32.mrf.mxu0
    %v2040 = vadd.f32 %v1999, %v2039
    %v2041 = vpop.f32.mrf.mxu0
    %v2042 = vadd.f32 %v2001, %v2041
    %v2043 = vpop.f32.mrf.mxu0
    %v2044 = vpop.f32.mrf.mxu0
    %2045 = vdwg.mxu0
    %2046 = vmatprep.subr.bf16.mxu0 %v1470
    %2047 = vmatpush1.bf16.msra.mxu0 %v1469
    %2048 = vmatprep.subr.bf16.mxu0 %v1466
    %2049 = vmatpush1.bf16.msra.mxu0 %v1465
    %2050 = vmatprep.subr.bf16.mxu0 %v1462
    %2051 = vmatpush1.bf16.msra.mxu0 %v1461
    %2052 = vmatprep.subr.bf16.mxu0 %v1458
    %2053 = vmatpush1.bf16.msra.mxu0 %v1457
    %2054 = vmatprep.subr.bf16.mxu0 %v1454
    %2055 = vmatpush1.bf16.msra.mxu0 %v1453
    %2056 = vmatprep.subr.bf16.mxu0 %v1450
    %2057 = vmatpush1.bf16.msra.mxu0 %v1449
    %2058 = vmatprep.subr.bf16.mxu0 %v1446
    %2059 = vmatpush1.bf16.msra.mxu0 %v1445
    %2060 = vmatprep.subr.bf16.mxu0 %v1442
    %2061 = vmatpush1.bf16.msra.mxu0 %v1441
    %2062 = vmatprep.subr.bf16.mxu0 %v1502
    %2063 = vmatpush2.bf16.msra.mxu0 %v1501
    %2064 = vmatprep.subr.bf16.mxu0 %v1498
    %2065 = vmatpush2.bf16.msra.mxu0 %v1497
    %2066 = vmatprep.subr.bf16.mxu0 %v1494
    %2067 = vmatpush2.bf16.msra.mxu0 %v1493
    %2068 = vmatprep.subr.bf16.mxu0 %v1490
    %2069 = vmatpush2.bf16.msra.mxu0 %v1489
    %2070 = vmatprep.subr.bf16.mxu0 %v1486
    %2071 = vmatpush2.bf16.msra.mxu0 %v1485
    %2072 = vmatprep.subr.bf16.mxu0 %v1482
    %2073 = vmatpush2.bf16.msra.mxu0 %v1481
    %2074 = vmatprep.subr.bf16.mxu0 %v1478
    %2075 = vmatpush2.bf16.msra.mxu0 %v1477
    %2076 = vmatprep.subr.bf16.mxu0 %v1474
    %2077 = vmatpush2.bf16.msra.mxu0 %v1473
    %2078 = vmatprep.mubr.bf16.mxu0 %v183
    %2079 = vmatmul.mubr.bf16.gmra.mxu0 %v182
    %v2080 = vpop.f32.mrf.mxu0
    %v2081 = vadd.f32 %v2040, %v2080
    %v2082 = vpop.f32.mrf.mxu0
    %v2083 = vadd.f32 %v2042, %v2082
    %v2084 = vpop.f32.mrf.mxu0
    %v2085 = vpop.f32.mrf.mxu0
    %2086 = vdwg.mxu0
    %v2087 = vmax.f32 %v1917, 0.0
    %v2088 = vmax.f32 %v1919, 0.0
    %v2089 = vmax.f32 %v2081, 0.0
    %v2090 = vmax.f32 %v2083, 0.0
    %v2091 = vpack.c.bf16 %v2087, %v2087
    %v2092 = vpack.c.bf16 %v2088, %v2088
    %v2093 = vpack.c.bf16 %v2089, %v2089
    %v2094 = vpack.c.bf16 %v2090, %v2090
    %v2095 = vld [vmem:[#allocation4] sm:$0xff]
    %v2096 = vld [vmem:[#allocation4 + $0x8] sm:$0xff]
    %v2097 = vld [vmem:[#allocation4 + $0x10] sm:$0xff]
    %v2098 = vld [vmem:[#allocation4 + $0x18] sm:$0xff]
    %v2099 = vld [vmem:[#allocation4 + $0x20] sm:$0xff]
    %v2100 = vld [vmem:[#allocation4 + $0x28] sm:$0xff]
    %v2101 = vld [vmem:[#allocation4 + $0x30] sm:$0xff]
    %v2102 = vld [vmem:[#allocation4 + $0x38] sm:$0xff]
    %v2103 = vld [vmem:[#allocation4 + $0x40] sm:$0xff]
    %v2104 = vld [vmem:[#allocation4 + $0x48] sm:$0xff]
    %v2105 = vld [vmem:[#allocation4 + $0x50] sm:$0xff]
    %v2106 = vld [vmem:[#allocation4 + $0x58] sm:$0xff]
    %v2107 = vld [vmem:[#allocation4 + $0x60] sm:$0xff]
    %v2108 = vld [vmem:[#allocation4 + $0x68] sm:$0xff]
    %v2109 = vld [vmem:[#allocation4 + $0x70] sm:$0xff]
    %v2110 = vld [vmem:[#allocation4 + $0x78] sm:$0xff]
    %v2111 = vld [vmem:[#allocation4 + $0x80] sm:$0xff]
    %v2112 = vld [vmem:[#allocation4 + $0x88] sm:$0xff]
    %v2113 = vld [vmem:[#allocation4 + $0x90] sm:$0xff]
    %v2114 = vld [vmem:[#allocation4 + $0x98] sm:$0xff]
    %v2115 = vld [vmem:[#allocation4 + $0xa0] sm:$0xff]
    %v2116 = vld [vmem:[#allocation4 + $0xa8] sm:$0xff]
    %v2117 = vld [vmem:[#allocation4 + $0xb0] sm:$0xff]
    %v2118 = vld [vmem:[#allocation4 + $0xb8] sm:$0xff]
    %v2119 = vld [vmem:[#allocation4 + $0xc0] sm:$0xff]
    %v2120 = vld [vmem:[#allocation4 + $0xc8] sm:$0xff]
    %v2121 = vld [vmem:[#allocation4 + $0xd0] sm:$0xff]
    %v2122 = vld [vmem:[#allocation4 + $0xd8] sm:$0xff]
    %v2123 = vld [vmem:[#allocation4 + $0xe0] sm:$0xff]
    %v2124 = vld [vmem:[#allocation4 + $0xe8] sm:$0xff]
    %v2125 = vld [vmem:[#allocation4 + $0xf0] sm:$0xff]
    %v2126 = vld [vmem:[#allocation4 + $0xf8] sm:$0xff]
    %v2127 = vld [vmem:[#allocation4 + $0x100] sm:$0xff]
    %v2128 = vld [vmem:[#allocation4 + $0x108] sm:$0xff]
    %v2129 = vld [vmem:[#allocation4 + $0x110] sm:$0xff]
    %v2130 = vld [vmem:[#allocation4 + $0x118] sm:$0xff]
    %v2131 = vld [vmem:[#allocation4 + $0x120] sm:$0xff]
    %v2132 = vld [vmem:[#allocation4 + $0x128] sm:$0xff]
    %v2133 = vld [vmem:[#allocation4 + $0x130] sm:$0xff]
    %v2134 = vld [vmem:[#allocation4 + $0x138] sm:$0xff]
    %v2135 = vld [vmem:[#allocation4 + $0x140] sm:$0xff]
    %v2136 = vld [vmem:[#allocation4 + $0x148] sm:$0xff]
    %v2137 = vld [vmem:[#allocation4 + $0x150] sm:$0xff]
    %v2138 = vld [vmem:[#allocation4 + $0x158] sm:$0xff]
    %v2139 = vld [vmem:[#allocation4 + $0x160] sm:$0xff]
    %v2140 = vld [vmem:[#allocation4 + $0x168] sm:$0xff]
    %v2141 = vld [vmem:[#allocation4 + $0x170] sm:$0xff]
    %v2142 = vld [vmem:[#allocation4 + $0x178] sm:$0xff]
    %v2143 = vld [vmem:[#allocation4 + $0x180] sm:$0xff]
    %v2144 = vld [vmem:[#allocation4 + $0x188] sm:$0xff]
    %v2145 = vld [vmem:[#allocation4 + $0x190] sm:$0xff]
    %v2146 = vld [vmem:[#allocation4 + $0x198] sm:$0xff]
    %v2147 = vld [vmem:[#allocation4 + $0x1a0] sm:$0xff]
    %v2148 = vld [vmem:[#allocation4 + $0x1a8] sm:$0xff]
    %v2149 = vld [vmem:[#allocation4 + $0x1b0] sm:$0xff]
    %v2150 = vld [vmem:[#allocation4 + $0x1b8] sm:$0xff]
    %v2151 = vld [vmem:[#allocation4 + $0x1c0] sm:$0xff]
    %v2152 = vld [vmem:[#allocation4 + $0x1c8] sm:$0xff]
    %v2153 = vld [vmem:[#allocation4 + $0x1d0] sm:$0xff]
    %v2154 = vld [vmem:[#allocation4 + $0x1d8] sm:$0xff]
    %v2155 = vld [vmem:[#allocation4 + $0x1e0] sm:$0xff]
    %v2156 = vld [vmem:[#allocation4 + $0x1e8] sm:$0xff]
    %v2157 = vld [vmem:[#allocation4 + $0x1f0] sm:$0xff]
    %v2158 = vld [vmem:[#allocation4 + $0x1f8] sm:$0xff]
    %v2159 = vld [vmem:[%s5] sm:$0x3]
    %v2160 = vunpack.c.l.bf16 %v2159
    %v2162 = vlaneseq
    %v2163 = vshrl.u32 %v2162, 7
    %v2164 = vsub.s32 0, %v2163
    %v2165 = vrot.slane %v2160, %v2164
    %v2166 = vlaneseq
    %v2167 = vshrl.u32 %v2166, 7
    %v2168 = vsub.s32 2, %v2167
    %v2169 = vrot.slane %v2160, %v2168
    %v2172 = vlaneseq
    %v2173 = vshrl.u32 %v2172, 7
    %v2174 = vsub.s32 0, %v2173
    %v2175 = vrot.slane %v2165, %v2174
    %v2176 = vlaneseq
    %v2177 = vshrl.u32 %v2176, 7
    %v2178 = vsub.s32 0, %v2177
    %v2179 = vrot.slane %v2169, %v2178
    %v2244 = vunpack.c.l.b16 %v2095
    %v2245 = vunpack.c.h.b16 %v2095
    %v2246 = vunpack.c.l.b16 %v2096
    %v2247 = vunpack.c.h.b16 %v2096
    %v2248 = vunpack.c.l.b16 %v2097
    %v2249 = vunpack.c.h.b16 %v2097
    %v2250 = vunpack.c.l.b16 %v2098
    %v2251 = vunpack.c.h.b16 %v2098
    %v2252 = vunpack.c.l.b16 %v2099
    %v2253 = vunpack.c.h.b16 %v2099
    %v2254 = vunpack.c.l.b16 %v2100
    %v2255 = vunpack.c.h.b16 %v2100
    %v2256 = vunpack.c.l.b16 %v2101
    %v2257 = vunpack.c.h.b16 %v2101
    %v2258 = vunpack.c.l.b16 %v2102
    %v2259 = vunpack.c.h.b16 %v2102
    %v2260 = vunpack.c.l.b16 %v2103
    %v2261 = vunpack.c.h.b16 %v2103
    %v2262 = vunpack.c.l.b16 %v2104
    %v2263 = vunpack.c.h.b16 %v2104
    %v2264 = vunpack.c.l.b16 %v2105
    %v2265 = vunpack.c.h.b16 %v2105
    %v2266 = vunpack.c.l.b16 %v2106
    %v2267 = vunpack.c.h.b16 %v2106
    %v2268 = vunpack.c.l.b16 %v2107
    %v2269 = vunpack.c.h.b16 %v2107
    %v2270 = vunpack.c.l.b16 %v2108
    %v2271 = vunpack.c.h.b16 %v2108
    %v2272 = vunpack.c.l.b16 %v2109
    %v2273 = vunpack.c.h.b16 %v2109
    %v2274 = vunpack.c.l.b16 %v2110
    %v2275 = vunpack.c.h.b16 %v2110
    %v2276 = vunpack.c.l.b16 %v2111
    %v2277 = vunpack.c.h.b16 %v2111
    %v2278 = vunpack.c.l.b16 %v2112
    %v2279 = vunpack.c.h.b16 %v2112
    %v2280 = vunpack.c.l.b16 %v2113
    %v2281 = vunpack.c.h.b16 %v2113
    %v2282 = vunpack.c.l.b16 %v2114
    %v2283 = vunpack.c.h.b16 %v2114
    %v2284 = vunpack.c.l.b16 %v2115
    %v2285 = vunpack.c.h.b16 %v2115
    %v2286 = vunpack.c.l.b16 %v2116
    %v2287 = vunpack.c.h.b16 %v2116
    %v2288 = vunpack.c.l.b16 %v2117
    %v2289 = vunpack.c.h.b16 %v2117
    %v2290 = vunpack.c.l.b16 %v2118
    %v2291 = vunpack.c.h.b16 %v2118
    %v2292 = vunpack.c.l.b16 %v2119
    %v2293 = vunpack.c.h.b16 %v2119
    %v2294 = vunpack.c.l.b16 %v2120
    %v2295 = vunpack.c.h.b16 %v2120
    %v2296 = vunpack.c.l.b16 %v2121
    %v2297 = vunpack.c.h.b16 %v2121
    %v2298 = vunpack.c.l.b16 %v2122
    %v2299 = vunpack.c.h.b16 %v2122
    %v2300 = vunpack.c.l.b16 %v2123
    %v2301 = vunpack.c.h.b16 %v2123
    %v2302 = vunpack.c.l.b16 %v2124
    %v2303 = vunpack.c.h.b16 %v2124
    %v2304 = vunpack.c.l.b16 %v2125
    %v2305 = vunpack.c.h.b16 %v2125
    %v2306 = vunpack.c.l.b16 %v2126
    %v2307 = vunpack.c.h.b16 %v2126
    %v2308 = vunpack.c.l.b16 %v2127
    %v2309 = vunpack.c.h.b16 %v2127
    %v2310 = vunpack.c.l.b16 %v2128
    %v2311 = vunpack.c.h.b16 %v2128
    %v2312 = vunpack.c.l.b16 %v2129
    %v2313 = vunpack.c.h.b16 %v2129
    %v2314 = vunpack.c.l.b16 %v2130
    %v2315 = vunpack.c.h.b16 %v2130
    %v2316 = vunpack.c.l.b16 %v2131
    %v2317 = vunpack.c.h.b16 %v2131
    %v2318 = vunpack.c.l.b16 %v2132
    %v2319 = vunpack.c.h.b16 %v2132
    %v2320 = vunpack.c.l.b16 %v2133
    %v2321 = vunpack.c.h.b16 %v2133
    %v2322 = vunpack.c.l.b16 %v2134
    %v2323 = vunpack.c.h.b16 %v2134
    %v2324 = vunpack.c.l.b16 %v2135
    %v2325 = vunpack.c.h.b16 %v2135
    %v2326 = vunpack.c.l.b16 %v2136
    %v2327 = vunpack.c.h.b16 %v2136
    %v2328 = vunpack.c.l.b16 %v2137
    %v2329 = vunpack.c.h.b16 %v2137
    %v2330 = vunpack.c.l.b16 %v2138
    %v2331 = vunpack.c.h.b16 %v2138
    %v2332 = vunpack.c.l.b16 %v2139
    %v2333 = vunpack.c.h.b16 %v2139
    %v2334 = vunpack.c.l.b16 %v2140
    %v2335 = vunpack.c.h.b16 %v2140
    %v2336 = vunpack.c.l.b16 %v2141
    %v2337 = vunpack.c.h.b16 %v2141
    %v2338 = vunpack.c.l.b16 %v2142
    %v2339 = vunpack.c.h.b16 %v2142
    %v2340 = vunpack.c.l.b16 %v2143
    %v2341 = vunpack.c.h.b16 %v2143
    %v2342 = vunpack.c.l.b16 %v2144
    %v2343 = vunpack.c.h.b16 %v2144
    %v2344 = vunpack.c.l.b16 %v2145
    %v2345 = vunpack.c.h.b16 %v2145
    %v2346 = vunpack.c.l.b16 %v2146
    %v2347 = vunpack.c.h.b16 %v2146
    %v2348 = vunpack.c.l.b16 %v2147
    %v2349 = vunpack.c.h.b16 %v2147
    %v2350 = vunpack.c.l.b16 %v2148
    %v2351 = vunpack.c.h.b16 %v2148
    %v2352 = vunpack.c.l.b16 %v2149
    %v2353 = vunpack.c.h.b16 %v2149
    %v2354 = vunpack.c.l.b16 %v2150
    %v2355 = vunpack.c.h.b16 %v2150
    %v2356 = vunpack.c.l.b16 %v2151
    %v2357 = vunpack.c.h.b16 %v2151
    %v2358 = vunpack.c.l.b16 %v2152
    %v2359 = vunpack.c.h.b16 %v2152
    %v2360 = vunpack.c.l.b16 %v2153
    %v2361 = vunpack.c.h.b16 %v2153
    %v2362 = vunpack.c.l.b16 %v2154
    %v2363 = vunpack.c.h.b16 %v2154
    %v2364 = vunpack.c.l.b16 %v2155
    %v2365 = vunpack.c.h.b16 %v2155
    %v2366 = vunpack.c.l.b16 %v2156
    %v2367 = vunpack.c.h.b16 %v2156
    %v2368 = vunpack.c.l.b16 %v2157
    %v2369 = vunpack.c.h.b16 %v2157
    %v2370 = vunpack.c.l.b16 %v2158
    %v2371 = vunpack.c.h.b16 %v2158
    %v2372 = vpack.c.b16 %v2246, %v2244
    %v2373 = vpack.c.b16 %v2247, %v2245
    %v2374 = vpack.c.b16 %v2250, %v2248
    %v2375 = vpack.c.b16 %v2251, %v2249
    %v2376 = vpack.c.b16 %v2254, %v2252
    %v2377 = vpack.c.b16 %v2255, %v2253
    %v2378 = vpack.c.b16 %v2258, %v2256
    %v2379 = vpack.c.b16 %v2259, %v2257
    %v2380 = vpack.c.b16 %v2262, %v2260
    %v2381 = vpack.c.b16 %v2263, %v2261
    %v2382 = vpack.c.b16 %v2266, %v2264
    %v2383 = vpack.c.b16 %v2267, %v2265
    %v2384 = vpack.c.b16 %v2270, %v2268
    %v2385 = vpack.c.b16 %v2271, %v2269
    %v2386 = vpack.c.b16 %v2274, %v2272
    %v2387 = vpack.c.b16 %v2275, %v2273
    %v2388 = vpack.c.b16 %v2278, %v2276
    %v2389 = vpack.c.b16 %v2279, %v2277
    %v2390 = vpack.c.b16 %v2282, %v2280
    %v2391 = vpack.c.b16 %v2283, %v2281
    %v2392 = vpack.c.b16 %v2286, %v2284
    %v2393 = vpack.c.b16 %v2287, %v2285
    %v2394 = vpack.c.b16 %v2290, %v2288
    %v2395 = vpack.c.b16 %v2291, %v2289
    %v2396 = vpack.c.b16 %v2294, %v2292
    %v2397 = vpack.c.b16 %v2295, %v2293
    %v2398 = vpack.c.b16 %v2298, %v2296
    %v2399 = vpack.c.b16 %v2299, %v2297
    %v2400 = vpack.c.b16 %v2302, %v2300
    %v2401 = vpack.c.b16 %v2303, %v2301
    %v2402 = vpack.c.b16 %v2306, %v2304
    %v2403 = vpack.c.b16 %v2307, %v2305
    %v2404 = vpack.c.b16 %v2310, %v2308
    %v2405 = vpack.c.b16 %v2311, %v2309
    %v2406 = vpack.c.b16 %v2314, %v2312
    %v2407 = vpack.c.b16 %v2315, %v2313
    %v2408 = vpack.c.b16 %v2318, %v2316
    %v2409 = vpack.c.b16 %v2319, %v2317
    %v2410 = vpack.c.b16 %v2322, %v2320
    %v2411 = vpack.c.b16 %v2323, %v2321
    %v2412 = vpack.c.b16 %v2326, %v2324
    %v2413 = vpack.c.b16 %v2327, %v2325
    %v2414 = vpack.c.b16 %v2330, %v2328
    %v2415 = vpack.c.b16 %v2331, %v2329
    %v2416 = vpack.c.b16 %v2334, %v2332
    %v2417 = vpack.c.b16 %v2335, %v2333
    %v2418 = vpack.c.b16 %v2338, %v2336
    %v2419 = vpack.c.b16 %v2339, %v2337
    %v2420 = vpack.c.b16 %v2342, %v2340
    %v2421 = vpack.c.b16 %v2343, %v2341
    %v2422 = vpack.c.b16 %v2346, %v2344
    %v2423 = vpack.c.b16 %v2347, %v2345
    %v2424 = vpack.c.b16 %v2350, %v2348
    %v2425 = vpack.c.b16 %v2351, %v2349
    %v2426 = vpack.c.b16 %v2354, %v2352
    %v2427 = vpack.c.b16 %v2355, %v2353
    %v2428 = vpack.c.b16 %v2358, %v2356
    %v2429 = vpack.c.b16 %v2359, %v2357
    %v2430 = vpack.c.b16 %v2362, %v2360
    %v2431 = vpack.c.b16 %v2363, %v2361
    %v2432 = vpack.c.b16 %v2366, %v2364
    %v2433 = vpack.c.b16 %v2367, %v2365
    %v2434 = vpack.c.b16 %v2370, %v2368
    %v2435 = vpack.c.b16 %v2371, %v2369
    %2500 = vmatprep.subr.bf16.mxu0 %v2387
    %2501 = vmatpush1.bf16.msra.mxu0 %v2386
    %2502 = vmatprep.subr.bf16.mxu0 %v2385
    %2503 = vmatpush1.bf16.msra.mxu0 %v2384
    %2504 = vmatprep.subr.bf16.mxu0 %v2383
    %2505 = vmatpush1.bf16.msra.mxu0 %v2382
    %2506 = vmatprep.subr.bf16.mxu0 %v2381
    %2507 = vmatpush1.bf16.msra.mxu0 %v2380
    %2508 = vmatprep.subr.bf16.mxu0 %v2379
    %2509 = vmatpush1.bf16.msra.mxu0 %v2378
    %2510 = vmatprep.subr.bf16.mxu0 %v2377
    %2511 = vmatpush1.bf16.msra.mxu0 %v2376
    %2512 = vmatprep.subr.bf16.mxu0 %v2375
    %2513 = vmatpush1.bf16.msra.mxu0 %v2374
    %2514 = vmatprep.subr.bf16.mxu0 %v2373
    %2515 = vmatpush1.bf16.msra.mxu0 %v2372
    %2516 = vmatprep.subr.bf16.mxu0 %v2403
    %2517 = vmatpush2.bf16.msra.mxu0 %v2402
    %2518 = vmatprep.subr.bf16.mxu0 %v2401
    %2519 = vmatpush2.bf16.msra.mxu0 %v2400
    %2520 = vmatprep.subr.bf16.mxu0 %v2399
    %2521 = vmatpush2.bf16.msra.mxu0 %v2398
    %2522 = vmatprep.subr.bf16.mxu0 %v2397
    %2523 = vmatpush2.bf16.msra.mxu0 %v2396
    %2524 = vmatprep.subr.bf16.mxu0 %v2395
    %2525 = vmatpush2.bf16.msra.mxu0 %v2394
    %2526 = vmatprep.subr.bf16.mxu0 %v2393
    %2527 = vmatpush2.bf16.msra.mxu0 %v2392
    %2528 = vmatprep.subr.bf16.mxu0 %v2391
    %2529 = vmatpush2.bf16.msra.mxu0 %v2390
    %2530 = vmatprep.subr.bf16.mxu0 %v2389
    %2531 = vmatpush2.bf16.msra.mxu0 %v2388
    %2532 = vmatprep.mubr.bf16.mxu0 %v2092
    %2533 = vmatmul.mubr.bf16.gmra.mxu0 %v2091
    %v2534 = vpop.f32.mrf.mxu0
    %v2535 = vadd.f32 %v2175, %v2534
    %v2536 = vpop.f32.mrf.mxu0
    %v2537 = vadd.f32 %v2179, %v2536
    %v2538 = vpop.f32.mrf.mxu0
    %v2539 = vpop.f32.mrf.mxu0
    %2540 = vdwg.mxu0
    %2541 = vmatprep.subr.bf16.mxu0 %v2419
    %2542 = vmatpush1.bf16.msra.mxu0 %v2418
    %2543 = vmatprep.subr.bf16.mxu0 %v2417
    %2544 = vmatpush1.bf16.msra.mxu0 %v2416
    %2545 = vmatprep.subr.bf16.mxu0 %v2415
    %2546 = vmatpush1.bf16.msra.mxu0 %v2414
    %2547 = vmatprep.subr.bf16.mxu0 %v2413
    %2548 = vmatpush1.bf16.msra.mxu0 %v2412
    %2549 = vmatprep.subr.bf16.mxu0 %v2411
    %2550 = vmatpush1.bf16.msra.mxu0 %v2410
    %2551 = vmatprep.subr.bf16.mxu0 %v2409
    %2552 = vmatpush1.bf16.msra.mxu0 %v2408
    %2553 = vmatprep.subr.bf16.mxu0 %v2407
    %2554 = vmatpush1.bf16.msra.mxu0 %v2406
    %2555 = vmatprep.subr.bf16.mxu0 %v2405
    %2556 = vmatpush1.bf16.msra.mxu0 %v2404
    %2557 = vmatprep.subr.bf16.mxu0 %v2435
    %2558 = vmatpush2.bf16.msra.mxu0 %v2434
    %2559 = vmatprep.subr.bf16.mxu0 %v2433
    %2560 = vmatpush2.bf16.msra.mxu0 %v2432
    %2561 = vmatprep.subr.bf16.mxu0 %v2431
    %2562 = vmatpush2.bf16.msra.mxu0 %v2430
    %2563 = vmatprep.subr.bf16.mxu0 %v2429
    %2564 = vmatpush2.bf16.msra.mxu0 %v2428
    %2565 = vmatprep.subr.bf16.mxu0 %v2427
    %2566 = vmatpush2.bf16.msra.mxu0 %v2426
    %2567 = vmatprep.subr.bf16.mxu0 %v2425
    %2568 = vmatpush2.bf16.msra.mxu0 %v2424
    %2569 = vmatprep.subr.bf16.mxu0 %v2423
    %2570 = vmatpush2.bf16.msra.mxu0 %v2422
    %2571 = vmatprep.subr.bf16.mxu0 %v2421
    %2572 = vmatpush2.bf16.msra.mxu0 %v2420
    %2573 = vmatprep.mubr.bf16.mxu0 %v2094
    %2574 = vmatmul.mubr.bf16.gmra.mxu0 %v2093
    %v2575 = vpop.f32.mrf.mxu0
    %v2576 = vadd.f32 %v2535, %v2575
    %v2577 = vpop.f32.mrf.mxu0
    %v2578 = vadd.f32 %v2537, %v2577
    %v2579 = vpop.f32.mrf.mxu0
    %v2580 = vpop.f32.mrf.mxu0
    %2581 = vdwg.mxu0
    %v2582 = vmax.f32 %v2576, 0.0
    %v2583 = vmax.f32 %v2578, 0.0
    %v2584 = vpack.c.bf16 %v2582, %v2582
    %v2585 = vpack.c.bf16 %v2583, %v2583
    %v2586 = vld [vmem:[%s6] sm:$0xf]
    %v2587 = vld [vmem:[%s6 + $0x4] sm:$0xf]
    %v2588 = vld [vmem:[%s6 + $0x8] sm:$0xf]
    %v2589 = vld [vmem:[%s6 + $0xc] sm:$0xf]
    %v2590 = vld [vmem:[%s6 + $0x10] sm:$0xf]
    %v2591 = vld [vmem:[%s6 + $0x14] sm:$0xf]
    %v2592 = vld [vmem:[%s6 + $0x18] sm:$0xf]
    %v2593 = vld [vmem:[%s6 + $0x1c] sm:$0xf]
    %v2594 = vld [vmem:[%s6 + $0x20] sm:$0xf]
    %v2595 = vld [vmem:[%s6 + $0x24] sm:$0xf]
    %v2596 = vld [vmem:[%s6 + $0x28] sm:$0xf]
    %v2597 = vld [vmem:[%s6 + $0x2c] sm:$0xf]
    %v2598 = vld [vmem:[%s6 + $0x30] sm:$0xf]
    %v2599 = vld [vmem:[%s6 + $0x34] sm:$0xf]
    %v2600 = vld [vmem:[%s6 + $0x38] sm:$0xf]
    %v2601 = vld [vmem:[%s6 + $0x3c] sm:$0xf]
    %v2602 = vld [vmem:[%s6 + $0x40] sm:$0xf]
    %v2603 = vld [vmem:[%s6 + $0x44] sm:$0xf]
    %v2604 = vld [vmem:[%s6 + $0x48] sm:$0xf]
    %v2605 = vld [vmem:[%s6 + $0x4c] sm:$0xf]
    %v2606 = vld [vmem:[%s6 + $0x50] sm:$0xf]
    %v2607 = vld [vmem:[%s6 + $0x54] sm:$0xf]
    %v2608 = vld [vmem:[%s6 + $0x58] sm:$0xf]
    %v2609 = vld [vmem:[%s6 + $0x5c] sm:$0xf]
    %v2610 = vld [vmem:[%s6 + $0x60] sm:$0xf]
    %v2611 = vld [vmem:[%s6 + $0x64] sm:$0xf]
    %v2612 = vld [vmem:[%s6 + $0x68] sm:$0xf]
    %v2613 = vld [vmem:[%s6 + $0x6c] sm:$0xf]
    %v2614 = vld [vmem:[%s6 + $0x70] sm:$0xf]
    %v2615 = vld [vmem:[%s6 + $0x74] sm:$0xf]
    %v2616 = vld [vmem:[%s6 + $0x78] sm:$0xf]
    %v2617 = vld [vmem:[%s6 + $0x7c] sm:$0xf]
    %v2618 = vld [vmem:[%s7] sm:$0x1]
    %v2619 = vunpack.c.l.bf16 %v2618
    %v2620 = vlaneseq
    %v2621 = vshrl.u32 %v2620, 7
    %v2622 = vsub.s32 0, %v2621
    %v2623 = vrot.slane %v2619, %v2622
    %v2656 = vunpack.c.l.b16 %v2586
    %v2657 = vunpack.c.l.b16 %v2587
    %v2658 = vunpack.c.l.b16 %v2588
    %v2659 = vunpack.c.l.b16 %v2589
    %v2660 = vunpack.c.l.b16 %v2590
    %v2661 = vunpack.c.l.b16 %v2591
    %v2662 = vunpack.c.l.b16 %v2592
    %v2663 = vunpack.c.l.b16 %v2593
    %v2664 = vunpack.c.l.b16 %v2594
    %v2665 = vunpack.c.l.b16 %v2595
    %v2666 = vunpack.c.l.b16 %v2596
    %v2667 = vunpack.c.l.b16 %v2597
    %v2668 = vunpack.c.l.b16 %v2598
    %v2669 = vunpack.c.l.b16 %v2599
    %v2670 = vunpack.c.l.b16 %v2600
    %v2671 = vunpack.c.l.b16 %v2601
    %v2672 = vunpack.c.l.b16 %v2602
    %v2673 = vunpack.c.l.b16 %v2603
    %v2674 = vunpack.c.l.b16 %v2604
    %v2675 = vunpack.c.l.b16 %v2605
    %v2676 = vunpack.c.l.b16 %v2606
    %v2677 = vunpack.c.l.b16 %v2607
    %v2678 = vunpack.c.l.b16 %v2608
    %v2679 = vunpack.c.l.b16 %v2609
    %v2680 = vunpack.c.l.b16 %v2610
    %v2681 = vunpack.c.l.b16 %v2611
    %v2682 = vunpack.c.l.b16 %v2612
    %v2683 = vunpack.c.l.b16 %v2613
    %v2684 = vunpack.c.l.b16 %v2614
    %v2685 = vunpack.c.l.b16 %v2615
    %v2686 = vunpack.c.l.b16 %v2616
    %v2687 = vunpack.c.l.b16 %v2617
    %v2688 = vpack.c.b16 %v2657, %v2656
    %v2689 = vpack.c.b16 %v2659, %v2658
    %v2690 = vpack.c.b16 %v2661, %v2660
    %v2691 = vpack.c.b16 %v2663, %v2662
    %v2692 = vpack.c.b16 %v2665, %v2664
    %v2693 = vpack.c.b16 %v2667, %v2666
    %v2694 = vpack.c.b16 %v2669, %v2668
    %v2695 = vpack.c.b16 %v2671, %v2670
    %v2696 = vpack.c.b16 %v2673, %v2672
    %v2697 = vpack.c.b16 %v2675, %v2674
    %v2698 = vpack.c.b16 %v2677, %v2676
    %v2699 = vpack.c.b16 %v2679, %v2678
    %v2700 = vpack.c.b16 %v2681, %v2680
    %v2701 = vpack.c.b16 %v2683, %v2682
    %v2702 = vpack.c.b16 %v2685, %v2684
    %v2703 = vpack.c.b16 %v2687, %v2686
    %2720 = vmatprep.subr.bf16.mxu0 0
    %2721 = vmatpush1.bf16.msra.mxu0 %v2695
    %2722 = vmatprep.subr.bf16.mxu0 0
    %2723 = vmatpush1.bf16.msra.mxu0 %v2694
    %2724 = vmatprep.subr.bf16.mxu0 0
    %2725 = vmatpush1.bf16.msra.mxu0 %v2693
    %2726 = vmatprep.subr.bf16.mxu0 0
    %2727 = vmatpush1.bf16.msra.mxu0 %v2692
    %2728 = vmatprep.subr.bf16.mxu0 0
    %2729 = vmatpush1.bf16.msra.mxu0 %v2691
    %2730 = vmatprep.subr.bf16.mxu0 0
    %2731 = vmatpush1.bf16.msra.mxu0 %v2690
    %2732 = vmatprep.subr.bf16.mxu0 0
    %2733 = vmatpush1.bf16.msra.mxu0 %v2689
    %2734 = vmatprep.subr.bf16.mxu0 0
    %2735 = vmatpush1.bf16.msra.mxu0 %v2688
    %2736 = vmatprep.subr.bf16.mxu0 0
    %2737 = vmatpush2.bf16.msra.mxu0 %v2703
    %2738 = vmatprep.subr.bf16.mxu0 0
    %2739 = vmatpush2.bf16.msra.mxu0 %v2702
    %2740 = vmatprep.subr.bf16.mxu0 0
    %2741 = vmatpush2.bf16.msra.mxu0 %v2701
    %2742 = vmatprep.subr.bf16.mxu0 0
    %2743 = vmatpush2.bf16.msra.mxu0 %v2700
    %2744 = vmatprep.subr.bf16.mxu0 0
    %2745 = vmatpush2.bf16.msra.mxu0 %v2699
    %2746 = vmatprep.subr.bf16.mxu0 0
    %2747 = vmatpush2.bf16.msra.mxu0 %v2698
    %2748 = vmatprep.subr.bf16.mxu0 0
    %2749 = vmatpush2.bf16.msra.mxu0 %v2697
    %2750 = vmatprep.subr.bf16.mxu0 0
    %2751 = vmatpush2.bf16.msra.mxu0 %v2696
    %2752 = vmatprep.mubr.bf16.mxu0 %v2585
    %2753 = vmatmul.mubr.bf16.gmra.mxu0 %v2584
    %v2754 = vpop.f32.mrf.mxu0
    %v2755 = vadd.f32 %v2623, %v2754
    %v2756 = vpop.f32.mrf.mxu0
    %v2757 = vpop.f32.mrf.mxu0
    %v2758 = vpop.f32.mrf.mxu0
    %2759 = vdwg.mxu0
    %v2760 = vpack.c.bf16 %v2755, %v2755
    %v2761 = vld [vmem:[%s8] sm:$0xf]
    %v2762 = vld [vmem:[%s8 + $0x4] sm:$0xf]
    %v2763 = vld [vmem:[%s8 + $0x8] sm:$0xf]
    %v2764 = vld [vmem:[%s8 + $0xc] sm:$0xf]
    %v2765 = vld [vmem:[%s8 + $0x10] sm:$0xf]
    %v2766 = vld [vmem:[%s8 + $0x14] sm:$0xf]
    %v2767 = vld [vmem:[%s8 + $0x18] sm:$0xf]
    %v2768 = vld [vmem:[%s8 + $0x1c] sm:$0xf]
    %v2769 = vld [vmem:[%s8 + $0x20] sm:$0xf]
    %v2770 = vld [vmem:[%s8 + $0x24] sm:$0xf]
    %v2771 = vld [vmem:[%s8 + $0x28] sm:$0xf]
    %v2772 = vld [vmem:[%s8 + $0x2c] sm:$0xf]
    %v2773 = vld [vmem:[%s8 + $0x30] sm:$0xf]
    %v2774 = vld [vmem:[%s8 + $0x34] sm:$0xf]
    %v2775 = vld [vmem:[%s8 + $0x38] sm:$0xf]
    %v2776 = vld [vmem:[%s8 + $0x3c] sm:$0xf]
    %v2777 = vld [vmem:[%s9] sm:$0x1]
    %v2778 = vunpack.c.l.bf16 %v2777
    %v2779 = vlaneseq
    %v2780 = vshrl.u32 %v2779, 7
    %v2781 = vsub.s32 0, %v2780
    %v2782 = vrot.slane %v2778, %v2781
    %v2799 = vunpack.c.l.b16 %v2761
    %v2800 = vunpack.c.l.b16 %v2762
    %v2801 = vunpack.c.l.b16 %v2763
    %v2802 = vunpack.c.l.b16 %v2764
    %v2803 = vunpack.c.l.b16 %v2765
    %v2804 = vunpack.c.l.b16 %v2766
    %v2805 = vunpack.c.l.b16 %v2767
    %v2806 = vunpack.c.l.b16 %v2768
    %v2807 = vunpack.c.l.b16 %v2769
    %v2808 = vunpack.c.l.b16 %v2770
    %v2809 = vunpack.c.l.b16 %v2771
    %v2810 = vunpack.c.l.b16 %v2772
    %v2811 = vunpack.c.l.b16 %v2773
    %v2812 = vunpack.c.l.b16 %v2774
    %v2813 = vunpack.c.l.b16 %v2775
    %v2814 = vunpack.c.l.b16 %v2776
    %v2815 = vpack.c.b16 %v2800, %v2799
    %v2816 = vpack.c.b16 %v2802, %v2801
    %v2817 = vpack.c.b16 %v2804, %v2803
    %v2818 = vpack.c.b16 %v2806, %v2805
    %v2819 = vpack.c.b16 %v2808, %v2807
    %v2820 = vpack.c.b16 %v2810, %v2809
    %v2821 = vpack.c.b16 %v2812, %v2811
    %v2822 = vpack.c.b16 %v2814, %v2813
    %2831 = vmatprep.subr.bf16.mxu0 0
    %2832 = vmatpush1.bf16.msra.mxu0 %v2822
    %2833 = vmatprep.subr.bf16.mxu0 0
    %2834 = vmatpush1.bf16.msra.mxu0 %v2821
    %2835 = vmatprep.subr.bf16.mxu0 0
    %2836 = vmatpush1.bf16.msra.mxu0 %v2820
    %2837 = vmatprep.subr.bf16.mxu0 0
    %2838 = vmatpush1.bf16.msra.mxu0 %v2819
    %2839 = vmatprep.subr.bf16.mxu0 0
    %2840 = vmatpush1.bf16.msra.mxu0 %v2818
    %2841 = vmatprep.subr.bf16.mxu0 0
    %2842 = vmatpush1.bf16.msra.mxu0 %v2817
    %2843 = vmatprep.subr.bf16.mxu0 0
    %2844 = vmatpush1.bf16.msra.mxu0 %v2816
    %2845 = vmatprep.subr.bf16.mxu0 0
    %2846 = vmatpush1.bf16.msra.mxu0 %v2815
    %2847 = vmatprep.subr.bf16.mxu0 0
    %2848 = vmatpush2.bf16.msra.mxu0 0
    %2849 = vmatprep.subr.bf16.mxu0 0
    %2850 = vmatpush2.bf16.msra.mxu0 0
    %2851 = vmatprep.subr.bf16.mxu0 0
    %2852 = vmatpush2.bf16.msra.mxu0 0
    %2853 = vmatprep.subr.bf16.mxu0 0
    %2854 = vmatpush2.bf16.msra.mxu0 0
    %2855 = vmatprep.subr.bf16.mxu0 0
    %2856 = vmatpush2.bf16.msra.mxu0 0
    %2857 = vmatprep.subr.bf16.mxu0 0
    %2858 = vmatpush2.bf16.msra.mxu0 0
    %2859 = vmatprep.subr.bf16.mxu0 0
    %2860 = vmatpush2.bf16.msra.mxu0 0
    %2861 = vmatprep.subr.bf16.mxu0 0
    %2862 = vmatpush2.bf16.msra.mxu0 0
    %2863 = vmatprep.mubr.bf16.mxu0 0
    %2864 = vmatmul.mubr.bf16.gmra.mxu0 %v2760
    %v2865 = vpop.f32.mrf.mxu0
    %v2866 = vadd.f32 %v2782, %v2865
    %v2867 = vpop.f32.mrf.mxu0
    %v2868 = vpop.f32.mrf.mxu0
    %v2869 = vpop.f32.mrf.mxu0
    %2870 = vdwg.mxu0
    %v2871 = vld [vmem:[%s1] sm:$0x3]
    %v2872 = vmul.f32 %v2866, 0.5
    %v2873 = vmul.f32 %v2872, 1.442695
    %v2874 = vpow.pop %v2873
    %2876 = vrot.lane.b32.xlu0 %v2874, 112
    %v2877 = vpop.permute.xlu0 %2876
    %v2879 = vmul.f32 %v2871, %v2877
    %v2880 = vadd.f32 %v2866, %v2879
    %v2881 = vpack.c.bf16 %v2880, %v2880
    %v2882 = vld [vmem:[%s10] sm:$0xf]
    %v2883 = vld [vmem:[%s10 + $0x4] sm:$0xf]
    %v2884 = vld [vmem:[%s11] sm:$0x1]
    %v2885 = vunpack.c.l.bf16 %v2884
    %v2886 = vlaneseq
    %v2887 = vshrl.u32 %v2886, 7
    %v2888 = vsub.s32 0, %v2887
    %v2889 = vrot.slane %v2885, %v2888
    %v2892 = vunpack.c.l.b16 %v2882
    %v2893 = vunpack.c.l.b16 %v2883
    %v2894 = vpack.c.b16 %v2893, %v2892
    %vm2896 = vcmask 130048
    %v2898 = vsel %vm2896, %v2881, 0
    %2900 = vmatprep.subr.bf16.mxu0 0
    %2901 = vmatpush1.bf16.msra.mxu0 0
    %2902 = vmatprep.subr.bf16.mxu0 0
    %2903 = vmatpush1.bf16.msra.mxu0 0
    %2904 = vmatprep.subr.bf16.mxu0 0
    %2905 = vmatpush1.bf16.msra.mxu0 0
    %2906 = vmatprep.subr.bf16.mxu0 0
    %2907 = vmatpush1.bf16.msra.mxu0 0
    %2908 = vmatprep.subr.bf16.mxu0 0
    %2909 = vmatpush1.bf16.msra.mxu0 0
    %2910 = vmatprep.subr.bf16.mxu0 0
    %2911 = vmatpush1.bf16.msra.mxu0 0
    %2912 = vmatprep.subr.bf16.mxu0 0
    %2913 = vmatpush1.bf16.msra.mxu0 0
    %2914 = vmatprep.subr.bf16.mxu0 0
    %2915 = vmatpush1.bf16.msra.mxu0 %v2894
    %2916 = vmatprep.subr.bf16.mxu0 0
    %2917 = vmatpush2.bf16.msra.mxu0 0
    %2918 = vmatprep.subr.bf16.mxu0 0
    %2919 = vmatpush2.bf16.msra.mxu0 0
    %2920 = vmatprep.subr.bf16.mxu0 0
    %2921 = vmatpush2.bf16.msra.mxu0 0
    %2922 = vmatprep.subr.bf16.mxu0 0
    %2923 = vmatpush2.bf16.msra.mxu0 0
    %2924 = vmatprep.subr.bf16.mxu0 0
    %2925 = vmatpush2.bf16.msra.mxu0 0
    %2926 = vmatprep.subr.bf16.mxu0 0
    %2927 = vmatpush2.bf16.msra.mxu0 0
    %2928 = vmatprep.subr.bf16.mxu0 0
    %2929 = vmatpush2.bf16.msra.mxu0 0
    %2930 = vmatprep.subr.bf16.mxu0 0
    %2931 = vmatpush2.bf16.msra.mxu0 0
    %2932 = vmatprep.mubr.bf16.mxu0 0
    %2933 = vmatmul.mubr.bf16.gmra.mxu0 %v2898
    %v2934 = vpop.f32.mrf.mxu0
    %v2935 = vadd.f32 %v2889, %v2934
    %v2936 = vpop.f32.mrf.mxu0
    %v2937 = vpop.f32.mrf.mxu0
    %v2938 = vpop.f32.mrf.mxu0
    %2939 = vdwg.mxu0
    %v2940 = vpack.c.bf16 %v2935, %v2935
    %v2941 = vld [vmem:[#allocation6] sm:$0xff]
    %v2942 = vld [vmem:[#allocation6 + $0x8] sm:$0xff]
    %v2943 = vld [vmem:[#allocation6 + $0x10] sm:$0xff]
    %v2944 = vld [vmem:[#allocation6 + $0x18] sm:$0xff]
    %v2945 = vld [vmem:[#allocation6 + $0x20] sm:$0xff]
    %v2946 = vld [vmem:[#allocation6 + $0x28] sm:$0xff]
    %v2947 = vld [vmem:[#allocation6 + $0x30] sm:$0xff]
    %v2948 = vld [vmem:[#allocation6 + $0x38] sm:$0xff]
    %v2949 = vld [vmem:[#allocation6 + $0x40] sm:$0xff]
    %v2950 = vld [vmem:[#allocation6 + $0x48] sm:$0xff]
    %v2951 = vld [vmem:[#allocation6 + $0x50] sm:$0xff]
    %v2952 = vld [vmem:[#allocation6 + $0x58] sm:$0xff]
    %v2953 = vld [vmem:[#allocation6 + $0x60] sm:$0xff]
    %v2954 = vld [vmem:[#allocation6 + $0x68] sm:$0xff]
    %v2955 = vld [vmem:[#allocation6 + $0x70] sm:$0xff]
    %v2956 = vld [vmem:[#allocation6 + $0x78] sm:$0xff]
    %v2957 = vld [vmem:[%s13] sm:$0x3]
    %v2958 = vunpack.c.l.bf16 %v2957
    %v2960 = vlaneseq
    %v2961 = vshrl.u32 %v2960, 7
    %v2962 = vsub.s32 0, %v2961
    %v2963 = vrot.slane %v2958, %v2962
    %v2964 = vlaneseq
    %v2965 = vshrl.u32 %v2964, 7
    %v2966 = vsub.s32 2, %v2965
    %v2967 = vrot.slane %v2958, %v2966
    %v2970 = vlaneseq
    %v2971 = vshrl.u32 %v2970, 7
    %v2972 = vsub.s32 0, %v2971
    %v2973 = vrot.slane %v2963, %v2972
    %v2974 = vlaneseq
    %v2975 = vshrl.u32 %v2974, 7
    %v2976 = vsub.s32 0, %v2975
    %v2977 = vrot.slane %v2967, %v2976
    %v2994 = vunpack.c.l.b16 %v2941
    %v2995 = vunpack.c.h.b16 %v2941
    %v2996 = vunpack.c.l.b16 %v2942
    %v2997 = vunpack.c.h.b16 %v2942
    %v2998 = vunpack.c.l.b16 %v2943
    %v2999 = vunpack.c.h.b16 %v2943
    %v3000 = vunpack.c.l.b16 %v2944
    %v3001 = vunpack.c.h.b16 %v2944
    %v3002 = vunpack.c.l.b16 %v2945
    %v3003 = vunpack.c.h.b16 %v2945
    %v3004 = vunpack.c.l.b16 %v2946
    %v3005 = vunpack.c.h.b16 %v2946
    %v3006 = vunpack.c.l.b16 %v2947
    %v3007 = vunpack.c.h.b16 %v2947
    %v3008 = vunpack.c.l.b16 %v2948
    %v3009 = vunpack.c.h.b16 %v2948
    %v3010 = vunpack.c.l.b16 %v2949
    %v3011 = vunpack.c.h.b16 %v2949
    %v3012 = vunpack.c.l.b16 %v2950
    %v3013 = vunpack.c.h.b16 %v2950
    %v3014 = vunpack.c.l.b16 %v2951
    %v3015 = vunpack.c.h.b16 %v2951
    %v3016 = vunpack.c.l.b16 %v2952
    %v3017 = vunpack.c.h.b16 %v2952
    %v3018 = vunpack.c.l.b16 %v2953
    %v3019 = vunpack.c.h.b16 %v2953
    %v3020 = vunpack.c.l.b16 %v2954
    %v3021 = vunpack.c.h.b16 %v2954
    %v3022 = vunpack.c.l.b16 %v2955
    %v3023 = vunpack.c.h.b16 %v2955
    %v3024 = vunpack.c.l.b16 %v2956
    %v3025 = vunpack.c.h.b16 %v2956
    %v3026 = vpack.c.b16 %v2996, %v2994
    %v3027 = vpack.c.b16 %v2997, %v2995
    %v3028 = vpack.c.b16 %v3000, %v2998
    %v3029 = vpack.c.b16 %v3001, %v2999
    %v3030 = vpack.c.b16 %v3004, %v3002
    %v3031 = vpack.c.b16 %v3005, %v3003
    %v3032 = vpack.c.b16 %v3008, %v3006
    %v3033 = vpack.c.b16 %v3009, %v3007
    %v3034 = vpack.c.b16 %v3012, %v3010
    %v3035 = vpack.c.b16 %v3013, %v3011
    %v3036 = vpack.c.b16 %v3016, %v3014
    %v3037 = vpack.c.b16 %v3017, %v3015
    %v3038 = vpack.c.b16 %v3020, %v3018
    %v3039 = vpack.c.b16 %v3021, %v3019
    %v3040 = vpack.c.b16 %v3024, %v3022
    %v3041 = vpack.c.b16 %v3025, %v3023
    %3058 = vmatprep.subr.bf16.mxu0 %v3041
    %3059 = vmatpush1.bf16.msra.mxu0 %v3040
    %3060 = vmatprep.subr.bf16.mxu0 %v3039
    %3061 = vmatpush1.bf16.msra.mxu0 %v3038
    %3062 = vmatprep.subr.bf16.mxu0 %v3037
    %3063 = vmatpush1.bf16.msra.mxu0 %v3036
    %3064 = vmatprep.subr.bf16.mxu0 %v3035
    %3065 = vmatpush1.bf16.msra.mxu0 %v3034
    %3066 = vmatprep.subr.bf16.mxu0 %v3033
    %3067 = vmatpush1.bf16.msra.mxu0 %v3032
    %3068 = vmatprep.subr.bf16.mxu0 %v3031
    %3069 = vmatpush1.bf16.msra.mxu0 %v3030
    %3070 = vmatprep.subr.bf16.mxu0 %v3029
    %3071 = vmatpush1.bf16.msra.mxu0 %v3028
    %3072 = vmatprep.subr.bf16.mxu0 %v3027
    %3073 = vmatpush1.bf16.msra.mxu0 %v3026
    %3074 = vmatprep.subr.bf16.mxu0 0
    %3075 = vmatpush2.bf16.msra.mxu0 0
    %3076 = vmatprep.subr.bf16.mxu0 0
    %3077 = vmatpush2.bf16.msra.mxu0 0
    %3078 = vmatprep.subr.bf16.mxu0 0
    %3079 = vmatpush2.bf16.msra.mxu0 0
    %3080 = vmatprep.subr.bf16.mxu0 0
    %3081 = vmatpush2.bf16.msra.mxu0 0
    %3082 = vmatprep.subr.bf16.mxu0 0
    %3083 = vmatpush2.bf16.msra.mxu0 0
    %3084 = vmatprep.subr.bf16.mxu0 0
    %3085 = vmatpush2.bf16.msra.mxu0 0
    %3086 = vmatprep.subr.bf16.mxu0 0
    %3087 = vmatpush2.bf16.msra.mxu0 0
    %3088 = vmatprep.subr.bf16.mxu0 0
    %3089 = vmatpush2.bf16.msra.mxu0 0
    %3090 = vmatprep.mubr.bf16.mxu0 0
    %3091 = vmatmul.mubr.bf16.gmra.mxu0 %v2940
    %v3092 = vpop.f32.mrf.mxu0
    %v3093 = vadd.f32 %v2973, %v3092
    %v3094 = vpop.f32.mrf.mxu0
    %v3095 = vadd.f32 %v2977, %v3094
    %v3096 = vpop.f32.mrf.mxu0
    %v3097 = vpop.f32.mrf.mxu0
    %3098 = vdwg.mxu0
    %v3099 = vmax.f32 %v3093, 0.0
    %v3100 = vmax.f32 %v3095, 0.0
    %v3101 = vpack.c.bf16 %v3099, %v3099
    %v3102 = vpack.c.bf16 %v3100, %v3100
    %v3103 = vld [vmem:[#allocation7] sm:$0xff]
    %v3104 = vld [vmem:[#allocation7 + $0x8] sm:$0xff]
    %v3105 = vld [vmem:[#allocation7 + $0x10] sm:$0xff]
    %v3106 = vld [vmem:[#allocation7 + $0x18] sm:$0xff]
    %v3107 = vld [vmem:[#allocation7 + $0x20] sm:$0xff]
    %v3108 = vld [vmem:[#allocation7 + $0x28] sm:$0xff]
    %v3109 = vld [vmem:[#allocation7 + $0x30] sm:$0xff]
    %v3110 = vld [vmem:[#allocation7 + $0x38] sm:$0xff]
    %v3111 = vld [vmem:[#allocation7 + $0x40] sm:$0xff]
    %v3112 = vld [vmem:[#allocation7 + $0x48] sm:$0xff]
    %v3113 = vld [vmem:[#allocation7 + $0x50] sm:$0xff]
    %v3114 = vld [vmem:[#allocation7 + $0x58] sm:$0xff]
    %v3115 = vld [vmem:[#allocation7 + $0x60] sm:$0xff]
    %v3116 = vld [vmem:[#allocation7 + $0x68] sm:$0xff]
    %v3117 = vld [vmem:[#allocation7 + $0x70] sm:$0xff]
    %v3118 = vld [vmem:[#allocation7 + $0x78] sm:$0xff]
    %v3119 = vld [vmem:[#allocation7 + $0x80] sm:$0xff]
    %v3120 = vld [vmem:[#allocation7 + $0x88] sm:$0xff]
    %v3121 = vld [vmem:[#allocation7 + $0x90] sm:$0xff]
    %v3122 = vld [vmem:[#allocation7 + $0x98] sm:$0xff]
    %v3123 = vld [vmem:[#allocation7 + $0xa0] sm:$0xff]
    %v3124 = vld [vmem:[#allocation7 + $0xa8] sm:$0xff]
    %v3125 = vld [vmem:[#allocation7 + $0xb0] sm:$0xff]
    %v3126 = vld [vmem:[#allocation7 + $0xb8] sm:$0xff]
    %v3127 = vld [vmem:[#allocation7 + $0xc0] sm:$0xff]
    %v3128 = vld [vmem:[#allocation7 + $0xc8] sm:$0xff]
    %v3129 = vld [vmem:[#allocation7 + $0xd0] sm:$0xff]
    %v3130 = vld [vmem:[#allocation7 + $0xd8] sm:$0xff]
    %v3131 = vld [vmem:[#allocation7 + $0xe0] sm:$0xff]
    %v3132 = vld [vmem:[#allocation7 + $0xe8] sm:$0xff]
    %v3133 = vld [vmem:[#allocation7 + $0xf0] sm:$0xff]
    %v3134 = vld [vmem:[#allocation7 + $0xf8] sm:$0xff]
    %v3135 = vld [vmem:[#allocation7 + $0x100] sm:$0xff]
    %v3136 = vld [vmem:[#allocation7 + $0x108] sm:$0xff]
    %v3137 = vld [vmem:[#allocation7 + $0x110] sm:$0xff]
    %v3138 = vld [vmem:[#allocation7 + $0x118] sm:$0xff]
    %v3139 = vld [vmem:[#allocation7 + $0x120] sm:$0xff]
    %v3140 = vld [vmem:[#allocation7 + $0x128] sm:$0xff]
    %v3141 = vld [vmem:[#allocation7 + $0x130] sm:$0xff]
    %v3142 = vld [vmem:[#allocation7 + $0x138] sm:$0xff]
    %v3143 = vld [vmem:[#allocation7 + $0x140] sm:$0xff]
    %v3144 = vld [vmem:[#allocation7 + $0x148] sm:$0xff]
    %v3145 = vld [vmem:[#allocation7 + $0x150] sm:$0xff]
    %v3146 = vld [vmem:[#allocation7 + $0x158] sm:$0xff]
    %v3147 = vld [vmem:[#allocation7 + $0x160] sm:$0xff]
    %v3148 = vld [vmem:[#allocation7 + $0x168] sm:$0xff]
    %v3149 = vld [vmem:[#allocation7 + $0x170] sm:$0xff]
    %v3150 = vld [vmem:[#allocation7 + $0x178] sm:$0xff]
    %v3151 = vld [vmem:[#allocation7 + $0x180] sm:$0xff]
    %v3152 = vld [vmem:[#allocation7 + $0x188] sm:$0xff]
    %v3153 = vld [vmem:[#allocation7 + $0x190] sm:$0xff]
    %v3154 = vld [vmem:[#allocation7 + $0x198] sm:$0xff]
    %v3155 = vld [vmem:[#allocation7 + $0x1a0] sm:$0xff]
    %v3156 = vld [vmem:[#allocation7 + $0x1a8] sm:$0xff]
    %v3157 = vld [vmem:[#allocation7 + $0x1b0] sm:$0xff]
    %v3158 = vld [vmem:[#allocation7 + $0x1b8] sm:$0xff]
    %v3159 = vld [vmem:[#allocation7 + $0x1c0] sm:$0xff]
    %v3160 = vld [vmem:[#allocation7 + $0x1c8] sm:$0xff]
    %v3161 = vld [vmem:[#allocation7 + $0x1d0] sm:$0xff]
    %v3162 = vld [vmem:[#allocation7 + $0x1d8] sm:$0xff]
    %v3163 = vld [vmem:[#allocation7 + $0x1e0] sm:$0xff]
    %v3164 = vld [vmem:[#allocation7 + $0x1e8] sm:$0xff]
    %v3165 = vld [vmem:[#allocation7 + $0x1f0] sm:$0xff]
    %v3166 = vld [vmem:[#allocation7 + $0x1f8] sm:$0xff]
    %v3167 = vld [vmem:[%s15] sm:$0xf]
    %v3168 = vunpack.c.l.bf16 %v3167
    %v3170 = vlaneseq
    %v3171 = vshrl.u32 %v3170, 7
    %v3172 = vsub.s32 0, %v3171
    %v3173 = vrot.slane %v3168, %v3172
    %v3174 = vlaneseq
    %v3175 = vshrl.u32 %v3174, 7
    %v3176 = vsub.s32 2, %v3175
    %v3177 = vrot.slane %v3168, %v3176
    %v3178 = vlaneseq
    %v3179 = vshrl.u32 %v3178, 7
    %v3180 = vsub.s32 4, %v3179
    %v3181 = vrot.slane %v3168, %v3180
    %v3182 = vlaneseq
    %v3183 = vshrl.u32 %v3182, 7
    %v3184 = vsub.s32 6, %v3183
    %v3185 = vrot.slane %v3168, %v3184
    %v3190 = vlaneseq
    %v3191 = vshrl.u32 %v3190, 7
    %v3192 = vsub.s32 0, %v3191
    %v3193 = vrot.slane %v3173, %v3192
    %v3194 = vlaneseq
    %v3195 = vshrl.u32 %v3194, 7
    %v3196 = vsub.s32 0, %v3195
    %v3197 = vrot.slane %v3177, %v3196
    %v3198 = vlaneseq
    %v3199 = vshrl.u32 %v3198, 7
    %v3200 = vsub.s32 0, %v3199
    %v3201 = vrot.slane %v3181, %v3200
    %v3202 = vlaneseq
    %v3203 = vshrl.u32 %v3202, 7
    %v3204 = vsub.s32 0, %v3203
    %v3205 = vrot.slane %v3185, %v3204
    %v3270 = vunpack.c.l.b16 %v3103
    %v3271 = vunpack.c.h.b16 %v3103
    %v3272 = vunpack.c.l.b16 %v3104
    %v3273 = vunpack.c.h.b16 %v3104
    %v3274 = vunpack.c.l.b16 %v3105
    %v3275 = vunpack.c.h.b16 %v3105
    %v3276 = vunpack.c.l.b16 %v3106
    %v3277 = vunpack.c.h.b16 %v3106
    %v3278 = vunpack.c.l.b16 %v3107
    %v3279 = vunpack.c.h.b16 %v3107
    %v3280 = vunpack.c.l.b16 %v3108
    %v3281 = vunpack.c.h.b16 %v3108
    %v3282 = vunpack.c.l.b16 %v3109
    %v3283 = vunpack.c.h.b16 %v3109
    %v3284 = vunpack.c.l.b16 %v3110
    %v3285 = vunpack.c.h.b16 %v3110
    %v3286 = vunpack.c.l.b16 %v3111
    %v3287 = vunpack.c.h.b16 %v3111
    %v3288 = vunpack.c.l.b16 %v3112
    %v3289 = vunpack.c.h.b16 %v3112
    %v3290 = vunpack.c.l.b16 %v3113
    %v3291 = vunpack.c.h.b16 %v3113
    %v3292 = vunpack.c.l.b16 %v3114
    %v3293 = vunpack.c.h.b16 %v3114
    %v3294 = vunpack.c.l.b16 %v3115
    %v3295 = vunpack.c.h.b16 %v3115
    %v3296 = vunpack.c.l.b16 %v3116
    %v3297 = vunpack.c.h.b16 %v3116
    %v3298 = vunpack.c.l.b16 %v3117
    %v3299 = vunpack.c.h.b16 %v3117
    %v3300 = vunpack.c.l.b16 %v3118
    %v3301 = vunpack.c.h.b16 %v3118
    %v3302 = vunpack.c.l.b16 %v3119
    %v3303 = vunpack.c.h.b16 %v3119
    %v3304 = vunpack.c.l.b16 %v3120
    %v3305 = vunpack.c.h.b16 %v3120
    %v3306 = vunpack.c.l.b16 %v3121
    %v3307 = vunpack.c.h.b16 %v3121
    %v3308 = vunpack.c.l.b16 %v3122
    %v3309 = vunpack.c.h.b16 %v3122
    %v3310 = vunpack.c.l.b16 %v3123
    %v3311 = vunpack.c.h.b16 %v3123
    %v3312 = vunpack.c.l.b16 %v3124
    %v3313 = vunpack.c.h.b16 %v3124
    %v3314 = vunpack.c.l.b16 %v3125
    %v3315 = vunpack.c.h.b16 %v3125
    %v3316 = vunpack.c.l.b16 %v3126
    %v3317 = vunpack.c.h.b16 %v3126
    %v3318 = vunpack.c.l.b16 %v3127
    %v3319 = vunpack.c.h.b16 %v3127
    %v3320 = vunpack.c.l.b16 %v3128
    %v3321 = vunpack.c.h.b16 %v3128
    %v3322 = vunpack.c.l.b16 %v3129
    %v3323 = vunpack.c.h.b16 %v3129
    %v3324 = vunpack.c.l.b16 %v3130
    %v3325 = vunpack.c.h.b16 %v3130
    %v3326 = vunpack.c.l.b16 %v3131
    %v3327 = vunpack.c.h.b16 %v3131
    %v3328 = vunpack.c.l.b16 %v3132
    %v3329 = vunpack.c.h.b16 %v3132
    %v3330 = vunpack.c.l.b16 %v3133
    %v3331 = vunpack.c.h.b16 %v3133
    %v3332 = vunpack.c.l.b16 %v3134
    %v3333 = vunpack.c.h.b16 %v3134
    %v3334 = vunpack.c.l.b16 %v3135
    %v3335 = vunpack.c.h.b16 %v3135
    %v3336 = vunpack.c.l.b16 %v3136
    %v3337 = vunpack.c.h.b16 %v3136
    %v3338 = vunpack.c.l.b16 %v3137
    %v3339 = vunpack.c.h.b16 %v3137
    %v3340 = vunpack.c.l.b16 %v3138
    %v3341 = vunpack.c.h.b16 %v3138
    %v3342 = vunpack.c.l.b16 %v3139
    %v3343 = vunpack.c.h.b16 %v3139
    %v3344 = vunpack.c.l.b16 %v3140
    %v3345 = vunpack.c.h.b16 %v3140
    %v3346 = vunpack.c.l.b16 %v3141
    %v3347 = vunpack.c.h.b16 %v3141
    %v3348 = vunpack.c.l.b16 %v3142
    %v3349 = vunpack.c.h.b16 %v3142
    %v3350 = vunpack.c.l.b16 %v3143
    %v3351 = vunpack.c.h.b16 %v3143
    %v3352 = vunpack.c.l.b16 %v3144
    %v3353 = vunpack.c.h.b16 %v3144
    %v3354 = vunpack.c.l.b16 %v3145
    %v3355 = vunpack.c.h.b16 %v3145
    %v3356 = vunpack.c.l.b16 %v3146
    %v3357 = vunpack.c.h.b16 %v3146
    %v3358 = vunpack.c.l.b16 %v3147
    %v3359 = vunpack.c.h.b16 %v3147
    %v3360 = vunpack.c.l.b16 %v3148
    %v3361 = vunpack.c.h.b16 %v3148
    %v3362 = vunpack.c.l.b16 %v3149
    %v3363 = vunpack.c.h.b16 %v3149
    %v3364 = vunpack.c.l.b16 %v3150
    %v3365 = vunpack.c.h.b16 %v3150
    %v3366 = vunpack.c.l.b16 %v3151
    %v3367 = vunpack.c.h.b16 %v3151
    %v3368 = vunpack.c.l.b16 %v3152
    %v3369 = vunpack.c.h.b16 %v3152
    %v3370 = vunpack.c.l.b16 %v3153
    %v3371 = vunpack.c.h.b16 %v3153
    %v3372 = vunpack.c.l.b16 %v3154
    %v3373 = vunpack.c.h.b16 %v3154
    %v3374 = vunpack.c.l.b16 %v3155
    %v3375 = vunpack.c.h.b16 %v3155
    %v3376 = vunpack.c.l.b16 %v3156
    %v3377 = vunpack.c.h.b16 %v3156
    %v3378 = vunpack.c.l.b16 %v3157
    %v3379 = vunpack.c.h.b16 %v3157
    %v3380 = vunpack.c.l.b16 %v3158
    %v3381 = vunpack.c.h.b16 %v3158
    %v3382 = vunpack.c.l.b16 %v3159
    %v3383 = vunpack.c.h.b16 %v3159
    %v3384 = vunpack.c.l.b16 %v3160
    %v3385 = vunpack.c.h.b16 %v3160
    %v3386 = vunpack.c.l.b16 %v3161
    %v3387 = vunpack.c.h.b16 %v3161
    %v3388 = vunpack.c.l.b16 %v3162
    %v3389 = vunpack.c.h.b16 %v3162
    %v3390 = vunpack.c.l.b16 %v3163
    %v3391 = vunpack.c.h.b16 %v3163
    %v3392 = vunpack.c.l.b16 %v3164
    %v3393 = vunpack.c.h.b16 %v3164
    %v3394 = vunpack.c.l.b16 %v3165
    %v3395 = vunpack.c.h.b16 %v3165
    %v3396 = vunpack.c.l.b16 %v3166
    %v3397 = vunpack.c.h.b16 %v3166
    %v3398 = vpack.c.b16 %v3274, %v3270
    %v3399 = vpack.c.b16 %v3275, %v3271
    %v3400 = vpack.c.b16 %v3276, %v3272
    %v3401 = vpack.c.b16 %v3277, %v3273
    %v3402 = vpack.c.b16 %v3282, %v3278
    %v3403 = vpack.c.b16 %v3283, %v3279
    %v3404 = vpack.c.b16 %v3284, %v3280
    %v3405 = vpack.c.b16 %v3285, %v3281
    %v3406 = vpack.c.b16 %v3290, %v3286
    %v3407 = vpack.c.b16 %v3291, %v3287
    %v3408 = vpack.c.b16 %v3292, %v3288
    %v3409 = vpack.c.b16 %v3293, %v3289
    %v3410 = vpack.c.b16 %v3298, %v3294
    %v3411 = vpack.c.b16 %v3299, %v3295
    %v3412 = vpack.c.b16 %v3300, %v3296
    %v3413 = vpack.c.b16 %v3301, %v3297
    %v3414 = vpack.c.b16 %v3306, %v3302
    %v3415 = vpack.c.b16 %v3307, %v3303
    %v3416 = vpack.c.b16 %v3308, %v3304
    %v3417 = vpack.c.b16 %v3309, %v3305
    %v3418 = vpack.c.b16 %v3314, %v3310
    %v3419 = vpack.c.b16 %v3315, %v3311
    %v3420 = vpack.c.b16 %v3316, %v3312
    %v3421 = vpack.c.b16 %v3317, %v3313
    %v3422 = vpack.c.b16 %v3322, %v3318
    %v3423 = vpack.c.b16 %v3323, %v3319
    %v3424 = vpack.c.b16 %v3324, %v3320
    %v3425 = vpack.c.b16 %v3325, %v3321
    %v3426 = vpack.c.b16 %v3330, %v3326
    %v3427 = vpack.c.b16 %v3331, %v3327
    %v3428 = vpack.c.b16 %v3332, %v3328
    %v3429 = vpack.c.b16 %v3333, %v3329
    %v3430 = vpack.c.b16 %v3338, %v3334
    %v3431 = vpack.c.b16 %v3339, %v3335
    %v3432 = vpack.c.b16 %v3340, %v3336
    %v3433 = vpack.c.b16 %v3341, %v3337
    %v3434 = vpack.c.b16 %v3346, %v3342
    %v3435 = vpack.c.b16 %v3347, %v3343
    %v3436 = vpack.c.b16 %v3348, %v3344
    %v3437 = vpack.c.b16 %v3349, %v3345
    %v3438 = vpack.c.b16 %v3354, %v3350
    %v3439 = vpack.c.b16 %v3355, %v3351
    %v3440 = vpack.c.b16 %v3356, %v3352
    %v3441 = vpack.c.b16 %v3357, %v3353
    %v3442 = vpack.c.b16 %v3362, %v3358
    %v3443 = vpack.c.b16 %v3363, %v3359
    %v3444 = vpack.c.b16 %v3364, %v3360
    %v3445 = vpack.c.b16 %v3365, %v3361
    %v3446 = vpack.c.b16 %v3370, %v3366
    %v3447 = vpack.c.b16 %v3371, %v3367
    %v3448 = vpack.c.b16 %v3372, %v3368
    %v3449 = vpack.c.b16 %v3373, %v3369
    %v3450 = vpack.c.b16 %v3378, %v3374
    %v3451 = vpack.c.b16 %v3379, %v3375
    %v3452 = vpack.c.b16 %v3380, %v3376
    %v3453 = vpack.c.b16 %v3381, %v3377
    %v3454 = vpack.c.b16 %v3386, %v3382
    %v3455 = vpack.c.b16 %v3387, %v3383
    %v3456 = vpack.c.b16 %v3388, %v3384
    %v3457 = vpack.c.b16 %v3389, %v3385
    %v3458 = vpack.c.b16 %v3394, %v3390
    %v3459 = vpack.c.b16 %v3395, %v3391
    %v3460 = vpack.c.b16 %v3396, %v3392
    %v3461 = vpack.c.b16 %v3397, %v3393
    %3526 = vmatprep.subr.bf16.mxu0 %v3427
    %3527 = vmatpush1.bf16.msra.mxu0 %v3426
    %3528 = vmatprep.subr.bf16.mxu0 %v3423
    %3529 = vmatpush1.bf16.msra.mxu0 %v3422
    %3530 = vmatprep.subr.bf16.mxu0 %v3419
    %3531 = vmatpush1.bf16.msra.mxu0 %v3418
    %3532 = vmatprep.subr.bf16.mxu0 %v3415
    %3533 = vmatpush1.bf16.msra.mxu0 %v3414
    %3534 = vmatprep.subr.bf16.mxu0 %v3411
    %3535 = vmatpush1.bf16.msra.mxu0 %v3410
    %3536 = vmatprep.subr.bf16.mxu0 %v3407
    %3537 = vmatpush1.bf16.msra.mxu0 %v3406
    %3538 = vmatprep.subr.bf16.mxu0 %v3403
    %3539 = vmatpush1.bf16.msra.mxu0 %v3402
    %3540 = vmatprep.subr.bf16.mxu0 %v3399
    %3541 = vmatpush1.bf16.msra.mxu0 %v3398
    %3542 = vmatprep.subr.bf16.mxu0 %v3459
    %3543 = vmatpush2.bf16.msra.mxu0 %v3458
    %3544 = vmatprep.subr.bf16.mxu0 %v3455
    %3545 = vmatpush2.bf16.msra.mxu0 %v3454
    %3546 = vmatprep.subr.bf16.mxu0 %v3451
    %3547 = vmatpush2.bf16.msra.mxu0 %v3450
    %3548 = vmatprep.subr.bf16.mxu0 %v3447
    %3549 = vmatpush2.bf16.msra.mxu0 %v3446
    %3550 = vmatprep.subr.bf16.mxu0 %v3443
    %3551 = vmatpush2.bf16.msra.mxu0 %v3442
    %3552 = vmatprep.subr.bf16.mxu0 %v3439
    %3553 = vmatpush2.bf16.msra.mxu0 %v3438
    %3554 = vmatprep.subr.bf16.mxu0 %v3435
    %3555 = vmatpush2.bf16.msra.mxu0 %v3434
    %3556 = vmatprep.subr.bf16.mxu0 %v3431
    %3557 = vmatpush2.bf16.msra.mxu0 %v3430
    %3558 = vmatprep.mubr.bf16.mxu0 %v3102
    %3559 = vmatmul.mubr.bf16.gmra.mxu0 %v3101
    %v3560 = vpop.f32.mrf.mxu0
    %v3561 = vadd.f32 %v3193, %v3560
    %v3562 = vpop.f32.mrf.mxu0
    %v3563 = vadd.f32 %v3197, %v3562
    %v3564 = vpop.f32.mrf.mxu0
    %v3565 = vpop.f32.mrf.mxu0
    %3566 = vdwg.mxu0
    %3567 = vmatprep.subr.bf16.mxu0 %v3429
    %3568 = vmatpush1.bf16.msra.mxu0 %v3428
    %3569 = vmatprep.subr.bf16.mxu0 %v3425
    %3570 = vmatpush1.bf16.msra.mxu0 %v3424
    %3571 = vmatprep.subr.bf16.mxu0 %v3421
    %3572 = vmatpush1.bf16.msra.mxu0 %v3420
    %3573 = vmatprep.subr.bf16.mxu0 %v3417
    %3574 = vmatpush1.bf16.msra.mxu0 %v3416
    %3575 = vmatprep.subr.bf16.mxu0 %v3413
    %3576 = vmatpush1.bf16.msra.mxu0 %v3412
    %3577 = vmatprep.subr.bf16.mxu0 %v3409
    %3578 = vmatpush1.bf16.msra.mxu0 %v3408
    %3579 = vmatprep.subr.bf16.mxu0 %v3405
    %3580 = vmatpush1.bf16.msra.mxu0 %v3404
    %3581 = vmatprep.subr.bf16.mxu0 %v3401
    %3582 = vmatpush1.bf16.msra.mxu0 %v3400
    %3583 = vmatprep.subr.bf16.mxu0 %v3461
    %3584 = vmatpush2.bf16.msra.mxu0 %v3460
    %3585 = vmatprep.subr.bf16.mxu0 %v3457
    %3586 = vmatpush2.bf16.msra.mxu0 %v3456
    %3587 = vmatprep.subr.bf16.mxu0 %v3453
    %3588 = vmatpush2.bf16.msra.mxu0 %v3452
    %3589 = vmatprep.subr.bf16.mxu0 %v3449
    %3590 = vmatpush2.bf16.msra.mxu0 %v3448
    %3591 = vmatprep.subr.bf16.mxu0 %v3445
    %3592 = vmatpush2.bf16.msra.mxu0 %v3444
    %3593 = vmatprep.subr.bf16.mxu0 %v3441
    %3594 = vmatpush2.bf16.msra.mxu0 %v3440
    %3595 = vmatprep.subr.bf16.mxu0 %v3437
    %3596 = vmatpush2.bf16.msra.mxu0 %v3436
    %3597 = vmatprep.subr.bf16.mxu0 %v3433
    %3598 = vmatpush2.bf16.msra.mxu0 %v3432
    %3599 = vmatprep.mubr.bf16.mxu0 %v3102
    %3600 = vmatmul.mubr.bf16.gmra.mxu0 %v3101
    %v3601 = vpop.f32.mrf.mxu0
    %v3602 = vadd.f32 %v3201, %v3601
    %v3603 = vpop.f32.mrf.mxu0
    %v3604 = vadd.f32 %v3205, %v3603
    %v3605 = vpop.f32.mrf.mxu0
    %v3606 = vpop.f32.mrf.mxu0
    %3607 = vdwg.mxu0
    %v3608 = vmax.f32 %v3561, 0.0
    %v3609 = vmax.f32 %v3563, 0.0
    %v3610 = vmax.f32 %v3602, 0.0
    %v3611 = vmax.f32 %v3604, 0.0
    %v3612 = vpack.c.bf16 %v3608, %v3608
    %v3613 = vpack.c.bf16 %v3609, %v3609
    %v3614 = vpack.c.bf16 %v3610, %v3610
    %v3615 = vpack.c.bf16 %v3611, %v3611
    %v3616 = vld [vmem:[#allocation9] sm:$0xff]
    %v3617 = vld [vmem:[#allocation9 + $0x8] sm:$0xff]
    %v3618 = vld [vmem:[#allocation9 + $0x10] sm:$0xff]
    %v3619 = vld [vmem:[#allocation9 + $0x18] sm:$0xff]
    %v3620 = vld [vmem:[#allocation9 + $0x20] sm:$0xff]
    %v3621 = vld [vmem:[#allocation9 + $0x28] sm:$0xff]
    %v3622 = vld [vmem:[#allocation9 + $0x30] sm:$0xff]
    %v3623 = vld [vmem:[#allocation9 + $0x38] sm:$0xff]
    %v3624 = vld [vmem:[#allocation9 + $0x40] sm:$0xff]
    %v3625 = vld [vmem:[#allocation9 + $0x48] sm:$0xff]
    %v3626 = vld [vmem:[#allocation9 + $0x50] sm:$0xff]
    %v3627 = vld [vmem:[#allocation9 + $0x58] sm:$0xff]
    %v3628 = vld [vmem:[#allocation9 + $0x60] sm:$0xff]
    %v3629 = vld [vmem:[#allocation9 + $0x68] sm:$0xff]
    %v3630 = vld [vmem:[#allocation9 + $0x70] sm:$0xff]
    %v3631 = vld [vmem:[#allocation9 + $0x78] sm:$0xff]
    %v3632 = vld [vmem:[#allocation9 + $0x80] sm:$0xff]
    %v3633 = vld [vmem:[#allocation9 + $0x88] sm:$0xff]
    %v3634 = vld [vmem:[#allocation9 + $0x90] sm:$0xff]
    %v3635 = vld [vmem:[#allocation9 + $0x98] sm:$0xff]
    %v3636 = vld [vmem:[#allocation9 + $0xa0] sm:$0xff]
    %v3637 = vld [vmem:[#allocation9 + $0xa8] sm:$0xff]
    %v3638 = vld [vmem:[#allocation9 + $0xb0] sm:$0xff]
    %v3639 = vld [vmem:[#allocation9 + $0xb8] sm:$0xff]
    %v3640 = vld [vmem:[#allocation9 + $0xc0] sm:$0xff]
    %v3641 = vld [vmem:[#allocation9 + $0xc8] sm:$0xff]
    %v3642 = vld [vmem:[#allocation9 + $0xd0] sm:$0xff]
    %v3643 = vld [vmem:[#allocation9 + $0xd8] sm:$0xff]
    %v3644 = vld [vmem:[#allocation9 + $0xe0] sm:$0xff]
    %v3645 = vld [vmem:[#allocation9 + $0xe8] sm:$0xff]
    %v3646 = vld [vmem:[#allocation9 + $0xf0] sm:$0xff]
    %v3647 = vld [vmem:[#allocation9 + $0xf8] sm:$0xff]
    %v3648 = vld [vmem:[#allocation9 + $0x100] sm:$0xff]
    %v3649 = vld [vmem:[#allocation9 + $0x108] sm:$0xff]
    %v3650 = vld [vmem:[#allocation9 + $0x110] sm:$0xff]
    %v3651 = vld [vmem:[#allocation9 + $0x118] sm:$0xff]
    %v3652 = vld [vmem:[#allocation9 + $0x120] sm:$0xff]
    %v3653 = vld [vmem:[#allocation9 + $0x128] sm:$0xff]
    %v3654 = vld [vmem:[#allocation9 + $0x130] sm:$0xff]
    %v3655 = vld [vmem:[#allocation9 + $0x138] sm:$0xff]
    %v3656 = vld [vmem:[#allocation9 + $0x140] sm:$0xff]
    %v3657 = vld [vmem:[#allocation9 + $0x148] sm:$0xff]
    %v3658 = vld [vmem:[#allocation9 + $0x150] sm:$0xff]
    %v3659 = vld [vmem:[#allocation9 + $0x158] sm:$0xff]
    %v3660 = vld [vmem:[#allocation9 + $0x160] sm:$0xff]
    %v3661 = vld [vmem:[#allocation9 + $0x168] sm:$0xff]
    %v3662 = vld [vmem:[#allocation9 + $0x170] sm:$0xff]
    %v3663 = vld [vmem:[#allocation9 + $0x178] sm:$0xff]
    %v3664 = vld [vmem:[#allocation9 + $0x180] sm:$0xff]
    %v3665 = vld [vmem:[#allocation9 + $0x188] sm:$0xff]
    %v3666 = vld [vmem:[#allocation9 + $0x190] sm:$0xff]
    %v3667 = vld [vmem:[#allocation9 + $0x198] sm:$0xff]
    %v3668 = vld [vmem:[#allocation9 + $0x1a0] sm:$0xff]
    %v3669 = vld [vmem:[#allocation9 + $0x1a8] sm:$0xff]
    %v3670 = vld [vmem:[#allocation9 + $0x1b0] sm:$0xff]
    %v3671 = vld [vmem:[#allocation9 + $0x1b8] sm:$0xff]
    %v3672 = vld [vmem:[#allocation9 + $0x1c0] sm:$0xff]
    %v3673 = vld [vmem:[#allocation9 + $0x1c8] sm:$0xff]
    %v3674 = vld [vmem:[#allocation9 + $0x1d0] sm:$0xff]
    %v3675 = vld [vmem:[#allocation9 + $0x1d8] sm:$0xff]
    %v3676 = vld [vmem:[#allocation9 + $0x1e0] sm:$0xff]
    %v3677 = vld [vmem:[#allocation9 + $0x1e8] sm:$0xff]
    %v3678 = vld [vmem:[#allocation9 + $0x1f0] sm:$0xff]
    %v3679 = vld [vmem:[#allocation9 + $0x1f8] sm:$0xff]
    %v3680 = vld [vmem:[#allocation9 + $0x200] sm:$0xff]
    %v3681 = vld [vmem:[#allocation9 + $0x208] sm:$0xff]
    %v3682 = vld [vmem:[#allocation9 + $0x210] sm:$0xff]
    %v3683 = vld [vmem:[#allocation9 + $0x218] sm:$0xff]
    %v3684 = vld [vmem:[#allocation9 + $0x220] sm:$0xff]
    %v3685 = vld [vmem:[#allocation9 + $0x228] sm:$0xff]
    %v3686 = vld [vmem:[#allocation9 + $0x230] sm:$0xff]
    %v3687 = vld [vmem:[#allocation9 + $0x238] sm:$0xff]
    %v3688 = vld [vmem:[#allocation9 + $0x240] sm:$0xff]
    %v3689 = vld [vmem:[#allocation9 + $0x248] sm:$0xff]
    %v3690 = vld [vmem:[#allocation9 + $0x250] sm:$0xff]
    %v3691 = vld [vmem:[#allocation9 + $0x258] sm:$0xff]
    %v3692 = vld [vmem:[#allocation9 + $0x260] sm:$0xff]
    %v3693 = vld [vmem:[#allocation9 + $0x268] sm:$0xff]
    %v3694 = vld [vmem:[#allocation9 + $0x270] sm:$0xff]
    %v3695 = vld [vmem:[#allocation9 + $0x278] sm:$0xff]
    %v3696 = vld [vmem:[#allocation9 + $0x280] sm:$0xff]
    %v3697 = vld [vmem:[#allocation9 + $0x288] sm:$0xff]
    %v3698 = vld [vmem:[#allocation9 + $0x290] sm:$0xff]
    %v3699 = vld [vmem:[#allocation9 + $0x298] sm:$0xff]
    %v3700 = vld [vmem:[#allocation9 + $0x2a0] sm:$0xff]
    %v3701 = vld [vmem:[#allocation9 + $0x2a8] sm:$0xff]
    %v3702 = vld [vmem:[#allocation9 + $0x2b0] sm:$0xff]
    %v3703 = vld [vmem:[#allocation9 + $0x2b8] sm:$0xff]
    %v3704 = vld [vmem:[#allocation9 + $0x2c0] sm:$0xff]
    %v3705 = vld [vmem:[#allocation9 + $0x2c8] sm:$0xff]
    %v3706 = vld [vmem:[#allocation9 + $0x2d0] sm:$0xff]
    %v3707 = vld [vmem:[#allocation9 + $0x2d8] sm:$0xff]
    %v3708 = vld [vmem:[#allocation9 + $0x2e0] sm:$0xff]
    %v3709 = vld [vmem:[#allocation9 + $0x2e8] sm:$0xff]
    %v3710 = vld [vmem:[#allocation9 + $0x2f0] sm:$0xff]
    %v3711 = vld [vmem:[#allocation9 + $0x2f8] sm:$0xff]
    %v3712 = vld [vmem:[#allocation9 + $0x300] sm:$0xff]
    %v3713 = vld [vmem:[#allocation9 + $0x308] sm:$0xff]
    %v3714 = vld [vmem:[#allocation9 + $0x310] sm:$0xff]
    %v3715 = vld [vmem:[#allocation9 + $0x318] sm:$0xff]
    %v3716 = vld [vmem:[#allocation9 + $0x320] sm:$0xff]
    %v3717 = vld [vmem:[#allocation9 + $0x328] sm:$0xff]
    %v3718 = vld [vmem:[#allocation9 + $0x330] sm:$0xff]
    %v3719 = vld [vmem:[#allocation9 + $0x338] sm:$0xff]
    %v3720 = vld [vmem:[#allocation9 + $0x340] sm:$0xff]
    %v3721 = vld [vmem:[#allocation9 + $0x348] sm:$0xff]
    %v3722 = vld [vmem:[#allocation9 + $0x350] sm:$0xff]
    %v3723 = vld [vmem:[#allocation9 + $0x358] sm:$0xff]
    %v3724 = vld [vmem:[#allocation9 + $0x360] sm:$0xff]
    %v3725 = vld [vmem:[#allocation9 + $0x368] sm:$0xff]
    %v3726 = vld [vmem:[#allocation9 + $0x370] sm:$0xff]
    %v3727 = vld [vmem:[#allocation9 + $0x378] sm:$0xff]
    %v3728 = vld [vmem:[#allocation9 + $0x380] sm:$0xff]
    %v3729 = vld [vmem:[#allocation9 + $0x388] sm:$0xff]
    %v3730 = vld [vmem:[#allocation9 + $0x390] sm:$0xff]
    %v3731 = vld [vmem:[#allocation9 + $0x398] sm:$0xff]
    %v3732 = vld [vmem:[#allocation9 + $0x3a0] sm:$0xff]
    %v3733 = vld [vmem:[#allocation9 + $0x3a8] sm:$0xff]
    %v3734 = vld [vmem:[#allocation9 + $0x3b0] sm:$0xff]
    %v3735 = vld [vmem:[#allocation9 + $0x3b8] sm:$0xff]
    %v3736 = vld [vmem:[#allocation9 + $0x3c0] sm:$0xff]
    %v3737 = vld [vmem:[#allocation9 + $0x3c8] sm:$0xff]
    %v3738 = vld [vmem:[#allocation9 + $0x3d0] sm:$0xff]
    %v3739 = vld [vmem:[#allocation9 + $0x3d8] sm:$0xff]
    %v3740 = vld [vmem:[#allocation9 + $0x3e0] sm:$0xff]
    %v3741 = vld [vmem:[#allocation9 + $0x3e8] sm:$0xff]
    %v3742 = vld [vmem:[#allocation9 + $0x3f0] sm:$0xff]
    %v3743 = vld [vmem:[#allocation9 + $0x3f8] sm:$0xff]
    %v3744 = vld [vmem:[#allocation9 + $0x400] sm:$0xff]
    %v3745 = vld [vmem:[#allocation9 + $0x408] sm:$0xff]
    %v3746 = vld [vmem:[#allocation9 + $0x410] sm:$0xff]
    %v3747 = vld [vmem:[#allocation9 + $0x418] sm:$0xff]
    %v3748 = vld [vmem:[#allocation9 + $0x420] sm:$0xff]
    %v3749 = vld [vmem:[#allocation9 + $0x428] sm:$0xff]
    %v3750 = vld [vmem:[#allocation9 + $0x430] sm:$0xff]
    %v3751 = vld [vmem:[#allocation9 + $0x438] sm:$0xff]
    %v3752 = vld [vmem:[#allocation9 + $0x440] sm:$0xff]
    %v3753 = vld [vmem:[#allocation9 + $0x448] sm:$0xff]
    %v3754 = vld [vmem:[#allocation9 + $0x450] sm:$0xff]
    %v3755 = vld [vmem:[#allocation9 + $0x458] sm:$0xff]
    %v3756 = vld [vmem:[#allocation9 + $0x460] sm:$0xff]
    %v3757 = vld [vmem:[#allocation9 + $0x468] sm:$0xff]
    %v3758 = vld [vmem:[#allocation9 + $0x470] sm:$0xff]
    %v3759 = vld [vmem:[#allocation9 + $0x478] sm:$0xff]
    %v3760 = vld [vmem:[#allocation9 + $0x480] sm:$0xff]
    %v3761 = vld [vmem:[#allocation9 + $0x488] sm:$0xff]
    %v3762 = vld [vmem:[#allocation9 + $0x490] sm:$0xff]
    %v3763 = vld [vmem:[#allocation9 + $0x498] sm:$0xff]
    %v3764 = vld [vmem:[#allocation9 + $0x4a0] sm:$0xff]
    %v3765 = vld [vmem:[#allocation9 + $0x4a8] sm:$0xff]
    %v3766 = vld [vmem:[#allocation9 + $0x4b0] sm:$0xff]
    %v3767 = vld [vmem:[#allocation9 + $0x4b8] sm:$0xff]
    %v3768 = vld [vmem:[#allocation9 + $0x4c0] sm:$0xff]
    %v3769 = vld [vmem:[#allocation9 + $0x4c8] sm:$0xff]
    %v3770 = vld [vmem:[#allocation9 + $0x4d0] sm:$0xff]
    %v3771 = vld [vmem:[#allocation9 + $0x4d8] sm:$0xff]
    %v3772 = vld [vmem:[#allocation9 + $0x4e0] sm:$0xff]
    %v3773 = vld [vmem:[#allocation9 + $0x4e8] sm:$0xff]
    %v3774 = vld [vmem:[#allocation9 + $0x4f0] sm:$0xff]
    %v3775 = vld [vmem:[#allocation9 + $0x4f8] sm:$0xff]
    %v3776 = vld [vmem:[#allocation9 + $0x500] sm:$0xff]
    %v3777 = vld [vmem:[#allocation9 + $0x508] sm:$0xff]
    %v3778 = vld [vmem:[#allocation9 + $0x510] sm:$0xff]
    %v3779 = vld [vmem:[#allocation9 + $0x518] sm:$0xff]
    %v3780 = vld [vmem:[#allocation9 + $0x520] sm:$0xff]
    %v3781 = vld [vmem:[#allocation9 + $0x528] sm:$0xff]
    %v3782 = vld [vmem:[#allocation9 + $0x530] sm:$0xff]
    %v3783 = vld [vmem:[#allocation9 + $0x538] sm:$0xff]
    %v3784 = vld [vmem:[#allocation9 + $0x540] sm:$0xff]
    %v3785 = vld [vmem:[#allocation9 + $0x548] sm:$0xff]
    %v3786 = vld [vmem:[#allocation9 + $0x550] sm:$0xff]
    %v3787 = vld [vmem:[#allocation9 + $0x558] sm:$0xff]
    %v3788 = vld [vmem:[#allocation9 + $0x560] sm:$0xff]
    %v3789 = vld [vmem:[#allocation9 + $0x568] sm:$0xff]
    %v3790 = vld [vmem:[#allocation9 + $0x570] sm:$0xff]
    %v3791 = vld [vmem:[#allocation9 + $0x578] sm:$0xff]
    %v3792 = vld [vmem:[#allocation9 + $0x580] sm:$0xff]
    %v3793 = vld [vmem:[#allocation9 + $0x588] sm:$0xff]
    %v3794 = vld [vmem:[#allocation9 + $0x590] sm:$0xff]
    %v3795 = vld [vmem:[#allocation9 + $0x598] sm:$0xff]
    %v3796 = vld [vmem:[#allocation9 + $0x5a0] sm:$0xff]
    %v3797 = vld [vmem:[#allocation9 + $0x5a8] sm:$0xff]
    %v3798 = vld [vmem:[#allocation9 + $0x5b0] sm:$0xff]
    %v3799 = vld [vmem:[#allocation9 + $0x5b8] sm:$0xff]
    %v3800 = vld [vmem:[#allocation9 + $0x5c0] sm:$0xff]
    %v3801 = vld [vmem:[#allocation9 + $0x5c8] sm:$0xff]
    %v3802 = vld [vmem:[#allocation9 + $0x5d0] sm:$0xff]
    %v3803 = vld [vmem:[#allocation9 + $0x5d8] sm:$0xff]
    %v3804 = vld [vmem:[#allocation9 + $0x5e0] sm:$0xff]
    %v3805 = vld [vmem:[#allocation9 + $0x5e8] sm:$0xff]
    %v3806 = vld [vmem:[#allocation9 + $0x5f0] sm:$0xff]
    %v3807 = vld [vmem:[#allocation9 + $0x5f8] sm:$0xff]
    %v3808 = vld [vmem:[#allocation9 + $0x600] sm:$0xff]
    %v3809 = vld [vmem:[#allocation9 + $0x608] sm:$0xff]
    %v3810 = vld [vmem:[#allocation9 + $0x610] sm:$0xff]
    %v3811 = vld [vmem:[#allocation9 + $0x618] sm:$0xff]
    %v3812 = vld [vmem:[#allocation9 + $0x620] sm:$0xff]
    %v3813 = vld [vmem:[#allocation9 + $0x628] sm:$0xff]
    %v3814 = vld [vmem:[#allocation9 + $0x630] sm:$0xff]
    %v3815 = vld [vmem:[#allocation9 + $0x638] sm:$0xff]
    %v3816 = vld [vmem:[#allocation9 + $0x640] sm:$0xff]
    %v3817 = vld [vmem:[#allocation9 + $0x648] sm:$0xff]
    %v3818 = vld [vmem:[#allocation9 + $0x650] sm:$0xff]
    %v3819 = vld [vmem:[#allocation9 + $0x658] sm:$0xff]
    %v3820 = vld [vmem:[#allocation9 + $0x660] sm:$0xff]
    %v3821 = vld [vmem:[#allocation9 + $0x668] sm:$0xff]
    %v3822 = vld [vmem:[#allocation9 + $0x670] sm:$0xff]
    %v3823 = vld [vmem:[#allocation9 + $0x678] sm:$0xff]
    %v3824 = vld [vmem:[#allocation9 + $0x680] sm:$0xff]
    %v3825 = vld [vmem:[#allocation9 + $0x688] sm:$0xff]
    %v3826 = vld [vmem:[#allocation9 + $0x690] sm:$0xff]
    %v3827 = vld [vmem:[#allocation9 + $0x698] sm:$0xff]
    %v3828 = vld [vmem:[#allocation9 + $0x6a0] sm:$0xff]
    %v3829 = vld [vmem:[#allocation9 + $0x6a8] sm:$0xff]
    %v3830 = vld [vmem:[#allocation9 + $0x6b0] sm:$0xff]
    %v3831 = vld [vmem:[#allocation9 + $0x6b8] sm:$0xff]
    %v3832 = vld [vmem:[#allocation9 + $0x6c0] sm:$0xff]
    %v3833 = vld [vmem:[#allocation9 + $0x6c8] sm:$0xff]
    %v3834 = vld [vmem:[#allocation9 + $0x6d0] sm:$0xff]
    %v3835 = vld [vmem:[#allocation9 + $0x6d8] sm:$0xff]
    %v3836 = vld [vmem:[#allocation9 + $0x6e0] sm:$0xff]
    %v3837 = vld [vmem:[#allocation9 + $0x6e8] sm:$0xff]
    %v3838 = vld [vmem:[#allocation9 + $0x6f0] sm:$0xff]
    %v3839 = vld [vmem:[#allocation9 + $0x6f8] sm:$0xff]
    %v3840 = vld [vmem:[#allocation9 + $0x700] sm:$0xff]
    %v3841 = vld [vmem:[#allocation9 + $0x708] sm:$0xff]
    %v3842 = vld [vmem:[#allocation9 + $0x710] sm:$0xff]
    %v3843 = vld [vmem:[#allocation9 + $0x718] sm:$0xff]
    %v3844 = vld [vmem:[#allocation9 + $0x720] sm:$0xff]
    %v3845 = vld [vmem:[#allocation9 + $0x728] sm:$0xff]
    %v3846 = vld [vmem:[#allocation9 + $0x730] sm:$0xff]
    %v3847 = vld [vmem:[#allocation9 + $0x738] sm:$0xff]
    %v3848 = vld [vmem:[#allocation9 + $0x740] sm:$0xff]
    %v3849 = vld [vmem:[#allocation9 + $0x748] sm:$0xff]
    %v3850 = vld [vmem:[#allocation9 + $0x750] sm:$0xff]
    %v3851 = vld [vmem:[#allocation9 + $0x758] sm:$0xff]
    %v3852 = vld [vmem:[#allocation9 + $0x760] sm:$0xff]
    %v3853 = vld [vmem:[#allocation9 + $0x768] sm:$0xff]
    %v3854 = vld [vmem:[#allocation9 + $0x770] sm:$0xff]
    %v3855 = vld [vmem:[#allocation9 + $0x778] sm:$0xff]
    %v3856 = vld [vmem:[#allocation9 + $0x780] sm:$0xff]
    %v3857 = vld [vmem:[#allocation9 + $0x788] sm:$0xff]
    %v3858 = vld [vmem:[#allocation9 + $0x790] sm:$0xff]
    %v3859 = vld [vmem:[#allocation9 + $0x798] sm:$0xff]
    %v3860 = vld [vmem:[#allocation9 + $0x7a0] sm:$0xff]
    %v3861 = vld [vmem:[#allocation9 + $0x7a8] sm:$0xff]
    %v3862 = vld [vmem:[#allocation9 + $0x7b0] sm:$0xff]
    %v3863 = vld [vmem:[#allocation9 + $0x7b8] sm:$0xff]
    %v3864 = vld [vmem:[#allocation9 + $0x7c0] sm:$0xff]
    %v3865 = vld [vmem:[#allocation9 + $0x7c8] sm:$0xff]
    %v3866 = vld [vmem:[#allocation9 + $0x7d0] sm:$0xff]
    %v3867 = vld [vmem:[#allocation9 + $0x7d8] sm:$0xff]
    %v3868 = vld [vmem:[#allocation9 + $0x7e0] sm:$0xff]
    %v3869 = vld [vmem:[#allocation9 + $0x7e8] sm:$0xff]
    %v3870 = vld [vmem:[#allocation9 + $0x7f0] sm:$0xff]
    %v3871 = vld [vmem:[#allocation9 + $0x7f8] sm:$0xff]
    %v3872 = vld [vmem:[%s17] sm:$0xff]
    %v3873 = vunpack.c.l.bf16 %v3872
    %v3874 = vunpack.c.h.bf16 %v3872
    %v3877 = vlaneseq
    %v3878 = vshrl.u32 %v3877, 7
    %v3879 = vsub.s32 0, %v3878
    %v3880 = vrot.slane %v3873, %v3879
    %v3881 = vlaneseq
    %v3882 = vshrl.u32 %v3881, 7
    %v3883 = vsub.s32 2, %v3882
    %v3884 = vrot.slane %v3873, %v3883
    %v3885 = vlaneseq
    %v3886 = vshrl.u32 %v3885, 7
    %v3887 = vsub.s32 4, %v3886
    %v3888 = vrot.slane %v3873, %v3887
    %v3889 = vlaneseq
    %v3890 = vshrl.u32 %v3889, 7
    %v3891 = vsub.s32 6, %v3890
    %v3892 = vrot.slane %v3873, %v3891
    %v3893 = vlaneseq
    %v3894 = vshrl.u32 %v3893, 7
    %v3895 = vsub.s32 0, %v3894
    %v3896 = vrot.slane %v3874, %v3895
    %v3897 = vlaneseq
    %v3898 = vshrl.u32 %v3897, 7
    %v3899 = vsub.s32 2, %v3898
    %v3900 = vrot.slane %v3874, %v3899
    %v3901 = vlaneseq
    %v3902 = vshrl.u32 %v3901, 7
    %v3903 = vsub.s32 4, %v3902
    %v3904 = vrot.slane %v3874, %v3903
    %v3905 = vlaneseq
    %v3906 = vshrl.u32 %v3905, 7
    %v3907 = vsub.s32 6, %v3906
    %v3908 = vrot.slane %v3874, %v3907
    %v3917 = vlaneseq
    %v3918 = vshrl.u32 %v3917, 7
    %v3919 = vsub.s32 0, %v3918
    %v3920 = vrot.slane %v3880, %v3919
    %v3921 = vlaneseq
    %v3922 = vshrl.u32 %v3921, 7
    %v3923 = vsub.s32 0, %v3922
    %v3924 = vrot.slane %v3884, %v3923
    %v3925 = vlaneseq
    %v3926 = vshrl.u32 %v3925, 7
    %v3927 = vsub.s32 0, %v3926
    %v3928 = vrot.slane %v3888, %v3927
    %v3929 = vlaneseq
    %v3930 = vshrl.u32 %v3929, 7
    %v3931 = vsub.s32 0, %v3930
    %v3932 = vrot.slane %v3892, %v3931
    %v3933 = vlaneseq
    %v3934 = vshrl.u32 %v3933, 7
    %v3935 = vsub.s32 0, %v3934
    %v3936 = vrot.slane %v3896, %v3935
    %v3937 = vlaneseq
    %v3938 = vshrl.u32 %v3937, 7
    %v3939 = vsub.s32 0, %v3938
    %v3940 = vrot.slane %v3900, %v3939
    %v3941 = vlaneseq
    %v3942 = vshrl.u32 %v3941, 7
    %v3943 = vsub.s32 0, %v3942
    %v3944 = vrot.slane %v3904, %v3943
    %v3945 = vlaneseq
    %v3946 = vshrl.u32 %v3945, 7
    %v3947 = vsub.s32 0, %v3946
    %v3948 = vrot.slane %v3908, %v3947
    %v4205 = vunpack.c.l.b16 %v3616
    %v4206 = vunpack.c.h.b16 %v3616
    %v4207 = vunpack.c.l.b16 %v3617
    %v4208 = vunpack.c.h.b16 %v3617
    %v4209 = vunpack.c.l.b16 %v3618
    %v4210 = vunpack.c.h.b16 %v3618
    %v4211 = vunpack.c.l.b16 %v3619
    %v4212 = vunpack.c.h.b16 %v3619
    %v4213 = vunpack.c.l.b16 %v3620
    %v4214 = vunpack.c.h.b16 %v3620
    %v4215 = vunpack.c.l.b16 %v3621
    %v4216 = vunpack.c.h.b16 %v3621
    %v4217 = vunpack.c.l.b16 %v3622
    %v4218 = vunpack.c.h.b16 %v3622
    %v4219 = vunpack.c.l.b16 %v3623
    %v4220 = vunpack.c.h.b16 %v3623
    %v4221 = vunpack.c.l.b16 %v3624
    %v4222 = vunpack.c.h.b16 %v3624
    %v4223 = vunpack.c.l.b16 %v3625
    %v4224 = vunpack.c.h.b16 %v3625
    %v4225 = vunpack.c.l.b16 %v3626
    %v4226 = vunpack.c.h.b16 %v3626
    %v4227 = vunpack.c.l.b16 %v3627
    %v4228 = vunpack.c.h.b16 %v3627
    %v4229 = vunpack.c.l.b16 %v3628
    %v4230 = vunpack.c.h.b16 %v3628
    %v4231 = vunpack.c.l.b16 %v3629
    %v4232 = vunpack.c.h.b16 %v3629
    %v4233 = vunpack.c.l.b16 %v3630
    %v4234 = vunpack.c.h.b16 %v3630
    %v4235 = vunpack.c.l.b16 %v3631
    %v4236 = vunpack.c.h.b16 %v3631
    %v4237 = vunpack.c.l.b16 %v3632
    %v4238 = vunpack.c.h.b16 %v3632
    %v4239 = vunpack.c.l.b16 %v3633
    %v4240 = vunpack.c.h.b16 %v3633
    %v4241 = vunpack.c.l.b16 %v3634
    %v4242 = vunpack.c.h.b16 %v3634
    %v4243 = vunpack.c.l.b16 %v3635
    %v4244 = vunpack.c.h.b16 %v3635
    %v4245 = vunpack.c.l.b16 %v3636
    %v4246 = vunpack.c.h.b16 %v3636
    %v4247 = vunpack.c.l.b16 %v3637
    %v4248 = vunpack.c.h.b16 %v3637
    %v4249 = vunpack.c.l.b16 %v3638
    %v4250 = vunpack.c.h.b16 %v3638
    %v4251 = vunpack.c.l.b16 %v3639
    %v4252 = vunpack.c.h.b16 %v3639
    %v4253 = vunpack.c.l.b16 %v3640
    %v4254 = vunpack.c.h.b16 %v3640
    %v4255 = vunpack.c.l.b16 %v3641
    %v4256 = vunpack.c.h.b16 %v3641
    %v4257 = vunpack.c.l.b16 %v3642
    %v4258 = vunpack.c.h.b16 %v3642
    %v4259 = vunpack.c.l.b16 %v3643
    %v4260 = vunpack.c.h.b16 %v3643
    %v4261 = vunpack.c.l.b16 %v3644
    %v4262 = vunpack.c.h.b16 %v3644
    %v4263 = vunpack.c.l.b16 %v3645
    %v4264 = vunpack.c.h.b16 %v3645
    %v4265 = vunpack.c.l.b16 %v3646
    %v4266 = vunpack.c.h.b16 %v3646
    %v4267 = vunpack.c.l.b16 %v3647
    %v4268 = vunpack.c.h.b16 %v3647
    %v4269 = vunpack.c.l.b16 %v3648
    %v4270 = vunpack.c.h.b16 %v3648
    %v4271 = vunpack.c.l.b16 %v3649
    %v4272 = vunpack.c.h.b16 %v3649
    %v4273 = vunpack.c.l.b16 %v3650
    %v4274 = vunpack.c.h.b16 %v3650
    %v4275 = vunpack.c.l.b16 %v3651
    %v4276 = vunpack.c.h.b16 %v3651
    %v4277 = vunpack.c.l.b16 %v3652
    %v4278 = vunpack.c.h.b16 %v3652
    %v4279 = vunpack.c.l.b16 %v3653
    %v4280 = vunpack.c.h.b16 %v3653
    %v4281 = vunpack.c.l.b16 %v3654
    %v4282 = vunpack.c.h.b16 %v3654
    %v4283 = vunpack.c.l.b16 %v3655
    %v4284 = vunpack.c.h.b16 %v3655
    %v4285 = vunpack.c.l.b16 %v3656
    %v4286 = vunpack.c.h.b16 %v3656
    %v4287 = vunpack.c.l.b16 %v3657
    %v4288 = vunpack.c.h.b16 %v3657
    %v4289 = vunpack.c.l.b16 %v3658
    %v4290 = vunpack.c.h.b16 %v3658
    %v4291 = vunpack.c.l.b16 %v3659
    %v4292 = vunpack.c.h.b16 %v3659
    %v4293 = vunpack.c.l.b16 %v3660
    %v4294 = vunpack.c.h.b16 %v3660
    %v4295 = vunpack.c.l.b16 %v3661
    %v4296 = vunpack.c.h.b16 %v3661
    %v4297 = vunpack.c.l.b16 %v3662
    %v4298 = vunpack.c.h.b16 %v3662
    %v4299 = vunpack.c.l.b16 %v3663
    %v4300 = vunpack.c.h.b16 %v3663
    %v4301 = vunpack.c.l.b16 %v3664
    %v4302 = vunpack.c.h.b16 %v3664
    %v4303 = vunpack.c.l.b16 %v3665
    %v4304 = vunpack.c.h.b16 %v3665
    %v4305 = vunpack.c.l.b16 %v3666
    %v4306 = vunpack.c.h.b16 %v3666
    %v4307 = vunpack.c.l.b16 %v3667
    %v4308 = vunpack.c.h.b16 %v3667
    %v4309 = vunpack.c.l.b16 %v3668
    %v4310 = vunpack.c.h.b16 %v3668
    %v4311 = vunpack.c.l.b16 %v3669
    %v4312 = vunpack.c.h.b16 %v3669
    %v4313 = vunpack.c.l.b16 %v3670
    %v4314 = vunpack.c.h.b16 %v3670
    %v4315 = vunpack.c.l.b16 %v3671
    %v4316 = vunpack.c.h.b16 %v3671
    %v4317 = vunpack.c.l.b16 %v3672
    %v4318 = vunpack.c.h.b16 %v3672
    %v4319 = vunpack.c.l.b16 %v3673
    %v4320 = vunpack.c.h.b16 %v3673
    %v4321 = vunpack.c.l.b16 %v3674
    %v4322 = vunpack.c.h.b16 %v3674
    %v4323 = vunpack.c.l.b16 %v3675
    %v4324 = vunpack.c.h.b16 %v3675
    %v4325 = vunpack.c.l.b16 %v3676
    %v4326 = vunpack.c.h.b16 %v3676
    %v4327 = vunpack.c.l.b16 %v3677
    %v4328 = vunpack.c.h.b16 %v3677
    %v4329 = vunpack.c.l.b16 %v3678
    %v4330 = vunpack.c.h.b16 %v3678
    %v4331 = vunpack.c.l.b16 %v3679
    %v4332 = vunpack.c.h.b16 %v3679
    %v4333 = vunpack.c.l.b16 %v3680
    %v4334 = vunpack.c.h.b16 %v3680
    %v4335 = vunpack.c.l.b16 %v3681
    %v4336 = vunpack.c.h.b16 %v3681
    %v4337 = vunpack.c.l.b16 %v3682
    %v4338 = vunpack.c.h.b16 %v3682
    %v4339 = vunpack.c.l.b16 %v3683
    %v4340 = vunpack.c.h.b16 %v3683
    %v4341 = vunpack.c.l.b16 %v3684
    %v4342 = vunpack.c.h.b16 %v3684
    %v4343 = vunpack.c.l.b16 %v3685
    %v4344 = vunpack.c.h.b16 %v3685
    %v4345 = vunpack.c.l.b16 %v3686
    %v4346 = vunpack.c.h.b16 %v3686
    %v4347 = vunpack.c.l.b16 %v3687
    %v4348 = vunpack.c.h.b16 %v3687
    %v4349 = vunpack.c.l.b16 %v3688
    %v4350 = vunpack.c.h.b16 %v3688
    %v4351 = vunpack.c.l.b16 %v3689
    %v4352 = vunpack.c.h.b16 %v3689
    %v4353 = vunpack.c.l.b16 %v3690
    %v4354 = vunpack.c.h.b16 %v3690
    %v4355 = vunpack.c.l.b16 %v3691
    %v4356 = vunpack.c.h.b16 %v3691
    %v4357 = vunpack.c.l.b16 %v3692
    %v4358 = vunpack.c.h.b16 %v3692
    %v4359 = vunpack.c.l.b16 %v3693
    %v4360 = vunpack.c.h.b16 %v3693
    %v4361 = vunpack.c.l.b16 %v3694
    %v4362 = vunpack.c.h.b16 %v3694
    %v4363 = vunpack.c.l.b16 %v3695
    %v4364 = vunpack.c.h.b16 %v3695
    %v4365 = vunpack.c.l.b16 %v3696
    %v4366 = vunpack.c.h.b16 %v3696
    %v4367 = vunpack.c.l.b16 %v3697
    %v4368 = vunpack.c.h.b16 %v3697
    %v4369 = vunpack.c.l.b16 %v3698
    %v4370 = vunpack.c.h.b16 %v3698
    %v4371 = vunpack.c.l.b16 %v3699
    %v4372 = vunpack.c.h.b16 %v3699
    %v4373 = vunpack.c.l.b16 %v3700
    %v4374 = vunpack.c.h.b16 %v3700
    %v4375 = vunpack.c.l.b16 %v3701
    %v4376 = vunpack.c.h.b16 %v3701
    %v4377 = vunpack.c.l.b16 %v3702
    %v4378 = vunpack.c.h.b16 %v3702
    %v4379 = vunpack.c.l.b16 %v3703
    %v4380 = vunpack.c.h.b16 %v3703
    %v4381 = vunpack.c.l.b16 %v3704
    %v4382 = vunpack.c.h.b16 %v3704
    %v4383 = vunpack.c.l.b16 %v3705
    %v4384 = vunpack.c.h.b16 %v3705
    %v4385 = vunpack.c.l.b16 %v3706
    %v4386 = vunpack.c.h.b16 %v3706
    %v4387 = vunpack.c.l.b16 %v3707
    %v4388 = vunpack.c.h.b16 %v3707
    %v4389 = vunpack.c.l.b16 %v3708
    %v4390 = vunpack.c.h.b16 %v3708
    %v4391 = vunpack.c.l.b16 %v3709
    %v4392 = vunpack.c.h.b16 %v3709
    %v4393 = vunpack.c.l.b16 %v3710
    %v4394 = vunpack.c.h.b16 %v3710
    %v4395 = vunpack.c.l.b16 %v3711
    %v4396 = vunpack.c.h.b16 %v3711
    %v4397 = vunpack.c.l.b16 %v3712
    %v4398 = vunpack.c.h.b16 %v3712
    %v4399 = vunpack.c.l.b16 %v3713
    %v4400 = vunpack.c.h.b16 %v3713
    %v4401 = vunpack.c.l.b16 %v3714
    %v4402 = vunpack.c.h.b16 %v3714
    %v4403 = vunpack.c.l.b16 %v3715
    %v4404 = vunpack.c.h.b16 %v3715
    %v4405 = vunpack.c.l.b16 %v3716
    %v4406 = vunpack.c.h.b16 %v3716
    %v4407 = vunpack.c.l.b16 %v3717
    %v4408 = vunpack.c.h.b16 %v3717
    %v4409 = vunpack.c.l.b16 %v3718
    %v4410 = vunpack.c.h.b16 %v3718
    %v4411 = vunpack.c.l.b16 %v3719
    %v4412 = vunpack.c.h.b16 %v3719
    %v4413 = vunpack.c.l.b16 %v3720
    %v4414 = vunpack.c.h.b16 %v3720
    %v4415 = vunpack.c.l.b16 %v3721
    %v4416 = vunpack.c.h.b16 %v3721
    %v4417 = vunpack.c.l.b16 %v3722
    %v4418 = vunpack.c.h.b16 %v3722
    %v4419 = vunpack.c.l.b16 %v3723
    %v4420 = vunpack.c.h.b16 %v3723
    %v4421 = vunpack.c.l.b16 %v3724
    %v4422 = vunpack.c.h.b16 %v3724
    %v4423 = vunpack.c.l.b16 %v3725
    %v4424 = vunpack.c.h.b16 %v3725
    %v4425 = vunpack.c.l.b16 %v3726
    %v4426 = vunpack.c.h.b16 %v3726
    %v4427 = vunpack.c.l.b16 %v3727
    %v4428 = vunpack.c.h.b16 %v3727
    %v4429 = vunpack.c.l.b16 %v3728
    %v4430 = vunpack.c.h.b16 %v3728
    %v4431 = vunpack.c.l.b16 %v3729
    %v4432 = vunpack.c.h.b16 %v3729
    %v4433 = vunpack.c.l.b16 %v3730
    %v4434 = vunpack.c.h.b16 %v3730
    %v4435 = vunpack.c.l.b16 %v3731
    %v4436 = vunpack.c.h.b16 %v3731
    %v4437 = vunpack.c.l.b16 %v3732
    %v4438 = vunpack.c.h.b16 %v3732
    %v4439 = vunpack.c.l.b16 %v3733
    %v4440 = vunpack.c.h.b16 %v3733
    %v4441 = vunpack.c.l.b16 %v3734
    %v4442 = vunpack.c.h.b16 %v3734
    %v4443 = vunpack.c.l.b16 %v3735
    %v4444 = vunpack.c.h.b16 %v3735
    %v4445 = vunpack.c.l.b16 %v3736
    %v4446 = vunpack.c.h.b16 %v3736
    %v4447 = vunpack.c.l.b16 %v3737
    %v4448 = vunpack.c.h.b16 %v3737
    %v4449 = vunpack.c.l.b16 %v3738
    %v4450 = vunpack.c.h.b16 %v3738
    %v4451 = vunpack.c.l.b16 %v3739
    %v4452 = vunpack.c.h.b16 %v3739
    %v4453 = vunpack.c.l.b16 %v3740
    %v4454 = vunpack.c.h.b16 %v3740
    %v4455 = vunpack.c.l.b16 %v3741
    %v4456 = vunpack.c.h.b16 %v3741
    %v4457 = vunpack.c.l.b16 %v3742
    %v4458 = vunpack.c.h.b16 %v3742
    %v4459 = vunpack.c.l.b16 %v3743
    %v4460 = vunpack.c.h.b16 %v3743
    %v4461 = vunpack.c.l.b16 %v3744
    %v4462 = vunpack.c.h.b16 %v3744
    %v4463 = vunpack.c.l.b16 %v3745
    %v4464 = vunpack.c.h.b16 %v3745
    %v4465 = vunpack.c.l.b16 %v3746
    %v4466 = vunpack.c.h.b16 %v3746
    %v4467 = vunpack.c.l.b16 %v3747
    %v4468 = vunpack.c.h.b16 %v3747
    %v4469 = vunpack.c.l.b16 %v3748
    %v4470 = vunpack.c.h.b16 %v3748
    %v4471 = vunpack.c.l.b16 %v3749
    %v4472 = vunpack.c.h.b16 %v3749
    %v4473 = vunpack.c.l.b16 %v3750
    %v4474 = vunpack.c.h.b16 %v3750
    %v4475 = vunpack.c.l.b16 %v3751
    %v4476 = vunpack.c.h.b16 %v3751
    %v4477 = vunpack.c.l.b16 %v3752
    %v4478 = vunpack.c.h.b16 %v3752
    %v4479 = vunpack.c.l.b16 %v3753
    %v4480 = vunpack.c.h.b16 %v3753
    %v4481 = vunpack.c.l.b16 %v3754
    %v4482 = vunpack.c.h.b16 %v3754
    %v4483 = vunpack.c.l.b16 %v3755
    %v4484 = vunpack.c.h.b16 %v3755
    %v4485 = vunpack.c.l.b16 %v3756
    %v4486 = vunpack.c.h.b16 %v3756
    %v4487 = vunpack.c.l.b16 %v3757
    %v4488 = vunpack.c.h.b16 %v3757
    %v4489 = vunpack.c.l.b16 %v3758
    %v4490 = vunpack.c.h.b16 %v3758
    %v4491 = vunpack.c.l.b16 %v3759
    %v4492 = vunpack.c.h.b16 %v3759
    %v4493 = vunpack.c.l.b16 %v3760
    %v4494 = vunpack.c.h.b16 %v3760
    %v4495 = vunpack.c.l.b16 %v3761
    %v4496 = vunpack.c.h.b16 %v3761
    %v4497 = vunpack.c.l.b16 %v3762
    %v4498 = vunpack.c.h.b16 %v3762
    %v4499 = vunpack.c.l.b16 %v3763
    %v4500 = vunpack.c.h.b16 %v3763
    %v4501 = vunpack.c.l.b16 %v3764
    %v4502 = vunpack.c.h.b16 %v3764
    %v4503 = vunpack.c.l.b16 %v3765
    %v4504 = vunpack.c.h.b16 %v3765
    %v4505 = vunpack.c.l.b16 %v3766
    %v4506 = vunpack.c.h.b16 %v3766
    %v4507 = vunpack.c.l.b16 %v3767
    %v4508 = vunpack.c.h.b16 %v3767
    %v4509 = vunpack.c.l.b16 %v3768
    %v4510 = vunpack.c.h.b16 %v3768
    %v4511 = vunpack.c.l.b16 %v3769
    %v4512 = vunpack.c.h.b16 %v3769
    %v4513 = vunpack.c.l.b16 %v3770
    %v4514 = vunpack.c.h.b16 %v3770
    %v4515 = vunpack.c.l.b16 %v3771
    %v4516 = vunpack.c.h.b16 %v3771
    %v4517 = vunpack.c.l.b16 %v3772
    %v4518 = vunpack.c.h.b16 %v3772
    %v4519 = vunpack.c.l.b16 %v3773
    %v4520 = vunpack.c.h.b16 %v3773
    %v4521 = vunpack.c.l.b16 %v3774
    %v4522 = vunpack.c.h.b16 %v3774
    %v4523 = vunpack.c.l.b16 %v3775
    %v4524 = vunpack.c.h.b16 %v3775
    %v4525 = vunpack.c.l.b16 %v3776
    %v4526 = vunpack.c.h.b16 %v3776
    %v4527 = vunpack.c.l.b16 %v3777
    %v4528 = vunpack.c.h.b16 %v3777
    %v4529 = vunpack.c.l.b16 %v3778
    %v4530 = vunpack.c.h.b16 %v3778
    %v4531 = vunpack.c.l.b16 %v3779
    %v4532 = vunpack.c.h.b16 %v3779
    %v4533 = vunpack.c.l.b16 %v3780
    %v4534 = vunpack.c.h.b16 %v3780
    %v4535 = vunpack.c.l.b16 %v3781
    %v4536 = vunpack.c.h.b16 %v3781
    %v4537 = vunpack.c.l.b16 %v3782
    %v4538 = vunpack.c.h.b16 %v3782
    %v4539 = vunpack.c.l.b16 %v3783
    %v4540 = vunpack.c.h.b16 %v3783
    %v4541 = vunpack.c.l.b16 %v3784
    %v4542 = vunpack.c.h.b16 %v3784
    %v4543 = vunpack.c.l.b16 %v3785
    %v4544 = vunpack.c.h.b16 %v3785
    %v4545 = vunpack.c.l.b16 %v3786
    %v4546 = vunpack.c.h.b16 %v3786
    %v4547 = vunpack.c.l.b16 %v3787
    %v4548 = vunpack.c.h.b16 %v3787
    %v4549 = vunpack.c.l.b16 %v3788
    %v4550 = vunpack.c.h.b16 %v3788
    %v4551 = vunpack.c.l.b16 %v3789
    %v4552 = vunpack.c.h.b16 %v3789
    %v4553 = vunpack.c.l.b16 %v3790
    %v4554 = vunpack.c.h.b16 %v3790
    %v4555 = vunpack.c.l.b16 %v3791
    %v4556 = vunpack.c.h.b16 %v3791
    %v4557 = vunpack.c.l.b16 %v3792
    %v4558 = vunpack.c.h.b16 %v3792
    %v4559 = vunpack.c.l.b16 %v3793
    %v4560 = vunpack.c.h.b16 %v3793
    %v4561 = vunpack.c.l.b16 %v3794
    %v4562 = vunpack.c.h.b16 %v3794
    %v4563 = vunpack.c.l.b16 %v3795
    %v4564 = vunpack.c.h.b16 %v3795
    %v4565 = vunpack.c.l.b16 %v3796
    %v4566 = vunpack.c.h.b16 %v3796
    %v4567 = vunpack.c.l.b16 %v3797
    %v4568 = vunpack.c.h.b16 %v3797
    %v4569 = vunpack.c.l.b16 %v3798
    %v4570 = vunpack.c.h.b16 %v3798
    %v4571 = vunpack.c.l.b16 %v3799
    %v4572 = vunpack.c.h.b16 %v3799
    %v4573 = vunpack.c.l.b16 %v3800
    %v4574 = vunpack.c.h.b16 %v3800
    %v4575 = vunpack.c.l.b16 %v3801
    %v4576 = vunpack.c.h.b16 %v3801
    %v4577 = vunpack.c.l.b16 %v3802
    %v4578 = vunpack.c.h.b16 %v3802
    %v4579 = vunpack.c.l.b16 %v3803
    %v4580 = vunpack.c.h.b16 %v3803
    %v4581 = vunpack.c.l.b16 %v3804
    %v4582 = vunpack.c.h.b16 %v3804
    %v4583 = vunpack.c.l.b16 %v3805
    %v4584 = vunpack.c.h.b16 %v3805
    %v4585 = vunpack.c.l.b16 %v3806
    %v4586 = vunpack.c.h.b16 %v3806
    %v4587 = vunpack.c.l.b16 %v3807
    %v4588 = vunpack.c.h.b16 %v3807
    %v4589 = vunpack.c.l.b16 %v3808
    %v4590 = vunpack.c.h.b16 %v3808
    %v4591 = vunpack.c.l.b16 %v3809
    %v4592 = vunpack.c.h.b16 %v3809
    %v4593 = vunpack.c.l.b16 %v3810
    %v4594 = vunpack.c.h.b16 %v3810
    %v4595 = vunpack.c.l.b16 %v3811
    %v4596 = vunpack.c.h.b16 %v3811
    %v4597 = vunpack.c.l.b16 %v3812
    %v4598 = vunpack.c.h.b16 %v3812
    %v4599 = vunpack.c.l.b16 %v3813
    %v4600 = vunpack.c.h.b16 %v3813
    %v4601 = vunpack.c.l.b16 %v3814
    %v4602 = vunpack.c.h.b16 %v3814
    %v4603 = vunpack.c.l.b16 %v3815
    %v4604 = vunpack.c.h.b16 %v3815
    %v4605 = vunpack.c.l.b16 %v3816
    %v4606 = vunpack.c.h.b16 %v3816
    %v4607 = vunpack.c.l.b16 %v3817
    %v4608 = vunpack.c.h.b16 %v3817
    %v4609 = vunpack.c.l.b16 %v3818
    %v4610 = vunpack.c.h.b16 %v3818
    %v4611 = vunpack.c.l.b16 %v3819
    %v4612 = vunpack.c.h.b16 %v3819
    %v4613 = vunpack.c.l.b16 %v3820
    %v4614 = vunpack.c.h.b16 %v3820
    %v4615 = vunpack.c.l.b16 %v3821
    %v4616 = vunpack.c.h.b16 %v3821
    %v4617 = vunpack.c.l.b16 %v3822
    %v4618 = vunpack.c.h.b16 %v3822
    %v4619 = vunpack.c.l.b16 %v3823
    %v4620 = vunpack.c.h.b16 %v3823
    %v4621 = vunpack.c.l.b16 %v3824
    %v4622 = vunpack.c.h.b16 %v3824
    %v4623 = vunpack.c.l.b16 %v3825
    %v4624 = vunpack.c.h.b16 %v3825
    %v4625 = vunpack.c.l.b16 %v3826
    %v4626 = vunpack.c.h.b16 %v3826
    %v4627 = vunpack.c.l.b16 %v3827
    %v4628 = vunpack.c.h.b16 %v3827
    %v4629 = vunpack.c.l.b16 %v3828
    %v4630 = vunpack.c.h.b16 %v3828
    %v4631 = vunpack.c.l.b16 %v3829
    %v4632 = vunpack.c.h.b16 %v3829
    %v4633 = vunpack.c.l.b16 %v3830
    %v4634 = vunpack.c.h.b16 %v3830
    %v4635 = vunpack.c.l.b16 %v3831
    %v4636 = vunpack.c.h.b16 %v3831
    %v4637 = vunpack.c.l.b16 %v3832
    %v4638 = vunpack.c.h.b16 %v3832
    %v4639 = vunpack.c.l.b16 %v3833
    %v4640 = vunpack.c.h.b16 %v3833
    %v4641 = vunpack.c.l.b16 %v3834
    %v4642 = vunpack.c.h.b16 %v3834
    %v4643 = vunpack.c.l.b16 %v3835
    %v4644 = vunpack.c.h.b16 %v3835
    %v4645 = vunpack.c.l.b16 %v3836
    %v4646 = vunpack.c.h.b16 %v3836
    %v4647 = vunpack.c.l.b16 %v3837
    %v4648 = vunpack.c.h.b16 %v3837
    %v4649 = vunpack.c.l.b16 %v3838
    %v4650 = vunpack.c.h.b16 %v3838
    %v4651 = vunpack.c.l.b16 %v3839
    %v4652 = vunpack.c.h.b16 %v3839
    %v4653 = vunpack.c.l.b16 %v3840
    %v4654 = vunpack.c.h.b16 %v3840
    %v4655 = vunpack.c.l.b16 %v3841
    %v4656 = vunpack.c.h.b16 %v3841
    %v4657 = vunpack.c.l.b16 %v3842
    %v4658 = vunpack.c.h.b16 %v3842
    %v4659 = vunpack.c.l.b16 %v3843
    %v4660 = vunpack.c.h.b16 %v3843
    %v4661 = vunpack.c.l.b16 %v3844
    %v4662 = vunpack.c.h.b16 %v3844
    %v4663 = vunpack.c.l.b16 %v3845
    %v4664 = vunpack.c.h.b16 %v3845
    %v4665 = vunpack.c.l.b16 %v3846
    %v4666 = vunpack.c.h.b16 %v3846
    %v4667 = vunpack.c.l.b16 %v3847
    %v4668 = vunpack.c.h.b16 %v3847
    %v4669 = vunpack.c.l.b16 %v3848
    %v4670 = vunpack.c.h.b16 %v3848
    %v4671 = vunpack.c.l.b16 %v3849
    %v4672 = vunpack.c.h.b16 %v3849
    %v4673 = vunpack.c.l.b16 %v3850
    %v4674 = vunpack.c.h.b16 %v3850
    %v4675 = vunpack.c.l.b16 %v3851
    %v4676 = vunpack.c.h.b16 %v3851
    %v4677 = vunpack.c.l.b16 %v3852
    %v4678 = vunpack.c.h.b16 %v3852
    %v4679 = vunpack.c.l.b16 %v3853
    %v4680 = vunpack.c.h.b16 %v3853
    %v4681 = vunpack.c.l.b16 %v3854
    %v4682 = vunpack.c.h.b16 %v3854
    %v4683 = vunpack.c.l.b16 %v3855
    %v4684 = vunpack.c.h.b16 %v3855
    %v4685 = vunpack.c.l.b16 %v3856
    %v4686 = vunpack.c.h.b16 %v3856
    %v4687 = vunpack.c.l.b16 %v3857
    %v4688 = vunpack.c.h.b16 %v3857
    %v4689 = vunpack.c.l.b16 %v3858
    %v4690 = vunpack.c.h.b16 %v3858
    %v4691 = vunpack.c.l.b16 %v3859
    %v4692 = vunpack.c.h.b16 %v3859
    %v4693 = vunpack.c.l.b16 %v3860
    %v4694 = vunpack.c.h.b16 %v3860
    %v4695 = vunpack.c.l.b16 %v3861
    %v4696 = vunpack.c.h.b16 %v3861
    %v4697 = vunpack.c.l.b16 %v3862
    %v4698 = vunpack.c.h.b16 %v3862
    %v4699 = vunpack.c.l.b16 %v3863
    %v4700 = vunpack.c.h.b16 %v3863
    %v4701 = vunpack.c.l.b16 %v3864
    %v4702 = vunpack.c.h.b16 %v3864
    %v4703 = vunpack.c.l.b16 %v3865
    %v4704 = vunpack.c.h.b16 %v3865
    %v4705 = vunpack.c.l.b16 %v3866
    %v4706 = vunpack.c.h.b16 %v3866
    %v4707 = vunpack.c.l.b16 %v3867
    %v4708 = vunpack.c.h.b16 %v3867
    %v4709 = vunpack.c.l.b16 %v3868
    %v4710 = vunpack.c.h.b16 %v3868
    %v4711 = vunpack.c.l.b16 %v3869
    %v4712 = vunpack.c.h.b16 %v3869
    %v4713 = vunpack.c.l.b16 %v3870
    %v4714 = vunpack.c.h.b16 %v3870
    %v4715 = vunpack.c.l.b16 %v3871
    %v4716 = vunpack.c.h.b16 %v3871
    %v4717 = vpack.c.b16 %v4213, %v4205
    %v4718 = vpack.c.b16 %v4214, %v4206
    %v4719 = vpack.c.b16 %v4215, %v4207
    %v4720 = vpack.c.b16 %v4216, %v4208
    %v4721 = vpack.c.b16 %v4217, %v4209
    %v4722 = vpack.c.b16 %v4218, %v4210
    %v4723 = vpack.c.b16 %v4219, %v4211
    %v4724 = vpack.c.b16 %v4220, %v4212
    %v4725 = vpack.c.b16 %v4229, %v4221
    %v4726 = vpack.c.b16 %v4230, %v4222
    %v4727 = vpack.c.b16 %v4231, %v4223
    %v4728 = vpack.c.b16 %v4232, %v4224
    %v4729 = vpack.c.b16 %v4233, %v4225
    %v4730 = vpack.c.b16 %v4234, %v4226
    %v4731 = vpack.c.b16 %v4235, %v4227
    %v4732 = vpack.c.b16 %v4236, %v4228
    %v4733 = vpack.c.b16 %v4245, %v4237
    %v4734 = vpack.c.b16 %v4246, %v4238
    %v4735 = vpack.c.b16 %v4247, %v4239
    %v4736 = vpack.c.b16 %v4248, %v4240
    %v4737 = vpack.c.b16 %v4249, %v4241
    %v4738 = vpack.c.b16 %v4250, %v4242
    %v4739 = vpack.c.b16 %v4251, %v4243
    %v4740 = vpack.c.b16 %v4252, %v4244
    %v4741 = vpack.c.b16 %v4261, %v4253
    %v4742 = vpack.c.b16 %v4262, %v4254
    %v4743 = vpack.c.b16 %v4263, %v4255
    %v4744 = vpack.c.b16 %v4264, %v4256
    %v4745 = vpack.c.b16 %v4265, %v4257
    %v4746 = vpack.c.b16 %v4266, %v4258
    %v4747 = vpack.c.b16 %v4267, %v4259
    %v4748 = vpack.c.b16 %v4268, %v4260
    %v4749 = vpack.c.b16 %v4277, %v4269
    %v4750 = vpack.c.b16 %v4278, %v4270
    %v4751 = vpack.c.b16 %v4279, %v4271
    %v4752 = vpack.c.b16 %v4280, %v4272
    %v4753 = vpack.c.b16 %v4281, %v4273
    %v4754 = vpack.c.b16 %v4282, %v4274
    %v4755 = vpack.c.b16 %v4283, %v4275
    %v4756 = vpack.c.b16 %v4284, %v4276
    %v4757 = vpack.c.b16 %v4293, %v4285
    %v4758 = vpack.c.b16 %v4294, %v4286
    %v4759 = vpack.c.b16 %v4295, %v4287
    %v4760 = vpack.c.b16 %v4296, %v4288
    %v4761 = vpack.c.b16 %v4297, %v4289
    %v4762 = vpack.c.b16 %v4298, %v4290
    %v4763 = vpack.c.b16 %v4299, %v4291
    %v4764 = vpack.c.b16 %v4300, %v4292
    %v4765 = vpack.c.b16 %v4309, %v4301
    %v4766 = vpack.c.b16 %v4310, %v4302
    %v4767 = vpack.c.b16 %v4311, %v4303
    %v4768 = vpack.c.b16 %v4312, %v4304
    %v4769 = vpack.c.b16 %v4313, %v4305
    %v4770 = vpack.c.b16 %v4314, %v4306
    %v4771 = vpack.c.b16 %v4315, %v4307
    %v4772 = vpack.c.b16 %v4316, %v4308
    %v4773 = vpack.c.b16 %v4325, %v4317
    %v4774 = vpack.c.b16 %v4326, %v4318
    %v4775 = vpack.c.b16 %v4327, %v4319
    %v4776 = vpack.c.b16 %v4328, %v4320
    %v4777 = vpack.c.b16 %v4329, %v4321
    %v4778 = vpack.c.b16 %v4330, %v4322
    %v4779 = vpack.c.b16 %v4331, %v4323
    %v4780 = vpack.c.b16 %v4332, %v4324
    %v4781 = vpack.c.b16 %v4341, %v4333
    %v4782 = vpack.c.b16 %v4342, %v4334
    %v4783 = vpack.c.b16 %v4343, %v4335
    %v4784 = vpack.c.b16 %v4344, %v4336
    %v4785 = vpack.c.b16 %v4345, %v4337
    %v4786 = vpack.c.b16 %v4346, %v4338
    %v4787 = vpack.c.b16 %v4347, %v4339
    %v4788 = vpack.c.b16 %v4348, %v4340
    %v4789 = vpack.c.b16 %v4357, %v4349
    %v4790 = vpack.c.b16 %v4358, %v4350
    %v4791 = vpack.c.b16 %v4359, %v4351
    %v4792 = vpack.c.b16 %v4360, %v4352
    %v4793 = vpack.c.b16 %v4361, %v4353
    %v4794 = vpack.c.b16 %v4362, %v4354
    %v4795 = vpack.c.b16 %v4363, %v4355
    %v4796 = vpack.c.b16 %v4364, %v4356
    %v4797 = vpack.c.b16 %v4373, %v4365
    %v4798 = vpack.c.b16 %v4374, %v4366
    %v4799 = vpack.c.b16 %v4375, %v4367
    %v4800 = vpack.c.b16 %v4376, %v4368
    %v4801 = vpack.c.b16 %v4377, %v4369
    %v4802 = vpack.c.b16 %v4378, %v4370
    %v4803 = vpack.c.b16 %v4379, %v4371
    %v4804 = vpack.c.b16 %v4380, %v4372
    %v4805 = vpack.c.b16 %v4389, %v4381
    %v4806 = vpack.c.b16 %v4390, %v4382
    %v4807 = vpack.c.b16 %v4391, %v4383
    %v4808 = vpack.c.b16 %v4392, %v4384
    %v4809 = vpack.c.b16 %v4393, %v4385
    %v4810 = vpack.c.b16 %v4394, %v4386
    %v4811 = vpack.c.b16 %v4395, %v4387
    %v4812 = vpack.c.b16 %v4396, %v4388
    %v4813 = vpack.c.b16 %v4405, %v4397
    %v4814 = vpack.c.b16 %v4406, %v4398
    %v4815 = vpack.c.b16 %v4407, %v4399
    %v4816 = vpack.c.b16 %v4408, %v4400
    %v4817 = vpack.c.b16 %v4409, %v4401
    %v4818 = vpack.c.b16 %v4410, %v4402
    %v4819 = vpack.c.b16 %v4411, %v4403
    %v4820 = vpack.c.b16 %v4412, %v4404
    %v4821 = vpack.c.b16 %v4421, %v4413
    %v4822 = vpack.c.b16 %v4422, %v4414
    %v4823 = vpack.c.b16 %v4423, %v4415
    %v4824 = vpack.c.b16 %v4424, %v4416
    %v4825 = vpack.c.b16 %v4425, %v4417
    %v4826 = vpack.c.b16 %v4426, %v4418
    %v4827 = vpack.c.b16 %v4427, %v4419
    %v4828 = vpack.c.b16 %v4428, %v4420
    %v4829 = vpack.c.b16 %v4437, %v4429
    %v4830 = vpack.c.b16 %v4438, %v4430
    %v4831 = vpack.c.b16 %v4439, %v4431
    %v4832 = vpack.c.b16 %v4440, %v4432
    %v4833 = vpack.c.b16 %v4441, %v4433
    %v4834 = vpack.c.b16 %v4442, %v4434
    %v4835 = vpack.c.b16 %v4443, %v4435
    %v4836 = vpack.c.b16 %v4444, %v4436
    %v4837 = vpack.c.b16 %v4453, %v4445
    %v4838 = vpack.c.b16 %v4454, %v4446
    %v4839 = vpack.c.b16 %v4455, %v4447
    %v4840 = vpack.c.b16 %v4456, %v4448
    %v4841 = vpack.c.b16 %v4457, %v4449
    %v4842 = vpack.c.b16 %v4458, %v4450
    %v4843 = vpack.c.b16 %v4459, %v4451
    %v4844 = vpack.c.b16 %v4460, %v4452
    %v4845 = vpack.c.b16 %v4469, %v4461
    %v4846 = vpack.c.b16 %v4470, %v4462
    %v4847 = vpack.c.b16 %v4471, %v4463
    %v4848 = vpack.c.b16 %v4472, %v4464
    %v4849 = vpack.c.b16 %v4473, %v4465
    %v4850 = vpack.c.b16 %v4474, %v4466
    %v4851 = vpack.c.b16 %v4475, %v4467
    %v4852 = vpack.c.b16 %v4476, %v4468
    %v4853 = vpack.c.b16 %v4485, %v4477
    %v4854 = vpack.c.b16 %v4486, %v4478
    %v4855 = vpack.c.b16 %v4487, %v4479
    %v4856 = vpack.c.b16 %v4488, %v4480
    %v4857 = vpack.c.b16 %v4489, %v4481
    %v4858 = vpack.c.b16 %v4490, %v4482
    %v4859 = vpack.c.b16 %v4491, %v4483
    %v4860 = vpack.c.b16 %v4492, %v4484
    %v4861 = vpack.c.b16 %v4501, %v4493
    %v4862 = vpack.c.b16 %v4502, %v4494
    %v4863 = vpack.c.b16 %v4503, %v4495
    %v4864 = vpack.c.b16 %v4504, %v4496
    %v4865 = vpack.c.b16 %v4505, %v4497
    %v4866 = vpack.c.b16 %v4506, %v4498
    %v4867 = vpack.c.b16 %v4507, %v4499
    %v4868 = vpack.c.b16 %v4508, %v4500
    %v4869 = vpack.c.b16 %v4517, %v4509
    %v4870 = vpack.c.b16 %v4518, %v4510
    %v4871 = vpack.c.b16 %v4519, %v4511
    %v4872 = vpack.c.b16 %v4520, %v4512
    %v4873 = vpack.c.b16 %v4521, %v4513
    %v4874 = vpack.c.b16 %v4522, %v4514
    %v4875 = vpack.c.b16 %v4523, %v4515
    %v4876 = vpack.c.b16 %v4524, %v4516
    %v4877 = vpack.c.b16 %v4533, %v4525
    %v4878 = vpack.c.b16 %v4534, %v4526
    %v4879 = vpack.c.b16 %v4535, %v4527
    %v4880 = vpack.c.b16 %v4536, %v4528
    %v4881 = vpack.c.b16 %v4537, %v4529
    %v4882 = vpack.c.b16 %v4538, %v4530
    %v4883 = vpack.c.b16 %v4539, %v4531
    %v4884 = vpack.c.b16 %v4540, %v4532
    %v4885 = vpack.c.b16 %v4549, %v4541
    %v4886 = vpack.c.b16 %v4550, %v4542
    %v4887 = vpack.c.b16 %v4551, %v4543
    %v4888 = vpack.c.b16 %v4552, %v4544
    %v4889 = vpack.c.b16 %v4553, %v4545
    %v4890 = vpack.c.b16 %v4554, %v4546
    %v4891 = vpack.c.b16 %v4555, %v4547
    %v4892 = vpack.c.b16 %v4556, %v4548
    %v4893 = vpack.c.b16 %v4565, %v4557
    %v4894 = vpack.c.b16 %v4566, %v4558
    %v4895 = vpack.c.b16 %v4567, %v4559
    %v4896 = vpack.c.b16 %v4568, %v4560
    %v4897 = vpack.c.b16 %v4569, %v4561
    %v4898 = vpack.c.b16 %v4570, %v4562
    %v4899 = vpack.c.b16 %v4571, %v4563
    %v4900 = vpack.c.b16 %v4572, %v4564
    %v4901 = vpack.c.b16 %v4581, %v4573
    %v4902 = vpack.c.b16 %v4582, %v4574
    %v4903 = vpack.c.b16 %v4583, %v4575
    %v4904 = vpack.c.b16 %v4584, %v4576
    %v4905 = vpack.c.b16 %v4585, %v4577
    %v4906 = vpack.c.b16 %v4586, %v4578
    %v4907 = vpack.c.b16 %v4587, %v4579
    %v4908 = vpack.c.b16 %v4588, %v4580
    %v4909 = vpack.c.b16 %v4597, %v4589
    %v4910 = vpack.c.b16 %v4598, %v4590
    %v4911 = vpack.c.b16 %v4599, %v4591
    %v4912 = vpack.c.b16 %v4600, %v4592
    %v4913 = vpack.c.b16 %v4601, %v4593
    %v4914 = vpack.c.b16 %v4602, %v4594
    %v4915 = vpack.c.b16 %v4603, %v4595
    %v4916 = vpack.c.b16 %v4604, %v4596
    %v4917 = vpack.c.b16 %v4613, %v4605
    %v4918 = vpack.c.b16 %v4614, %v4606
    %v4919 = vpack.c.b16 %v4615, %v4607
    %v4920 = vpack.c.b16 %v4616, %v4608
    %v4921 = vpack.c.b16 %v4617, %v4609
    %v4922 = vpack.c.b16 %v4618, %v4610
    %v4923 = vpack.c.b16 %v4619, %v4611
    %v4924 = vpack.c.b16 %v4620, %v4612
    %v4925 = vpack.c.b16 %v4629, %v4621
    %v4926 = vpack.c.b16 %v4630, %v4622
    %v4927 = vpack.c.b16 %v4631, %v4623
    %v4928 = vpack.c.b16 %v4632, %v4624
    %v4929 = vpack.c.b16 %v4633, %v4625
    %v4930 = vpack.c.b16 %v4634, %v4626
    %v4931 = vpack.c.b16 %v4635, %v4627
    %v4932 = vpack.c.b16 %v4636, %v4628
    %v4933 = vpack.c.b16 %v4645, %v4637
    %v4934 = vpack.c.b16 %v4646, %v4638
    %v4935 = vpack.c.b16 %v4647, %v4639
    %v4936 = vpack.c.b16 %v4648, %v4640
    %v4937 = vpack.c.b16 %v4649, %v4641
    %v4938 = vpack.c.b16 %v4650, %v4642
    %v4939 = vpack.c.b16 %v4651, %v4643
    %v4940 = vpack.c.b16 %v4652, %v4644
    %v4941 = vpack.c.b16 %v4661, %v4653
    %v4942 = vpack.c.b16 %v4662, %v4654
    %v4943 = vpack.c.b16 %v4663, %v4655
    %v4944 = vpack.c.b16 %v4664, %v4656
    %v4945 = vpack.c.b16 %v4665, %v4657
    %v4946 = vpack.c.b16 %v4666, %v4658
    %v4947 = vpack.c.b16 %v4667, %v4659
    %v4948 = vpack.c.b16 %v4668, %v4660
    %v4949 = vpack.c.b16 %v4677, %v4669
    %v4950 = vpack.c.b16 %v4678, %v4670
    %v4951 = vpack.c.b16 %v4679, %v4671
    %v4952 = vpack.c.b16 %v4680, %v4672
    %v4953 = vpack.c.b16 %v4681, %v4673
    %v4954 = vpack.c.b16 %v4682, %v4674
    %v4955 = vpack.c.b16 %v4683, %v4675
    %v4956 = vpack.c.b16 %v4684, %v4676
    %v4957 = vpack.c.b16 %v4693, %v4685
    %v4958 = vpack.c.b16 %v4694, %v4686
    %v4959 = vpack.c.b16 %v4695, %v4687
    %v4960 = vpack.c.b16 %v4696, %v4688
    %v4961 = vpack.c.b16 %v4697, %v4689
    %v4962 = vpack.c.b16 %v4698, %v4690
    %v4963 = vpack.c.b16 %v4699, %v4691
    %v4964 = vpack.c.b16 %v4700, %v4692
    %v4965 = vpack.c.b16 %v4709, %v4701
    %v4966 = vpack.c.b16 %v4710, %v4702
    %v4967 = vpack.c.b16 %v4711, %v4703
    %v4968 = vpack.c.b16 %v4712, %v4704
    %v4969 = vpack.c.b16 %v4713, %v4705
    %v4970 = vpack.c.b16 %v4714, %v4706
    %v4971 = vpack.c.b16 %v4715, %v4707
    %v4972 = vpack.c.b16 %v4716, %v4708
    %5229 = vmatprep.subr.bf16.mxu0 %v4774
    %5230 = vmatpush1.bf16.msra.mxu0 %v4773
    %5231 = vmatprep.subr.bf16.mxu0 %v4766
    %5232 = vmatpush1.bf16.msra.mxu0 %v4765
    %5233 = vmatprep.subr.bf16.mxu0 %v4758
    %5234 = vmatpush1.bf16.msra.mxu0 %v4757
    %5235 = vmatprep.subr.bf16.mxu0 %v4750
    %5236 = vmatpush1.bf16.msra.mxu0 %v4749
    %5237 = vmatprep.subr.bf16.mxu0 %v4742
    %5238 = vmatpush1.bf16.msra.mxu0 %v4741
    %5239 = vmatprep.subr.bf16.mxu0 %v4734
    %5240 = vmatpush1.bf16.msra.mxu0 %v4733
    %5241 = vmatprep.subr.bf16.mxu0 %v4726
    %5242 = vmatpush1.bf16.msra.mxu0 %v4725
    %5243 = vmatprep.subr.bf16.mxu0 %v4718
    %5244 = vmatpush1.bf16.msra.mxu0 %v4717
    %5245 = vmatprep.subr.bf16.mxu0 %v4838
    %5246 = vmatpush2.bf16.msra.mxu0 %v4837
    %5247 = vmatprep.subr.bf16.mxu0 %v4830
    %5248 = vmatpush2.bf16.msra.mxu0 %v4829
    %5249 = vmatprep.subr.bf16.mxu0 %v4822
    %5250 = vmatpush2.bf16.msra.mxu0 %v4821
    %5251 = vmatprep.subr.bf16.mxu0 %v4814
    %5252 = vmatpush2.bf16.msra.mxu0 %v4813
    %5253 = vmatprep.subr.bf16.mxu0 %v4806
    %5254 = vmatpush2.bf16.msra.mxu0 %v4805
    %5255 = vmatprep.subr.bf16.mxu0 %v4798
    %5256 = vmatpush2.bf16.msra.mxu0 %v4797
    %5257 = vmatprep.subr.bf16.mxu0 %v4790
    %5258 = vmatpush2.bf16.msra.mxu0 %v4789
    %5259 = vmatprep.subr.bf16.mxu0 %v4782
    %5260 = vmatpush2.bf16.msra.mxu0 %v4781
    %5261 = vmatprep.mubr.bf16.mxu0 %v3613
    %5262 = vmatmul.mubr.bf16.gmra.mxu0 %v3612
    %v5263 = vpop.f32.mrf.mxu0
    %v5264 = vadd.f32 %v3920, %v5263
    %v5265 = vpop.f32.mrf.mxu0
    %v5266 = vadd.f32 %v3924, %v5265
    %v5267 = vpop.f32.mrf.mxu0
    %v5268 = vpop.f32.mrf.mxu0
    %5269 = vdwg.mxu0
    %5270 = vmatprep.subr.bf16.mxu0 %v4902
    %5271 = vmatpush1.bf16.msra.mxu0 %v4901
    %5272 = vmatprep.subr.bf16.mxu0 %v4894
    %5273 = vmatpush1.bf16.msra.mxu0 %v4893
    %5274 = vmatprep.subr.bf16.mxu0 %v4886
    %5275 = vmatpush1.bf16.msra.mxu0 %v4885
    %5276 = vmatprep.subr.bf16.mxu0 %v4878
    %5277 = vmatpush1.bf16.msra.mxu0 %v4877
    %5278 = vmatprep.subr.bf16.mxu0 %v4870
    %5279 = vmatpush1.bf16.msra.mxu0 %v4869
    %5280 = vmatprep.subr.bf16.mxu0 %v4862
    %5281 = vmatpush1.bf16.msra.mxu0 %v4861
    %5282 = vmatprep.subr.bf16.mxu0 %v4854
    %5283 = vmatpush1.bf16.msra.mxu0 %v4853
    %5284 = vmatprep.subr.bf16.mxu0 %v4846
    %5285 = vmatpush1.bf16.msra.mxu0 %v4845
    %5286 = vmatprep.subr.bf16.mxu0 %v4966
    %5287 = vmatpush2.bf16.msra.mxu0 %v4965
    %5288 = vmatprep.subr.bf16.mxu0 %v4958
    %5289 = vmatpush2.bf16.msra.mxu0 %v4957
    %5290 = vmatprep.subr.bf16.mxu0 %v4950
    %5291 = vmatpush2.bf16.msra.mxu0 %v4949
    %5292 = vmatprep.subr.bf16.mxu0 %v4942
    %5293 = vmatpush2.bf16.msra.mxu0 %v4941
    %5294 = vmatprep.subr.bf16.mxu0 %v4934
    %5295 = vmatpush2.bf16.msra.mxu0 %v4933
    %5296 = vmatprep.subr.bf16.mxu0 %v4926
    %5297 = vmatpush2.bf16.msra.mxu0 %v4925
    %5298 = vmatprep.subr.bf16.mxu0 %v4918
    %5299 = vmatpush2.bf16.msra.mxu0 %v4917
    %5300 = vmatprep.subr.bf16.mxu0 %v4910
    %5301 = vmatpush2.bf16.msra.mxu0 %v4909
    %5302 = vmatprep.mubr.bf16.mxu0 %v3615
    %5303 = vmatmul.mubr.bf16.gmra.mxu0 %v3614
    %v5304 = vpop.f32.mrf.mxu0
    %v5305 = vadd.f32 %v5264, %v5304
    %v5306 = vpop.f32.mrf.mxu0
    %v5307 = vadd.f32 %v5266, %v5306
    %v5308 = vpop.f32.mrf.mxu0
    %v5309 = vpop.f32.mrf.mxu0
    %5310 = vdwg.mxu0
    %5311 = vmatprep.subr.bf16.mxu0 %v4776
    %5312 = vmatpush1.bf16.msra.mxu0 %v4775
    %5313 = vmatprep.subr.bf16.mxu0 %v4768
    %5314 = vmatpush1.bf16.msra.mxu0 %v4767
    %5315 = vmatprep.subr.bf16.mxu0 %v4760
    %5316 = vmatpush1.bf16.msra.mxu0 %v4759
    %5317 = vmatprep.subr.bf16.mxu0 %v4752
    %5318 = vmatpush1.bf16.msra.mxu0 %v4751
    %5319 = vmatprep.subr.bf16.mxu0 %v4744
    %5320 = vmatpush1.bf16.msra.mxu0 %v4743
    %5321 = vmatprep.subr.bf16.mxu0 %v4736
    %5322 = vmatpush1.bf16.msra.mxu0 %v4735
    %5323 = vmatprep.subr.bf16.mxu0 %v4728
    %5324 = vmatpush1.bf16.msra.mxu0 %v4727
    %5325 = vmatprep.subr.bf16.mxu0 %v4720
    %5326 = vmatpush1.bf16.msra.mxu0 %v4719
    %5327 = vmatprep.subr.bf16.mxu0 %v4840
    %5328 = vmatpush2.bf16.msra.mxu0 %v4839
    %5329 = vmatprep.subr.bf16.mxu0 %v4832
    %5330 = vmatpush2.bf16.msra.mxu0 %v4831
    %5331 = vmatprep.subr.bf16.mxu0 %v4824
    %5332 = vmatpush2.bf16.msra.mxu0 %v4823
    %5333 = vmatprep.subr.bf16.mxu0 %v4816
    %5334 = vmatpush2.bf16.msra.mxu0 %v4815
    %5335 = vmatprep.subr.bf16.mxu0 %v4808
    %5336 = vmatpush2.bf16.msra.mxu0 %v4807
    %5337 = vmatprep.subr.bf16.mxu0 %v4800
    %5338 = vmatpush2.bf16.msra.mxu0 %v4799
    %5339 = vmatprep.subr.bf16.mxu0 %v4792
    %5340 = vmatpush2.bf16.msra.mxu0 %v4791
    %5341 = vmatprep.subr.bf16.mxu0 %v4784
    %5342 = vmatpush2.bf16.msra.mxu0 %v4783
    %5343 = vmatprep.mubr.bf16.mxu0 %v3613
    %5344 = vmatmul.mubr.bf16.gmra.mxu0 %v3612
    %v5345 = vpop.f32.mrf.mxu0
    %v5346 = vadd.f32 %v3928, %v5345
    %v5347 = vpop.f32.mrf.mxu0
    %v5348 = vadd.f32 %v3932, %v5347
    %v5349 = vpop.f32.mrf.mxu0
    %v5350 = vpop.f32.mrf.mxu0
    %5351 = vdwg.mxu0
    %5352 = vmatprep.subr.bf16.mxu0 %v4904
    %5353 = vmatpush1.bf16.msra.mxu0 %v4903
    %5354 = vmatprep.subr.bf16.mxu0 %v4896
    %5355 = vmatpush1.bf16.msra.mxu0 %v4895
    %5356 = vmatprep.subr.bf16.mxu0 %v4888
    %5357 = vmatpush1.bf16.msra.mxu0 %v4887
    %5358 = vmatprep.subr.bf16.mxu0 %v4880
    %5359 = vmatpush1.bf16.msra.mxu0 %v4879
    %5360 = vmatprep.subr.bf16.mxu0 %v4872
    %5361 = vmatpush1.bf16.msra.mxu0 %v4871
    %5362 = vmatprep.subr.bf16.mxu0 %v4864
    %5363 = vmatpush1.bf16.msra.mxu0 %v4863
    %5364 = vmatprep.subr.bf16.mxu0 %v4856
    %5365 = vmatpush1.bf16.msra.mxu0 %v4855
    %5366 = vmatprep.subr.bf16.mxu0 %v4848
    %5367 = vmatpush1.bf16.msra.mxu0 %v4847
    %5368 = vmatprep.subr.bf16.mxu0 %v4968
    %5369 = vmatpush2.bf16.msra.mxu0 %v4967
    %5370 = vmatprep.subr.bf16.mxu0 %v4960
    %5371 = vmatpush2.bf16.msra.mxu0 %v4959
    %5372 = vmatprep.subr.bf16.mxu0 %v4952
    %5373 = vmatpush2.bf16.msra.mxu0 %v4951
    %5374 = vmatprep.subr.bf16.mxu0 %v4944
    %5375 = vmatpush2.bf16.msra.mxu0 %v4943
    %5376 = vmatprep.subr.bf16.mxu0 %v4936
    %5377 = vmatpush2.bf16.msra.mxu0 %v4935
    %5378 = vmatprep.subr.bf16.mxu0 %v4928
    %5379 = vmatpush2.bf16.msra.mxu0 %v4927
    %5380 = vmatprep.subr.bf16.mxu0 %v4920
    %5381 = vmatpush2.bf16.msra.mxu0 %v4919
    %5382 = vmatprep.subr.bf16.mxu0 %v4912
    %5383 = vmatpush2.bf16.msra.mxu0 %v4911
    %5384 = vmatprep.mubr.bf16.mxu0 %v3615
    %5385 = vmatmul.mubr.bf16.gmra.mxu0 %v3614
    %v5386 = vpop.f32.mrf.mxu0
    %v5387 = vadd.f32 %v5346, %v5386
    %v5388 = vpop.f32.mrf.mxu0
    %v5389 = vadd.f32 %v5348, %v5388
    %v5390 = vpop.f32.mrf.mxu0
    %v5391 = vpop.f32.mrf.mxu0
    %5392 = vdwg.mxu0
    %5393 = vmatprep.subr.bf16.mxu0 %v4778
    %5394 = vmatpush1.bf16.msra.mxu0 %v4777
    %5395 = vmatprep.subr.bf16.mxu0 %v4770
    %5396 = vmatpush1.bf16.msra.mxu0 %v4769
    %5397 = vmatprep.subr.bf16.mxu0 %v4762
    %5398 = vmatpush1.bf16.msra.mxu0 %v4761
    %5399 = vmatprep.subr.bf16.mxu0 %v4754
    %5400 = vmatpush1.bf16.msra.mxu0 %v4753
    %5401 = vmatprep.subr.bf16.mxu0 %v4746
    %5402 = vmatpush1.bf16.msra.mxu0 %v4745
    %5403 = vmatprep.subr.bf16.mxu0 %v4738
    %5404 = vmatpush1.bf16.msra.mxu0 %v4737
    %5405 = vmatprep.subr.bf16.mxu0 %v4730
    %5406 = vmatpush1.bf16.msra.mxu0 %v4729
    %5407 = vmatprep.subr.bf16.mxu0 %v4722
    %5408 = vmatpush1.bf16.msra.mxu0 %v4721
    %5409 = vmatprep.subr.bf16.mxu0 %v4842
    %5410 = vmatpush2.bf16.msra.mxu0 %v4841
    %5411 = vmatprep.subr.bf16.mxu0 %v4834
    %5412 = vmatpush2.bf16.msra.mxu0 %v4833
    %5413 = vmatprep.subr.bf16.mxu0 %v4826
    %5414 = vmatpush2.bf16.msra.mxu0 %v4825
    %5415 = vmatprep.subr.bf16.mxu0 %v4818
    %5416 = vmatpush2.bf16.msra.mxu0 %v4817
    %5417 = vmatprep.subr.bf16.mxu0 %v4810
    %5418 = vmatpush2.bf16.msra.mxu0 %v4809
    %5419 = vmatprep.subr.bf16.mxu0 %v4802
    %5420 = vmatpush2.bf16.msra.mxu0 %v4801
    %5421 = vmatprep.subr.bf16.mxu0 %v4794
    %5422 = vmatpush2.bf16.msra.mxu0 %v4793
    %5423 = vmatprep.subr.bf16.mxu0 %v4786
    %5424 = vmatpush2.bf16.msra.mxu0 %v4785
    %5425 = vmatprep.mubr.bf16.mxu0 %v3613
    %5426 = vmatmul.mubr.bf16.gmra.mxu0 %v3612
    %v5427 = vpop.f32.mrf.mxu0
    %v5428 = vadd.f32 %v3936, %v5427
    %v5429 = vpop.f32.mrf.mxu0
    %v5430 = vadd.f32 %v3940, %v5429
    %v5431 = vpop.f32.mrf.mxu0
    %v5432 = vpop.f32.mrf.mxu0
    %5433 = vdwg.mxu0
    %5434 = vmatprep.subr.bf16.mxu0 %v4906
    %5435 = vmatpush1.bf16.msra.mxu0 %v4905
    %5436 = vmatprep.subr.bf16.mxu0 %v4898
    %5437 = vmatpush1.bf16.msra.mxu0 %v4897
    %5438 = vmatprep.subr.bf16.mxu0 %v4890
    %5439 = vmatpush1.bf16.msra.mxu0 %v4889
    %5440 = vmatprep.subr.bf16.mxu0 %v4882
    %5441 = vmatpush1.bf16.msra.mxu0 %v4881
    %5442 = vmatprep.subr.bf16.mxu0 %v4874
    %5443 = vmatpush1.bf16.msra.mxu0 %v4873
    %5444 = vmatprep.subr.bf16.mxu0 %v4866
    %5445 = vmatpush1.bf16.msra.mxu0 %v4865
    %5446 = vmatprep.subr.bf16.mxu0 %v4858
    %5447 = vmatpush1.bf16.msra.mxu0 %v4857
    %5448 = vmatprep.subr.bf16.mxu0 %v4850
    %5449 = vmatpush1.bf16.msra.mxu0 %v4849
    %5450 = vmatprep.subr.bf16.mxu0 %v4970
    %5451 = vmatpush2.bf16.msra.mxu0 %v4969
    %5452 = vmatprep.subr.bf16.mxu0 %v4962
    %5453 = vmatpush2.bf16.msra.mxu0 %v4961
    %5454 = vmatprep.subr.bf16.mxu0 %v4954
    %5455 = vmatpush2.bf16.msra.mxu0 %v4953
    %5456 = vmatprep.subr.bf16.mxu0 %v4946
    %5457 = vmatpush2.bf16.msra.mxu0 %v4945
    %5458 = vmatprep.subr.bf16.mxu0 %v4938
    %5459 = vmatpush2.bf16.msra.mxu0 %v4937
    %5460 = vmatprep.subr.bf16.mxu0 %v4930
    %5461 = vmatpush2.bf16.msra.mxu0 %v4929
    %5462 = vmatprep.subr.bf16.mxu0 %v4922
    %5463 = vmatpush2.bf16.msra.mxu0 %v4921
    %5464 = vmatprep.subr.bf16.mxu0 %v4914
    %5465 = vmatpush2.bf16.msra.mxu0 %v4913
    %5466 = vmatprep.mubr.bf16.mxu0 %v3615
    %5467 = vmatmul.mubr.bf16.gmra.mxu0 %v3614
    %v5468 = vpop.f32.mrf.mxu0
    %v5469 = vadd.f32 %v5428, %v5468
    %v5470 = vpop.f32.mrf.mxu0
    %v5471 = vadd.f32 %v5430, %v5470
    %v5472 = vpop.f32.mrf.mxu0
    %v5473 = vpop.f32.mrf.mxu0
    %5474 = vdwg.mxu0
    %5475 = vmatprep.subr.bf16.mxu0 %v4780
    %5476 = vmatpush1.bf16.msra.mxu0 %v4779
    %5477 = vmatprep.subr.bf16.mxu0 %v4772
    %5478 = vmatpush1.bf16.msra.mxu0 %v4771
    %5479 = vmatprep.subr.bf16.mxu0 %v4764
    %5480 = vmatpush1.bf16.msra.mxu0 %v4763
    %5481 = vmatprep.subr.bf16.mxu0 %v4756
    %5482 = vmatpush1.bf16.msra.mxu0 %v4755
    %5483 = vmatprep.subr.bf16.mxu0 %v4748
    %5484 = vmatpush1.bf16.msra.mxu0 %v4747
    %5485 = vmatprep.subr.bf16.mxu0 %v4740
    %5486 = vmatpush1.bf16.msra.mxu0 %v4739
    %5487 = vmatprep.subr.bf16.mxu0 %v4732
    %5488 = vmatpush1.bf16.msra.mxu0 %v4731
    %5489 = vmatprep.subr.bf16.mxu0 %v4724
    %5490 = vmatpush1.bf16.msra.mxu0 %v4723
    %5491 = vmatprep.subr.bf16.mxu0 %v4844
    %5492 = vmatpush2.bf16.msra.mxu0 %v4843
    %5493 = vmatprep.subr.bf16.mxu0 %v4836
    %5494 = vmatpush2.bf16.msra.mxu0 %v4835
    %5495 = vmatprep.subr.bf16.mxu0 %v4828
    %5496 = vmatpush2.bf16.msra.mxu0 %v4827
    %5497 = vmatprep.subr.bf16.mxu0 %v4820
    %5498 = vmatpush2.bf16.msra.mxu0 %v4819
    %5499 = vmatprep.subr.bf16.mxu0 %v4812
    %5500 = vmatpush2.bf16.msra.mxu0 %v4811
    %5501 = vmatprep.subr.bf16.mxu0 %v4804
    %5502 = vmatpush2.bf16.msra.mxu0 %v4803
    %5503 = vmatprep.subr.bf16.mxu0 %v4796
    %5504 = vmatpush2.bf16.msra.mxu0 %v4795
    %5505 = vmatprep.subr.bf16.mxu0 %v4788
    %5506 = vmatpush2.bf16.msra.mxu0 %v4787
    %5507 = vmatprep.mubr.bf16.mxu0 %v3613
    %5508 = vmatmul.mubr.bf16.gmra.mxu0 %v3612
    %v5509 = vpop.f32.mrf.mxu0
    %v5510 = vadd.f32 %v3944, %v5509
    %v5511 = vpop.f32.mrf.mxu0
    %v5512 = vadd.f32 %v3948, %v5511
    %v5513 = vpop.f32.mrf.mxu0
    %v5514 = vpop.f32.mrf.mxu0
    %5515 = vdwg.mxu0
    %5516 = vmatprep.subr.bf16.mxu0 %v4908
    %5517 = vmatpush1.bf16.msra.mxu0 %v4907
    %5518 = vmatprep.subr.bf16.mxu0 %v4900
    %5519 = vmatpush1.bf16.msra.mxu0 %v4899
    %5520 = vmatprep.subr.bf16.mxu0 %v4892
    %5521 = vmatpush1.bf16.msra.mxu0 %v4891
    %5522 = vmatprep.subr.bf16.mxu0 %v4884
    %5523 = vmatpush1.bf16.msra.mxu0 %v4883
    %5524 = vmatprep.subr.bf16.mxu0 %v4876
    %5525 = vmatpush1.bf16.msra.mxu0 %v4875
    %5526 = vmatprep.subr.bf16.mxu0 %v4868
    %5527 = vmatpush1.bf16.msra.mxu0 %v4867
    %5528 = vmatprep.subr.bf16.mxu0 %v4860
    %5529 = vmatpush1.bf16.msra.mxu0 %v4859
    %5530 = vmatprep.subr.bf16.mxu0 %v4852
    %5531 = vmatpush1.bf16.msra.mxu0 %v4851
    %5532 = vmatprep.subr.bf16.mxu0 %v4972
    %5533 = vmatpush2.bf16.msra.mxu0 %v4971
    %5534 = vmatprep.subr.bf16.mxu0 %v4964
    %5535 = vmatpush2.bf16.msra.mxu0 %v4963
    %5536 = vmatprep.subr.bf16.mxu0 %v4956
    %5537 = vmatpush2.bf16.msra.mxu0 %v4955
    %5538 = vmatprep.subr.bf16.mxu0 %v4948
    %5539 = vmatpush2.bf16.msra.mxu0 %v4947
    %5540 = vmatprep.subr.bf16.mxu0 %v4940
    %5541 = vmatpush2.bf16.msra.mxu0 %v4939
    %5542 = vmatprep.subr.bf16.mxu0 %v4932
    %5543 = vmatpush2.bf16.msra.mxu0 %v4931
    %5544 = vmatprep.subr.bf16.mxu0 %v4924
    %5545 = vmatpush2.bf16.msra.mxu0 %v4923
    %5546 = vmatprep.subr.bf16.mxu0 %v4916
    %5547 = vmatpush2.bf16.msra.mxu0 %v4915
    %5548 = vmatprep.mubr.bf16.mxu0 %v3615
    %5549 = vmatmul.mubr.bf16.gmra.mxu0 %v3614
    %v5550 = vpop.f32.mrf.mxu0
    %v5551 = vadd.f32 %v5510, %v5550
    %v5552 = vpop.f32.mrf.mxu0
    %v5553 = vadd.f32 %v5512, %v5552
    %v5554 = vpop.f32.mrf.mxu0
    %v5555 = vpop.f32.mrf.mxu0
    %5556 = vdwg.mxu0
    %v5557 = vxor.u32 %v5305, 2147483648
    %v5558 = vxor.u32 %v5307, 2147483648
    %v5559 = vxor.u32 %v5387, 2147483648
    %v5560 = vxor.u32 %v5389, 2147483648
    %v5561 = vxor.u32 %v5469, 2147483648
    %v5562 = vxor.u32 %v5471, 2147483648
    %v5563 = vxor.u32 %v5551, 2147483648
    %v5564 = vxor.u32 %v5553, 2147483648
    %v5565 = vmul.f32 %v5557, 1.442695
    %v5566 = vpow.pop %v5565
    %v5567 = vmul.f32 %v5558, 1.442695
    %v5568 = vpow.pop %v5567
    %v5569 = vmul.f32 %v5559, 1.442695
    %v5570 = vpow.pop %v5569
    %v5571 = vmul.f32 %v5560, 1.442695
    %v5572 = vpow.pop %v5571
    %v5573 = vmul.f32 %v5561, 1.442695
    %v5574 = vpow.pop %v5573
    %v5575 = vmul.f32 %v5562, 1.442695
    %v5576 = vpow.pop %v5575
    %v5577 = vmul.f32 %v5563, 1.442695
    %v5578 = vpow.pop %v5577
    %v5579 = vmul.f32 %v5564, 1.442695
    %v5580 = vpow.pop %v5579
    %v5581 = vadd.f32 %v5566, 1.0
    %v5582 = vadd.f32 %v5568, 1.0
    %v5583 = vadd.f32 %v5570, 1.0
    %v5584 = vadd.f32 %v5572, 1.0
    %v5585 = vadd.f32 %v5574, 1.0
    %v5586 = vadd.f32 %v5576, 1.0
    %v5587 = vadd.f32 %v5578, 1.0
    %v5588 = vadd.f32 %v5580, 1.0
    %v5589 = vrcp.pop %v5581
    %v5590 = vmul.f32 1.0, %v5589
    %v5591 = vrcp.pop %v5582
    %v5592 = vmul.f32 1.0, %v5591
    %v5593 = vrcp.pop %v5583
    %v5594 = vmul.f32 1.0, %v5593
    %v5595 = vrcp.pop %v5584
    %v5596 = vmul.f32 1.0, %v5595
    %v5597 = vrcp.pop %v5585
    %v5598 = vmul.f32 1.0, %v5597
    %v5599 = vrcp.pop %v5586
    %v5600 = vmul.f32 1.0, %v5599
    %v5601 = vrcp.pop %v5587
    %v5602 = vmul.f32 1.0, %v5601
    %v5603 = vrcp.pop %v5588
    %v5604 = vmul.f32 1.0, %v5603
    %v5613 = vcombine.low %v5590, %v5592
    %v5614 = vcombine.low %v5594, %v5596
    %v5616 = vunpack.c.l.s4 1983009808
    %v5617 = vunpack.c.0.s8 %v5616
    %v5618 = vlaneseq
    %v5619 = vshrl.u32 %v5618, 7
    %v5620 = vsub.s32 %v5617, %v5619
    %v5621 = vrot.slane %v5613, %v5620
    %v5623 = vunpack.c.l.s4 1983009808
    %v5624 = vunpack.c.0.s8 %v5623
    %v5625 = vlaneseq
    %v5626 = vshrl.u32 %v5625, 7
    %v5627 = vsub.s32 %v5624, %v5626
    %v5628 = vrot.slane %v5614, %v5627
    %v5629 = vcombine.low %v5621, %v5628
    %v5630 = vcombine.low %v5598, %v5600
    %v5631 = vcombine.low %v5602, %v5604
    %v5633 = vunpack.c.l.s4 1983009808
    %v5634 = vunpack.c.0.s8 %v5633
    %v5635 = vlaneseq
    %v5636 = vshrl.u32 %v5635, 7
    %v5637 = vsub.s32 %v5634, %v5636
    %v5638 = vrot.slane %v5630, %v5637
    %v5640 = vunpack.c.l.s4 1983009808
    %v5641 = vunpack.c.0.s8 %v5640
    %v5642 = vlaneseq
    %v5643 = vshrl.u32 %v5642, 7
    %v5644 = vsub.s32 %v5641, %v5643
    %v5645 = vrot.slane %v5631, %v5644
    %v5646 = vcombine.low %v5638, %v5645
    %5649 = vst [vmem:[%s18] sm:$0xff] %v5629
    %5650 = vst [vmem:[%s18 + $0x8] sm:$0xff] %v5646
    %vm5651 = vcmask 254976
    %5652 = vst.msk [vmem:[%s19] sm:$0x3] %vm5651, %v2866
    // Predicated region
    $region94: #{vae_forward.1} parent=1 // pred_check
      _
    $region95: #{vae_forward.1} parent=1 // pred_check_branch
      %5654 = sbr.rel (0) target = $region97
    $region96: #{vae_forward.1} parent=1 // pred_region
      _
    $region97: #{vae_forward.1} parent=1 // pred_fallthru
      _
    // Predicated region
    $region98: #{vae_forward.1} parent=1 // pred_check
      _
    $region99: #{vae_forward.1} parent=1 // pred_check_branch
      %5656 = sbr.rel (0) target = $region101
    $region100: #{vae_forward.1} parent=1 // pred_region
      _
    $region101: #{vae_forward.1} parent=1 // pred_fallthru
      _
    // Predicated region
    $region102: #{vae_forward.1} parent=1 // pred_check
      _
    $region103: #{vae_forward.1} parent=1 // pred_check_branch
      %5658 = sbr.rel (0) target = $region105
    $region104: #{vae_forward.1} parent=1 // pred_region
      _
    $region105: #{vae_forward.1} parent=1 // pred_fallthru
      _
    // Predicated region
    $region106: #{vae_forward.1} parent=1 // pred_check
      _
    $region107: #{vae_forward.1} parent=1 // pred_check_branch
      %5660 = sbr.rel (0) target = $region109
    $region108: #{vae_forward.1} parent=1 // pred_region
      _
    $region109: #{vae_forward.1} parent=1 // pred_fallthru
      _
    %5661 = vsyncpa [#allocation3], 1
    %5662 = vsyncpa [#allocation5], 1
    %5663 = vsyncpa [#allocation8], 1

</llo_original>
